<compile_context>
chip_gen: v7x
topology: tpu7x:2x2x1
jax: 0.10.0
libtpu: 0.0.40
codegen_flags: <defaults>
</compile_context>

<pallas_src>
import functools

import jax
import jax.numpy as jnp
from jax.experimental import pallas as pl
from jax.experimental.pallas import tpu as pltpu


def _round_up(x, m):
    return ((x + m - 1) // m) * m


# -----------------------------------------------------------------------------
# Kernel: [optional fused x2 nearest row-upsample] + 3x3 conv (padding=1)
#         + folded-BN affine + ReLU, for one (batch, row-tile) block.
# -----------------------------------------------------------------------------
def _conv3x3_kernel(cur_ref, prev_ref, next_ref, w_ref, scale_ref, shift_ref,
                    o_ref, *, row_upsample):
    # cur_ref : (1, THs, W, Cin)    source rows of this tile (pre-row-upsample)
    # prev_ref: (1, 1, W, Cin)      source row just above the tile (edge-clamped)
    # next_ref: (1, 1, W, Cin)      source row just below the tile (edge-clamped)
    # w_ref   : (9*Cin, Coutp)      im2col weights, index = dw*3*Cin + dh*Cin + c
    # scale_ref, shift_ref: (1, Coutp)   folded BN(+conv bias) affine, f32
    # o_ref   : (1, THo, W, Coutp)  THo = 2*THs if row_upsample else THs
    t = pl.program_id(1)
    first = t == 0
    last = t == pl.num_programs(1) - 1

    cur = cur_ref[0]                                     # (THs, W, Cin)
    top = prev_ref[0, 0]                                 # (W, Cin)
    bot = next_ref[0, 0]                                 # (W, Cin)
    # Conv zero-padding at the image top/bottom: the halo BlockSpecs clamp the
    # row index at the edge, so mask the clamped row with a scalar 0/1 factor.
    top = top * jnp.where(first, 0, 1).astype(top.dtype)
    bot = bot * jnp.where(last, 0, 1).astype(bot.dtype)

    if row_upsample:
        # Nearest x2 along rows: broadcast + leading-dim reshape (layout-free).
        cur = jnp.repeat(cur, 2, axis=0)                 # (THo, W, Cin)

    slab = jnp.concatenate([top[None], cur, bot[None]], axis=0)   # (THo+2, W, Cin)
    tho_p2, w, cin = slab.shape
    tho = tho_p2 - 2
    coutp = o_ref.shape[-1]

    # Conv zero-padding along W, then one im2col slab feeding a single matmul.
    zcol = jnp.zeros((tho_p2, 1, cin), slab.dtype)
    slab = jnp.concatenate([zcol, slab, zcol], axis=1)             # (THo+2, W+2, Cin)
    patch = jnp.concatenate(
        [slab[0:tho], slab[1:tho + 1], slab[2:tho + 2]], axis=-1)  # (THo, W+2, 3*Cin)
    im2col = jnp.concatenate(
        [patch[:, 0:w], patch[:, 1:w + 1], patch[:, 2:w + 2]],
        axis=-1)                                                   # (THo, W, 9*Cin)

    acc = jnp.dot(im2col.reshape(tho * w, 9 * cin), w_ref[...],
                  preferred_element_type=jnp.float32)              # f32 accumulation
    y = acc * scale_ref[0] + shift_ref[0]                          # folded BN + bias
    y = jnp.maximum(y, 0.0)                                        # ReLU
    o_ref[0] = y.reshape(tho, w, coutp).astype(o_ref.dtype)        # lane-dense store


# -----------------------------------------------------------------------------
# Wrapper: tiling choice + pallas_call plumbing.
# -----------------------------------------------------------------------------
def _pick_src_tile_h(h_in, w, cin, coutp, elem_bytes, row_upsample):
    """Largest source-row tile whose per-step working set (double-buffered
    in/out blocks + im2col slab + f32 matmul result) stays well under the
    32 MiB scoped-VMEM floor (v7x is the tightest), while keeping >= ~4 grid
    steps per image so DMA/compute overlap has work."""
    up = 2 if row_upsample else 1
    budget = 8 * 1024 * 1024
    best = 1
    for ths in range(1, h_in + 1):
        if h_in % ths:
            continue
        tho = ths * up
        step_bytes = (
            2 * (ths + 2) * w * cin * elem_bytes      # double-buffered input (+halo)
            + 2 * tho * w * coutp * elem_bytes        # double-buffered output
            + tho * w * 9 * cin * elem_bytes          # im2col slab
            + tho * w * coutp * 4                     # f32 matmul result / epilogue
        )
        if step_bytes <= budget:
            best = ths
    while best > 1 and (h_in // best) < 4 and best % 2 == 0:
        best //= 2
    return best


def conv3x3_bn_relu(x, w_hwio, scale, shift, *, row_upsample, cout_pad,
                    compute_dtype=jnp.bfloat16):
    """x: (N, H, W, Cin) -> (N, H*up, W, cout_pad), up = 2 if row_upsample.

    Fused [optional x2 nearest row-upsample] + 3x3 conv (padding=1) +
    per-channel affine (folded inference-mode BatchNorm + conv bias) + ReLU.
    Channels beyond the real Cout are exactly zero (zero-padded weights and
    affine), so the padded activation feeds straight into the next conv."""
    n, h_in, w, cin = x.shape
    kh, kw, wcin, cout = w_hwio.shape
    assert (kh, kw) == (3, 3) and wcin <= cin and cout <= cout_pad
    assert w % 8 == 0, "W must be a multiple of 8 for the in-kernel im2col flatten"
    # TODO(synk): per-row matmul fallback for widths not divisible by 8.

    # im2col weight matrix: index dw*3*Cin + dh*Cin + c (matches kernel concat
    # order), zero-padded in Cin (activation pad channels) and Cout (lane-dense
    # N, multiple of 128).
    wmat = jnp.zeros((3, 3, cin, cout_pad), compute_dtype)
    wmat = wmat.at[:, :, :wcin, :cout].set(w_hwio.astype(compute_dtype))
    w9 = jnp.transpose(wmat, (1, 0, 2, 3)).reshape(9 * cin, cout_pad)

    scale_p = jnp.zeros((1, cout_pad), jnp.float32).at[0, :cout].set(scale)
    shift_p = jnp.zeros((1, cout_pad), jnp.float32).at[0, :cout].set(shift)

    elem = jnp.dtype(compute_dtype).itemsize
    ths = _pick_src_tile_h(h_in, w, cin, cout_pad, elem, row_upsample)
    n_tiles = h_in // ths
    up = 2 if row_upsample else 1
    th_out, h_out = ths * up, h_in * up

    x = x.astype(compute_dtype)
    kernel = functools.partial(_conv3x3_kernel, row_upsample=row_upsample)

    # TODO(synk): for very wide layers (cout_pad >> 128) add a third grid axis
    # over Cout so weights + output blocks stay inside v7x's 64 MiB VMEM.
    return pl.pallas_call(
        kernel,
        out_shape=jax.ShapeDtypeStruct((n, h_out, w, cout_pad), compute_dtype),
        grid=(n, n_tiles),
        in_specs=[
            # current source row-tile
            pl.BlockSpec((1, ths, w, cin), lambda b, t: (b, t, 0, 0)),
            # single halo row above / below (clamped at the image edge; the
            # kernel zeroes it there) -- no host-side pad round trip.
            pl.BlockSpec((1, 1, w, cin),
                         lambda b, t: (b, jnp.maximum(t * ths - 1, 0), 0, 0)),
            pl.BlockSpec((1, 1, w, cin),
                         lambda b, t: (b, jnp.minimum((t + 1) * ths, h_in - 1),
                                       0, 0)),
            # resident operands (constant index_map -> loaded once)
            pl.BlockSpec((9 * cin, cout_pad), lambda b, t: (0, 0)),
            pl.BlockSpec((1, cout_pad), lambda b, t: (0, 0)),
            pl.BlockSpec((1, cout_pad), lambda b, t: (0, 0)),
        ],
        out_specs=pl.BlockSpec((1, th_out, w, cout_pad),
                               lambda b, t: (b, t, 0, 0)),
        compiler_params=pltpu.CompilerParams(
            dimension_semantics=("parallel", "parallel")),
    )(x, x, x, w9, scale_p, shift_p)


# -----------------------------------------------------------------------------
# up_conv module: Upsample(x2 nearest) -> [Conv3x3 + BN + ReLU] x 2
# -----------------------------------------------------------------------------
def _fold_bn(conv_bias, gamma, beta, running_mean, running_var, eps=1e-5):
    scale = gamma / jnp.sqrt(running_var + eps)
    shift = beta + scale * (conv_bias - running_mean)
    return scale, shift


def init_up_conv_params(key, ch_in, ch_out):
    ks = jax.random.split(key, 10)
    p = {}
    p["w1"] = 0.1 * jax.random.normal(ks[0], (3, 3, ch_in, ch_out), jnp.float32)
    p["b1"] = 0.1 * jax.random.normal(ks[1], (ch_out,), jnp.float32)
    p["g1"] = 1.0 + 0.1 * jax.random.normal(ks[2], (ch_out,), jnp.float32)
    p["beta1"] = 0.1 * jax.random.normal(ks[3], (ch_out,), jnp.float32)
    p["rm1"] = 0.1 * jax.random.normal(ks[4], (ch_out,), jnp.float32)
    p["rv1"] = 1.0 + 0.1 * jnp.abs(jax.random.normal(ks[5], (ch_out,), jnp.float32))
    p["w2"] = 0.1 * jax.random.normal(ks[6], (3, 3, ch_out, ch_out), jnp.float32)
    p["b2"] = 0.1 * jax.random.normal(ks[7], (ch_out,), jnp.float32)
    p["g2"] = 1.0 + 0.1 * jax.random.normal(ks[8], (ch_out,), jnp.float32)
    p["beta2"] = 0.1 * jax.random.normal(ks[9], (ch_out,), jnp.float32)
    p["rm2"] = jnp.zeros((ch_out,), jnp.float32)
    p["rv2"] = jnp.ones((ch_out,), jnp.float32)
    return p


def make_up_conv_forward(compute_dtype=jnp.bfloat16):
    @jax.jit
    def fwd(x_nchw, params):
        x = jnp.transpose(x_nchw, (0, 2, 3, 1))                   # NCHW -> NHWC
        # Column (W) half of the x2 nearest upsample at the XLA level (the
        # input is the smallest tensor in the pipeline); the row (H) half and
        # the conv halos stay fused in the first kernel.
        x = jnp.repeat(x, 2, axis=2)

        cout = params["w1"].shape[-1]
        coutp = _round_up(cout, 128)                              # lane-dense stores

        # TODO(synk): training-mode BatchNorm (batch statistics) is not
        # implemented; the folded affine below matches inference mode.
        s1, sh1 = _fold_bn(params["b1"], params["g1"], params["beta1"],
                           params["rm1"], params["rv1"])
        s2, sh2 = _fold_bn(params["b2"], params["g2"], params["beta2"],
                           params["rm2"], params["rv2"])

        # Fused: x2 row upsample + conv1 + BN + ReLU.  The output keeps the
        # channel padding (pad channels exactly 0) and the compute dtype, so
        # the inter-conv activation is written/read once, lane-dense.
        y = conv3x3_bn_relu(x, params["w1"], s1, sh1, row_upsample=True,
                            cout_pad=coutp, compute_dtype=compute_dtype)
        y = conv3x3_bn_relu(y, params["w2"], s2, sh2, row_upsample=False,
                            cout_pad=coutp, compute_dtype=compute_dtype)

        y = y[..., :cout].astype(jnp.float32)
        return jnp.transpose(y, (0, 3, 1, 2))                     # back to NCHW
    return fwd


up_conv_forward_f32 = make_up_conv_forward(jnp.float32)
up_conv_forward_bf16 = make_up_conv_forward(jnp.bfloat16)
up_conv_forward = up_conv_forward_bf16   # default fast path (v6e / v7x)


# Pure-JAX reference for correctness checks (high-precision convolutions).
def _ref_forward(x_nchw, params):
    x = jnp.transpose(x_nchw, (0, 2, 3, 1))
    x = jnp.repeat(jnp.repeat(x, 2, axis=1), 2, axis=2)

    def block(x, w, b, g, beta, rm, rv):
        y = jax.lax.conv_general_dilated(
            x, w, window_strides=(1, 1), padding="SAME",
            dimension_numbers=("NHWC", "HWIO", "NHWC"),
            precision=jax.lax.Precision.HIGHEST)
        s, sh = _fold_bn(b, g, beta, rm, rv)
        return jnp.maximum(y * s + sh, 0.0)

    x = block(x, params["w1"], params["b1"], params["g1"], params["beta1"],
              params["rm1"], params["rv1"])
    x = block(x, params["w2"], params["b2"], params["g2"], params["beta2"],
              params["rm2"], params["rv2"])
    return jnp.transpose(x, (0, 3, 1, 2))


if __name__ == "__main__":
    key = jax.random.PRNGKey(0)
    k_x, k_p = jax.random.split(key)

    ch_in, ch_out = 4, 8
    N, H, W = 2, 16, 16
    x = jax.random.normal(k_x, (N, ch_in, H, W), jnp.float32)      # NCHW input
    params = init_up_conv_params(k_p, ch_in, ch_out)

    ref = jax.block_until_ready(_ref_forward(x, params))

    # f32 operand path: tight-ish check against the high-precision reference.
    out_f32 = jax.block_until_ready(up_conv_forward_f32(x, params))
    assert out_f32.shape == (N, ch_out, 2 * H, 2 * W), out_f32.shape
    err_f32 = float(jnp.max(jnp.abs(out_f32 - ref)))
    assert err_f32 < 3e-2, f"f32 path max abs err {err_f32}"

    # bf16 fast path (v6e/v7x): bf16 operands, f32 MXU accumulation, bf16
    # channel-padded inter-conv activation in HBM.
    out_bf16 = jax.block_until_ready(up_conv_forward_bf16(x, params))
    assert out_bf16.shape == (N, ch_out, 2 * H, 2 * W), out_bf16.shape
    err_bf16 = float(jnp.max(jnp.abs(out_bf16 - ref)))
    assert err_bf16 < 2e-1, f"bf16 path max abs err {err_bf16}"

    print("KERNEL_OK")
</pallas_src>

<mosaic_0001>
module attributes {stable_mosaic.version = 11 : i64} {
  func.func @_conv3x3_kernel(%arg0: i32, %arg1: i32, %arg2: memref<1x4x32x4xf32, #tpu.memory_space<vmem>>, %arg3: memref<1x1x32x4xf32, #tpu.memory_space<vmem>>, %arg4: memref<1x1x32x4xf32, #tpu.memory_space<vmem>>, %arg5: memref<36x128xf32, #tpu.memory_space<vmem>>, %arg6: memref<1x128xf32, #tpu.memory_space<vmem>>, %arg7: memref<1x128xf32, #tpu.memory_space<vmem>>, %arg8: memref<1x8x32x128xf32, #tpu.memory_space<vmem>>) attributes {dimension_semantics = [#tpu.dimension_semantics<parallel>, #tpu.dimension_semantics<parallel>], iteration_bounds = array<i64: 2, 4>, scalar_prefetch = 0 : i64, scratch_operands = 0 : i64, tpu.core_type = #tpu.core_type<tc>, window_params = [{transform_indices = @transform_0, window_bounds = array<i64: 1, 4, 32, 4>}, {transform_indices = @transform_1, window_bounds = array<i64: 1, 1, 32, 4>}, {transform_indices = @transform_2, window_bounds = array<i64: 1, 1, 32, 4>}, {pipeline_mode = #tpu.pipeline_mode<synchronous>, transform_indices = @transform_3, window_bounds = array<i64: 36, 128>}, {pipeline_mode = #tpu.pipeline_mode<synchronous>, transform_indices = @transform_4, window_bounds = array<i64: 1, 128>}, {pipeline_mode = #tpu.pipeline_mode<synchronous>, transform_indices = @transform_5, window_bounds = array<i64: 1, 128>}, {transform_indices = @transform_6, window_bounds = array<i64: 1, 8, 32, 128>}]} {
    %c0_i32 = arith.constant 0 : i32
    %0 = arith.cmpi eq, %arg1, %c0_i32 : i32
    %c3_i32 = arith.constant 3 : i32
    %1 = arith.cmpi eq, %arg1, %c3_i32 : i32
    %c0 = arith.constant 0 : index
    %c0_0 = arith.constant 0 : index
    %c0_1 = arith.constant 0 : index
    %c0_2 = arith.constant 0 : index
    %2 = vector.load %arg2[%c0, %c0_0, %c0_1, %c0_2] : memref<1x4x32x4xf32, #tpu.memory_space<vmem>>, vector<1x4x32x4xf32>
    %3 = vector.shape_cast %2 : vector<1x4x32x4xf32> to vector<4x32x4xf32>
    %c0_3 = arith.constant 0 : index
    %c0_4 = arith.constant 0 : index
    %c0_5 = arith.constant 0 : index
    %c0_6 = arith.constant 0 : index
    %4 = vector.load %arg3[%c0_3, %c0_4, %c0_5, %c0_6] : memref<1x1x32x4xf32, #tpu.memory_space<vmem>>, vector<1x1x32x4xf32>
    %5 = vector.shape_cast %4 : vector<1x1x32x4xf32> to vector<32x4xf32>
    %c0_7 = arith.constant 0 : index
    %c0_8 = arith.constant 0 : index
    %c0_9 = arith.constant 0 : index
    %c0_10 = arith.constant 0 : index
    %6 = vector.load %arg4[%c0_7, %c0_8, %c0_9, %c0_10] : memref<1x1x32x4xf32, #tpu.memory_space<vmem>>, vector<1x1x32x4xf32>
    %7 = vector.shape_cast %6 : vector<1x1x32x4xf32> to vector<32x4xf32>
    %c0_i32_11 = arith.constant 0 : i32
    %c1_i32 = arith.constant 1 : i32
    %8 = arith.select %0, %c0_i32_11, %c1_i32 : i32
    %9 = arith.sitofp %8 : i32 to f32
    %10 = vector.broadcast %9 : f32 to vector<32x4xf32>
    %11 = arith.mulf %5, %10 : vector<32x4xf32>
    %c0_i32_12 = arith.constant 0 : i32
    %c1_i32_13 = arith.constant 1 : i32
    %12 = arith.select %1, %c0_i32_12, %c1_i32_13 : i32
    %13 = arith.sitofp %12 : i32 to f32
    %14 = vector.broadcast %13 : f32 to vector<32x4xf32>
    %15 = arith.mulf %7, %14 : vector<32x4xf32>
    %16 = vector.shape_cast %3 : vector<4x32x4xf32> to vector<4x1x32x4xf32>
    %17 = vector.broadcast %16 : vector<4x1x32x4xf32> to vector<4x2x32x4xf32>
    %18 = vector.shape_cast %17 : vector<4x2x32x4xf32> to vector<8x32x4xf32>
    %19 = vector.shape_cast %11 : vector<32x4xf32> to vector<1x32x4xf32>
    %20 = vector.shape_cast %15 : vector<32x4xf32> to vector<1x32x4xf32>
    %21 = tpu.concatenate %19, %18, %20 in 0 : vector<1x32x4xf32>, vector<8x32x4xf32>, vector<1x32x4xf32> -> vector<10x32x4xf32>
    %cst = arith.constant 0.000000e+00 : f32
    %22 = vector.broadcast %cst : f32 to vector<10x1x4xf32>
    %23 = tpu.concatenate %22, %21, %22 in 1 : vector<10x1x4xf32>, vector<10x32x4xf32>, vector<10x1x4xf32> -> vector<10x34x4xf32>
    %24 = vector.extract_strided_slice %23 {offsets = [0, 0, 0], sizes = [8, 34, 4], strides = [1, 1, 1]} : vector<10x34x4xf32> to vector<8x34x4xf32>
    %25 = vector.extract_strided_slice %23 {offsets = [1, 0, 0], sizes = [8, 34, 4], strides = [1, 1, 1]} : vector<10x34x4xf32> to vector<8x34x4xf32>
    %26 = vector.extract_strided_slice %23 {offsets = [2, 0, 0], sizes = [8, 34, 4], strides = [1, 1, 1]} : vector<10x34x4xf32> to vector<8x34x4xf32>
    %27 = tpu.concatenate %24, %25, %26 in 2 : vector<8x34x4xf32>, vector<8x34x4xf32>, vector<8x34x4xf32> -> vector<8x34x12xf32>
    %28 = vector.extract_strided_slice %27 {offsets = [0, 0, 0], sizes = [8, 32, 12], strides = [1, 1, 1]} : vector<8x34x12xf32> to vector<8x32x12xf32>
    %29 = vector.extract_strided_slice %27 {offsets = [0, 1, 0], sizes = [8, 32, 12], strides = [1, 1, 1]} : vector<8x34x12xf32> to vector<8x32x12xf32>
    %30 = vector.extract_strided_slice %27 {offsets = [0, 2, 0], sizes = [8, 32, 12], strides = [1, 1, 1]} : vector<8x34x12xf32> to vector<8x32x12xf32>
    %31 = tpu.concatenate %28, %29, %30 in 2 : vector<8x32x12xf32>, vector<8x32x12xf32>, vector<8x32x12xf32> -> vector<8x32x36xf32>
    %32 = vector.shape_cast %31 : vector<8x32x36xf32> to vector<256x36xf32>
    %c0_14 = arith.constant 0 : index
    %c0_15 = arith.constant 0 : index
    %33 = vector.load %arg5[%c0_14, %c0_15] : memref<36x128xf32, #tpu.memory_space<vmem>>, vector<36x128xf32>
    %cst_16 = arith.constant dense<0.000000e+00> : vector<256x128xf32>
    %34 = tpu.matmul %32, %33, %cst_16 {dimension_numbers = #tpu.dot_dimension_numbers<[1], [0], [0], [1], [0, 0, 1, 1], [], []>} : vector<256x36xf32>, vector<36x128xf32>, vector<256x128xf32> -> vector<256x128xf32>
    %c0_17 = arith.constant 0 : index
    %c0_18 = arith.constant 0 : index
    %35 = vector.load %arg6[%c0_17, %c0_18] : memref<1x128xf32, #tpu.memory_space<vmem>>, vector<1x128xf32>
    %36 = vector.shape_cast %35 : vector<1x128xf32> to vector<128xf32>
    %37 = vector.shape_cast %36 : vector<128xf32> to vector<1x128xf32>
    %38 = vector.broadcast %37 : vector<1x128xf32> to vector<256x128xf32>
    %39 = arith.mulf %34, %38 : vector<256x128xf32>
    %c0_19 = arith.constant 0 : index
    %c0_20 = arith.constant 0 : index
    %40 = vector.load %arg7[%c0_19, %c0_20] : memref<1x128xf32, #tpu.memory_space<vmem>>, vector<1x128xf32>
    %41 = vector.shape_cast %40 : vector<1x128xf32> to vector<128xf32>
    %42 = vector.shape_cast %41 : vector<128xf32> to vector<1x128xf32>
    %43 = vector.broadcast %42 : vector<1x128xf32> to vector<256x128xf32>
    %44 = arith.addf %39, %43 : vector<256x128xf32>
    %cst_21 = arith.constant 0.000000e+00 : f32
    %45 = vector.broadcast %cst_21 : f32 to vector<256x128xf32>
    %46 = arith.maximumf %44, %45 : vector<256x128xf32>
    %47 = vector.shape_cast %46 : vector<256x128xf32> to vector<8x32x128xf32>
    %c0_22 = arith.constant 0 : index
    %c0_23 = arith.constant 0 : index
    %c0_24 = arith.constant 0 : index
    %c0_25 = arith.constant 0 : index
    %48 = vector.load %arg8[%c0_22, %c0_23, %c0_24, %c0_25] : memref<1x8x32x128xf32, #tpu.memory_space<vmem>>, vector<1x8x32x128xf32>
    %49 = vector.shape_cast %48 : vector<1x8x32x128xf32> to vector<8x32x128xf32>
    %50 = vector.shape_cast %47 : vector<8x32x128xf32> to vector<1x8x32x128xf32>
    tpu.vector_store %arg8[%c0_22, %c0_23, %c0_24, %c0_25], %50 {strides = array<i32>} : memref<1x8x32x128xf32, #tpu.memory_space<vmem>>, vector<1x8x32x128xf32>,
    return
  }
  func.func @transform_0(%arg0: i32, %arg1: i32) -> (i32, i32, i32, i32) {
    %c0_i32 = arith.constant 0 : i32
    %c0_i32_0 = arith.constant 0 : i32
    %c0_i32_1 = arith.constant 0 : i32
    return %arg0, %arg1, %c0_i32, %c0_i32_0 : i32, i32, i32, i32
  }
  func.func @transform_1(%arg0: i32, %arg1: i32) -> (i32, i32, i32, i32) {
    %c4_i32 = arith.constant 4 : i32
    %0 = arith.muli %arg1, %c4_i32 : i32
    %c1_i32 = arith.constant 1 : i32
    %1 = arith.subi %0, %c1_i32 : i32
    %c0_i32 = arith.constant 0 : i32
    %2 = arith.maxsi %1, %c0_i32 : i32
    %c0_i32_0 = arith.constant 0 : i32
    %c0_i32_1 = arith.constant 0 : i32
    %c0_i32_2 = arith.constant 0 : i32
    return %arg0, %2, %c0_i32_0, %c0_i32_1 : i32, i32, i32, i32
  }
  func.func @transform_2(%arg0: i32, %arg1: i32) -> (i32, i32, i32, i32) {
    %c1_i32 = arith.constant 1 : i32
    %0 = arith.addi %arg1, %c1_i32 : i32
    %c4_i32 = arith.constant 4 : i32
    %1 = arith.muli %0, %c4_i32 : i32
    %c15_i32 = arith.constant 15 : i32
    %2 = arith.minsi %1, %c15_i32 : i32
    %c0_i32 = arith.constant 0 : i32
    %c0_i32_0 = arith.constant 0 : i32
    %c0_i32_1 = arith.constant 0 : i32
    return %arg0, %2, %c0_i32, %c0_i32_0 : i32, i32, i32, i32
  }
  func.func @transform_3(%arg0: i32, %arg1: i32) -> (i32, i32) {
    %c0_i32 = arith.constant 0 : i32
    %c0_i32_0 = arith.constant 0 : i32
    %c0_i32_1 = arith.constant 0 : i32
    return %c0_i32, %c0_i32_0 : i32, i32
  }
  func.func @transform_4(%arg0: i32, %arg1: i32) -> (i32, i32) {
    %c0_i32 = arith.constant 0 : i32
    %c0_i32_0 = arith.constant 0 : i32
    %c0_i32_1 = arith.constant 0 : i32
    return %c0_i32, %c0_i32_0 : i32, i32
  }
  func.func @transform_5(%arg0: i32, %arg1: i32) -> (i32, i32) {
    %c0_i32 = arith.constant 0 : i32
    %c0_i32_0 = arith.constant 0 : i32
    %c0_i32_1 = arith.constant 0 : i32
    return %c0_i32, %c0_i32_0 : i32, i32
  }
  func.func @transform_6(%arg0: i32, %arg1: i32) -> (i32, i32, i32, i32) {
    %c0_i32 = arith.constant 0 : i32
    %c0_i32_0 = arith.constant 0 : i32
    %c0_i32_1 = arith.constant 0 : i32
    return %arg0, %arg1, %c0_i32, %c0_i32_0 : i32, i32, i32, i32
  }
}

module attributes {stable_mosaic.version = 11 : i64} {
  func.func @_conv3x3_kernel(%arg0: i32, %arg1: i32, %arg2: memref<1x8x32x128xf32, #tpu.memory_space<vmem>>, %arg3: memref<1x1x32x128xf32, #tpu.memory_space<vmem>>, %arg4: memref<1x1x32x128xf32, #tpu.memory_space<vmem>>, %arg5: memref<1152x128xf32, #tpu.memory_space<vmem>>, %arg6: memref<1x128xf32, #tpu.memory_space<vmem>>, %arg7: memref<1x128xf32, #tpu.memory_space<vmem>>, %arg8: memref<1x8x32x128xf32, #tpu.memory_space<vmem>>) attributes {dimension_semantics = [#tpu.dimension_semantics<parallel>, #tpu.dimension_semantics<parallel>], iteration_bounds = array<i64: 2, 4>, scalar_prefetch = 0 : i64, scratch_operands = 0 : i64, tpu.core_type = #tpu.core_type<tc>, window_params = [{transform_indices = @transform_0, window_bounds = array<i64: 1, 8, 32, 128>}, {transform_indices = @transform_1, window_bounds = array<i64: 1, 1, 32, 128>}, {transform_indices = @transform_2, window_bounds = array<i64: 1, 1, 32, 128>}, {pipeline_mode = #tpu.pipeline_mode<synchronous>, transform_indices = @transform_3, window_bounds = array<i64: 1152, 128>}, {pipeline_mode = #tpu.pipeline_mode<synchronous>, transform_indices = @transform_4, window_bounds = array<i64: 1, 128>}, {pipeline_mode = #tpu.pipeline_mode<synchronous>, transform_indices = @transform_5, window_bounds = array<i64: 1, 128>}, {transform_indices = @transform_6, window_bounds = array<i64: 1, 8, 32, 128>}]} {
    %c0_i32 = arith.constant 0 : i32
    %0 = arith.cmpi eq, %arg1, %c0_i32 : i32
    %c3_i32 = arith.constant 3 : i32
    %1 = arith.cmpi eq, %arg1, %c3_i32 : i32
    %c0 = arith.constant 0 : index
    %c0_0 = arith.constant 0 : index
    %c0_1 = arith.constant 0 : index
    %c0_2 = arith.constant 0 : index
    %2 = vector.load %arg2[%c0, %c0_0, %c0_1, %c0_2] : memref<1x8x32x128xf32, #tpu.memory_space<vmem>>, vector<1x8x32x128xf32>
    %3 = vector.shape_cast %2 : vector<1x8x32x128xf32> to vector<8x32x128xf32>
    %c0_3 = arith.constant 0 : index
    %c0_4 = arith.constant 0 : index
    %c0_5 = arith.constant 0 : index
    %c0_6 = arith.constant 0 : index
    %4 = vector.load %arg3[%c0_3, %c0_4, %c0_5, %c0_6] : memref<1x1x32x128xf32, #tpu.memory_space<vmem>>, vector<1x1x32x128xf32>
    %5 = vector.shape_cast %4 : vector<1x1x32x128xf32> to vector<32x128xf32>
    %c0_7 = arith.constant 0 : index
    %c0_8 = arith.constant 0 : index
    %c0_9 = arith.constant 0 : index
    %c0_10 = arith.constant 0 : index
    %6 = vector.load %arg4[%c0_7, %c0_8, %c0_9, %c0_10] : memref<1x1x32x128xf32, #tpu.memory_space<vmem>>, vector<1x1x32x128xf32>
    %7 = vector.shape_cast %6 : vector<1x1x32x128xf32> to vector<32x128xf32>
    %c0_i32_11 = arith.constant 0 : i32
    %c1_i32 = arith.constant 1 : i32
    %8 = arith.select %0, %c0_i32_11, %c1_i32 : i32
    %9 = arith.sitofp %8 : i32 to f32
    %10 = vector.broadcast %9 : f32 to vector<32x128xf32>
    %11 = arith.mulf %5, %10 : vector<32x128xf32>
    %c0_i32_12 = arith.constant 0 : i32
    %c1_i32_13 = arith.constant 1 : i32
    %12 = arith.select %1, %c0_i32_12, %c1_i32_13 : i32
    %13 = arith.sitofp %12 : i32 to f32
    %14 = vector.broadcast %13 : f32 to vector<32x128xf32>
    %15 = arith.mulf %7, %14 : vector<32x128xf32>
    %16 = vector.shape_cast %11 : vector<32x128xf32> to vector<1x32x128xf32>
    %17 = vector.shape_cast %15 : vector<32x128xf32> to vector<1x32x128xf32>
    %18 = tpu.concatenate %16, %3, %17 in 0 : vector<1x32x128xf32>, vector<8x32x128xf32>, vector<1x32x128xf32> -> vector<10x32x128xf32>
    %cst = arith.constant 0.000000e+00 : f32
    %19 = vector.broadcast %cst : f32 to vector<10x1x128xf32>
    %20 = tpu.concatenate %19, %18, %19 in 1 : vector<10x1x128xf32>, vector<10x32x128xf32>, vector<10x1x128xf32> -> vector<10x34x128xf32>
    %21 = vector.extract_strided_slice %20 {offsets = [0, 0, 0], sizes = [8, 34, 128], strides = [1, 1, 1]} : vector<10x34x128xf32> to vector<8x34x128xf32>
    %22 = vector.extract_strided_slice %20 {offsets = [1, 0, 0], sizes = [8, 34, 128], strides = [1, 1, 1]} : vector<10x34x128xf32> to vector<8x34x128xf32>
    %23 = vector.extract_strided_slice %20 {offsets = [2, 0, 0], sizes = [8, 34, 128], strides = [1, 1, 1]} : vector<10x34x128xf32> to vector<8x34x128xf32>
    %24 = tpu.concatenate %21, %22, %23 in 2 : vector<8x34x128xf32>, vector<8x34x128xf32>, vector<8x34x128xf32> -> vector<8x34x384xf32>
    %25 = vector.extract_strided_slice %24 {offsets = [0, 0, 0], sizes = [8, 32, 384], strides = [1, 1, 1]} : vector<8x34x384xf32> to vector<8x32x384xf32>
    %26 = vector.extract_strided_slice %24 {offsets = [0, 1, 0], sizes = [8, 32, 384], strides = [1, 1, 1]} : vector<8x34x384xf32> to vector<8x32x384xf32>
    %27 = vector.extract_strided_slice %24 {offsets = [0, 2, 0], sizes = [8, 32, 384], strides = [1, 1, 1]} : vector<8x34x384xf32> to vector<8x32x384xf32>
    %28 = tpu.concatenate %25, %26, %27 in 2 : vector<8x32x384xf32>, vector<8x32x384xf32>, vector<8x32x384xf32> -> vector<8x32x1152xf32>
    %29 = vector.shape_cast %28 : vector<8x32x1152xf32> to vector<256x1152xf32>
    %c0_14 = arith.constant 0 : index
    %c0_15 = arith.constant 0 : index
    %30 = vector.load %arg5[%c0_14, %c0_15] : memref<1152x128xf32, #tpu.memory_space<vmem>>, vector<1152x128xf32>
    %cst_16 = arith.constant dense<0.000000e+00> : vector<256x128xf32>
    %31 = tpu.matmul %29, %30, %cst_16 {dimension_numbers = #tpu.dot_dimension_numbers<[1], [0], [0], [1], [0, 0, 1, 1], [], []>} : vector<256x1152xf32>, vector<1152x128xf32>, vector<256x128xf32> -> vector<256x128xf32>
    %c0_17 = arith.constant 0 : index
    %c0_18 = arith.constant 0 : index
    %32 = vector.load %arg6[%c0_17, %c0_18] : memref<1x128xf32, #tpu.memory_space<vmem>>, vector<1x128xf32>
    %33 = vector.shape_cast %32 : vector<1x128xf32> to vector<128xf32>
    %34 = vector.shape_cast %33 : vector<128xf32> to vector<1x128xf32>
    %35 = vector.broadcast %34 : vector<1x128xf32> to vector<256x128xf32>
    %36 = arith.mulf %31, %35 : vector<256x128xf32>
    %c0_19 = arith.constant 0 : index
    %c0_20 = arith.constant 0 : index
    %37 = vector.load %arg7[%c0_19, %c0_20] : memref<1x128xf32, #tpu.memory_space<vmem>>, vector<1x128xf32>
    %38 = vector.shape_cast %37 : vector<1x128xf32> to vector<128xf32>
    %39 = vector.shape_cast %38 : vector<128xf32> to vector<1x128xf32>
    %40 = vector.broadcast %39 : vector<1x128xf32> to vector<256x128xf32>
    %41 = arith.addf %36, %40 : vector<256x128xf32>
    %cst_21 = arith.constant 0.000000e+00 : f32
    %42 = vector.broadcast %cst_21 : f32 to vector<256x128xf32>
    %43 = arith.maximumf %41, %42 : vector<256x128xf32>
    %44 = vector.shape_cast %43 : vector<256x128xf32> to vector<8x32x128xf32>
    %c0_22 = arith.constant 0 : index
    %c0_23 = arith.constant 0 : index
    %c0_24 = arith.constant 0 : index
    %c0_25 = arith.constant 0 : index
    %45 = vector.load %arg8[%c0_22, %c0_23, %c0_24, %c0_25] : memref<1x8x32x128xf32, #tpu.memory_space<vmem>>, vector<1x8x32x128xf32>
    %46 = vector.shape_cast %45 : vector<1x8x32x128xf32> to vector<8x32x128xf32>
    %47 = vector.shape_cast %44 : vector<8x32x128xf32> to vector<1x8x32x128xf32>
    tpu.vector_store %arg8[%c0_22, %c0_23, %c0_24, %c0_25], %47 {strides = array<i32>} : memref<1x8x32x128xf32, #tpu.memory_space<vmem>>, vector<1x8x32x128xf32>,
    return
  }
  func.func @transform_0(%arg0: i32, %arg1: i32) -> (i32, i32, i32, i32) {
    %c0_i32 = arith.constant 0 : i32
    %c0_i32_0 = arith.constant 0 : i32
    %c0_i32_1 = arith.constant 0 : i32
    return %arg0, %arg1, %c0_i32, %c0_i32_0 : i32, i32, i32, i32
  }
  func.func @transform_1(%arg0: i32, %arg1: i32) -> (i32, i32, i32, i32) {
    %c8_i32 = arith.constant 8 : i32
    %0 = arith.muli %arg1, %c8_i32 : i32
    %c1_i32 = arith.constant 1 : i32
    %1 = arith.subi %0, %c1_i32 : i32
    %c0_i32 = arith.constant 0 : i32
    %2 = arith.maxsi %1, %c0_i32 : i32
    %c0_i32_0 = arith.constant 0 : i32
    %c0_i32_1 = arith.constant 0 : i32
    %c0_i32_2 = arith.constant 0 : i32
    return %arg0, %2, %c0_i32_0, %c0_i32_1 : i32, i32, i32, i32
  }
  func.func @transform_2(%arg0: i32, %arg1: i32) -> (i32, i32, i32, i32) {
    %c1_i32 = arith.constant 1 : i32
    %0 = arith.addi %arg1, %c1_i32 : i32
    %c8_i32 = arith.constant 8 : i32
    %1 = arith.muli %0, %c8_i32 : i32
    %c31_i32 = arith.constant 31 : i32
    %2 = arith.minsi %1, %c31_i32 : i32
    %c0_i32 = arith.constant 0 : i32
    %c0_i32_0 = arith.constant 0 : i32
    %c0_i32_1 = arith.constant 0 : i32
    return %arg0, %2, %c0_i32, %c0_i32_0 : i32, i32, i32, i32
  }
  func.func @transform_3(%arg0: i32, %arg1: i32) -> (i32, i32) {
    %c0_i32 = arith.constant 0 : i32
    %c0_i32_0 = arith.constant 0 : i32
    %c0_i32_1 = arith.constant 0 : i32
    return %c0_i32, %c0_i32_0 : i32, i32
  }
  func.func @transform_4(%arg0: i32, %arg1: i32) -> (i32, i32) {
    %c0_i32 = arith.constant 0 : i32
    %c0_i32_0 = arith.constant 0 : i32
    %c0_i32_1 = arith.constant 0 : i32
    return %c0_i32, %c0_i32_0 : i32, i32
  }
  func.func @transform_5(%arg0: i32, %arg1: i32) -> (i32, i32) {
    %c0_i32 = arith.constant 0 : i32
    %c0_i32_0 = arith.constant 0 : i32
    %c0_i32_1 = arith.constant 0 : i32
    return %c0_i32, %c0_i32_0 : i32, i32
  }
  func.func @transform_6(%arg0: i32, %arg1: i32) -> (i32, i32, i32, i32) {
    %c0_i32 = arith.constant 0 : i32
    %c0_i32_0 = arith.constant 0 : i32
    %c0_i32_1 = arith.constant 0 : i32
    return %arg0, %arg1, %c0_i32, %c0_i32_0 : i32, i32, i32, i32
  }
}

</mosaic_0001>

<llo_original>
// kernel: fwd.2
$region0: #{fwd.2}
  #allocation0 [shape = 'u32[]', space=smem, size = 0x4, offset = 0x4, fixed_abs, tag = 'smem constant byte address 0x4 - core index']
  #allocation1 [shape = 'u32[144,128]{1,0:T(1,128)}', space=vmem, size = 0x12000, scoped, tag = 'internal scratch']
  %s0 = inlined_call_operand.vmem [shape: f32[2,16,32,4], index: 0, kind: input, shape index: {}, may-alias: {0,1,2}]
  %s1 = inlined_call_operand.vmem [shape: f32[2,16,32,4], index: 1, kind: input, shape index: {}, may-alias: {0,1,2}]
  %s2 = inlined_call_operand.vmem [shape: f32[2,16,32,4], index: 2, kind: input, shape index: {}, may-alias: {0,1,2}]
  %s3 = inlined_call_operand.vmem [shape: f32[36,128], index: 3, kind: input, shape index: {}]
  %s4 = inlined_call_operand.vmem [shape: f32[1,128], index: 4, kind: input, shape index: {}]
  %s5 = inlined_call_operand.vmem [shape: f32[1,128], index: 5, kind: input, shape index: {}]
  %s6 = inlined_call_operand.vmem [shape: f32[2,32,32,128], index: 6, kind: output, shape index: {}]
  %s7 = sld [smem:[#allocation0]]
  $region57: #{fwd.2} parent=0
    _
  %s9 = ssub.s32 1, %s7
  %s10 = scalar_select 0, %s9, %s7
  loop: start=0, step=1, limit=10
  $region2: #{fwd.2} parent=0 // loop_pre_header
    _
  $region3: #{fwd.2} parent=0 // loop_header
    %s12 = sphi 0, %s16
    %p13 = scmp.ge.s32.totalorder %s12, 10
    %s19 = sphi 0, %s31
    %s20 = sphi 0, %s27
    %s21 = sphi 0, %s19
    %s22 = sphi 0, %s20
    %s23 = sphi 0, %s21
    %s24 = sphi 0, %s22
    %s36 = sphi 0, %s38
    %s39 = sphi 0, %s36
    %s40 = sphi 0, %s39
    %s56 = sphi 0, %s40
    %s72 = sphi 0, %s74
    %s75 = sphi 0, %s72
    %s76 = sphi 0, %s75
    %s92 = sphi 0, %s76
    %s108 = sphi 0, %s110
    %s111 = sphi 0, %s108
    %s112 = sphi 0, %s111
    %s128 = sphi 0, %s112
    %s132 = sphi 0, %s132
    %s134 = sphi 0, %s132
    %s135 = sphi 0, %s134
    %s149 = sphi 0, %s135
    %s153 = sphi 0, %s153
    %s155 = sphi 0, %s153
    %s156 = sphi 0, %s155
    %s170 = sphi 0, %s156
    %s174 = sphi 0, %s174
    %s176 = sphi 0, %s174
    %s177 = sphi 0, %s176
    %s191 = sphi 0, %s177
    %s199 = sphi 0, %s201
    %s202 = sphi 0, %s199
    %s203 = sphi 0, %s202
    %s219 = sphi 0, %s203
  $region4: #{fwd.2} parent=0 // loop_header_branch
    %15 = sbr.rel (%p13) target = $region8
  $region5: #{fwd.2} parent=0 // loop_body
    %s17 = ssub.s32 %s12, 1
    %s18 = ssub.s32 %s12, 2
    %s25 = sadd.s32 1, %s20
    %p26 = scmp.ge.s32.totalorder %s25, 4
    %s27 = scalar_select %p26, 0, %s25
    %s28 = sadd.s32 1, %s19
    %s29 = scalar_select %p26, %s28, %s19
    %p30 = scmp.ge.s32.totalorder %s29, 2
    %s31 = scalar_select %p30, 0, %s29
    %s32 = ssub.s32 %s19, %s31
    %s33 = ssub.s32 %s20, %s27
    %s34 = sor.u32 %s32, %s33
    %p35 = scmp.eq.s32.totalorder %s34, 0
    %s37 = sadd.s32 %s36, 1
    %s38 = scalar_select %p35, %s36, %s37
    %p41 = pneg %p35
    %p42 = scmp.eq.s32.totalorder %s12, 7
    %p43 = por %p41, %p42
    %p44 = scmp.ne.s32.totalorder %s36, %s39
    %p45 = scmp.eq.s32.totalorder %s12, 0
    %p46 = por %p44, %p45
    %p47 = scmp.ne.s32.totalorder %s36, %s39
    %p48 = scmp.eq.s32.totalorder %s17, 7
    %p49 = por %p47, %p48
    %p50 = scmp.ne.s32.totalorder %s39, %s40
    %p51 = scmp.eq.s32.totalorder %s17, 0
    %p52 = por %p50, %p51
    %p53 = scmp.ne.s32.totalorder %s39, %s40
    %p54 = scmp.eq.s32.totalorder %s18, 7
    %p55 = por %p53, %p54
    %p57 = scmp.ne.s32.totalorder %s40, %s56
    %p58 = scmp.eq.s32.totalorder %s18, 0
    %p59 = por %p57, %p58
    %s60 = smul.u32 %s20, 4
    %s61 = ssub.s32 %s60, 1
    %p62 = scmp.gt.s32.totalorder %s61, 0
    %s63 = scalar_select %p62, %s61, 0
    %s64 = smul.u32 %s27, 4
    %s65 = ssub.s32 %s64, 1
    %p66 = scmp.gt.s32.totalorder %s65, 0
    %s67 = scalar_select %p66, %s65, 0
    %s68 = ssub.s32 %s19, %s31
    %s69 = ssub.s32 %s63, %s67
    %s70 = sor.u32 %s68, %s69
    %p71 = scmp.eq.s32.totalorder %s70, 0
    %s73 = sadd.s32 %s72, 1
    %s74 = scalar_select %p71, %s72, %s73
    %p77 = pneg %p71
    %p78 = scmp.eq.s32.totalorder %s12, 7
    %p79 = por %p77, %p78
    %p80 = scmp.ne.s32.totalorder %s72, %s75
    %p81 = scmp.eq.s32.totalorder %s12, 0
    %p82 = por %p80, %p81
    %p83 = scmp.ne.s32.totalorder %s72, %s75
    %p84 = scmp.eq.s32.totalorder %s17, 7
    %p85 = por %p83, %p84
    %p86 = scmp.ne.s32.totalorder %s75, %s76
    %p87 = scmp.eq.s32.totalorder %s17, 0
    %p88 = por %p86, %p87
    %p89 = scmp.ne.s32.totalorder %s75, %s76
    %p90 = scmp.eq.s32.totalorder %s18, 7
    %p91 = por %p89, %p90
    %p93 = scmp.ne.s32.totalorder %s76, %s92
    %p94 = scmp.eq.s32.totalorder %s18, 0
    %p95 = por %p93, %p94
    %s96 = sadd.s32 %s20, 1
    %s97 = smul.u32 %s96, 4
    %p98 = scmp.lt.s32.totalorder %s97, 15
    %s99 = scalar_select %p98, %s97, 15
    %s100 = sadd.s32 %s27, 1
    %s101 = smul.u32 %s100, 4
    %p102 = scmp.lt.s32.totalorder %s101, 15
    %s103 = scalar_select %p102, %s101, 15
    %s104 = ssub.s32 %s19, %s31
    %s105 = ssub.s32 %s99, %s103
    %s106 = sor.u32 %s104, %s105
    %p107 = scmp.eq.s32.totalorder %s106, 0
    %s109 = sadd.s32 %s108, 1
    %s110 = scalar_select %p107, %s108, %s109
    %p113 = pneg %p107
    %p114 = scmp.eq.s32.totalorder %s12, 7
    %p115 = por %p113, %p114
    %p116 = scmp.ne.s32.totalorder %s108, %s111
    %p117 = scmp.eq.s32.totalorder %s12, 0
    %p118 = por %p116, %p117
    %p119 = scmp.ne.s32.totalorder %s108, %s111
    %p120 = scmp.eq.s32.totalorder %s17, 7
    %p121 = por %p119, %p120
    %p122 = scmp.ne.s32.totalorder %s111, %s112
    %p123 = scmp.eq.s32.totalorder %s17, 0
    %p124 = por %p122, %p123
    %p125 = scmp.ne.s32.totalorder %s111, %s112
    %p126 = scmp.eq.s32.totalorder %s18, 7
    %p127 = por %p125, %p126
    %p129 = scmp.ne.s32.totalorder %s112, %s128
    %p130 = scmp.eq.s32.totalorder %s18, 0
    %p131 = por %p129, %p130
    %s133 = sadd.s32 %s132, 1
    %p136 = scmp.eq.s32.totalorder %s12, 7
    %p137 = scmp.ne.s32.totalorder %s132, %s134
    %p138 = scmp.eq.s32.totalorder %s12, 0
    %p139 = por %p137, %p138
    %p140 = scmp.ne.s32.totalorder %s132, %s134
    %p141 = scmp.eq.s32.totalorder %s17, 7
    %p142 = por %p140, %p141
    %p143 = scmp.ne.s32.totalorder %s134, %s135
    %p144 = scmp.eq.s32.totalorder %s17, 0
    %p145 = por %p143, %p144
    %p146 = scmp.ne.s32.totalorder %s134, %s135
    %p147 = scmp.eq.s32.totalorder %s18, 7
    %p148 = por %p146, %p147
    %p150 = scmp.ne.s32.totalorder %s135, %s149
    %p151 = scmp.eq.s32.totalorder %s18, 0
    %p152 = por %p150, %p151
    %s154 = sadd.s32 %s153, 1
    %p157 = scmp.eq.s32.totalorder %s12, 7
    %p158 = scmp.ne.s32.totalorder %s153, %s155
    %p159 = scmp.eq.s32.totalorder %s12, 0
    %p160 = por %p158, %p159
    %p161 = scmp.ne.s32.totalorder %s153, %s155
    %p162 = scmp.eq.s32.totalorder %s17, 7
    %p163 = por %p161, %p162
    %p164 = scmp.ne.s32.totalorder %s155, %s156
    %p165 = scmp.eq.s32.totalorder %s17, 0
    %p166 = por %p164, %p165
    %p167 = scmp.ne.s32.totalorder %s155, %s156
    %p168 = scmp.eq.s32.totalorder %s18, 7
    %p169 = por %p167, %p168
    %p171 = scmp.ne.s32.totalorder %s156, %s170
    %p172 = scmp.eq.s32.totalorder %s18, 0
    %p173 = por %p171, %p172
    %s175 = sadd.s32 %s174, 1
    %p178 = scmp.eq.s32.totalorder %s12, 7
    %p179 = scmp.ne.s32.totalorder %s174, %s176
    %p180 = scmp.eq.s32.totalorder %s12, 0
    %p181 = por %p179, %p180
    %p182 = scmp.ne.s32.totalorder %s174, %s176
    %p183 = scmp.eq.s32.totalorder %s17, 7
    %p184 = por %p182, %p183
    %p185 = scmp.ne.s32.totalorder %s176, %s177
    %p186 = scmp.eq.s32.totalorder %s17, 0
    %p187 = por %p185, %p186
    %p188 = scmp.ne.s32.totalorder %s176, %s177
    %p189 = scmp.eq.s32.totalorder %s18, 7
    %p190 = por %p188, %p189
    %p192 = scmp.ne.s32.totalorder %s177, %s191
    %p193 = scmp.eq.s32.totalorder %s18, 0
    %p194 = por %p192, %p193
    %s195 = ssub.s32 %s19, %s31
    %s196 = ssub.s32 %s20, %s27
    %s197 = sor.u32 %s195, %s196
    %p198 = scmp.eq.s32.totalorder %s197, 0
    %s200 = sadd.s32 %s199, 1
    %s201 = scalar_select %p198, %s199, %s200
    %p204 = pneg %p198
    %p205 = scmp.eq.s32.totalorder %s12, 7
    %p206 = por %p204, %p205
    %p207 = scmp.ne.s32.totalorder %s199, %s202
    %p208 = scmp.eq.s32.totalorder %s12, 0
    %p209 = por %p207, %p208
    %p210 = scmp.ne.s32.totalorder %s199, %s202
    %p211 = scmp.eq.s32.totalorder %s17, 7
    %p212 = por %p210, %p211
    %p213 = scmp.ne.s32.totalorder %s202, %s203
    %p214 = scmp.eq.s32.totalorder %s17, 0
    %p215 = por %p213, %p214
    %p216 = scmp.ne.s32.totalorder %s202, %s203
    %p217 = scmp.eq.s32.totalorder %s18, 7
    %p218 = por %p216, %p217
    %p220 = scmp.ne.s32.totalorder %s203, %s219
    %p221 = scmp.eq.s32.totalorder %s18, 0
    %p222 = por %p220, %p221
    %p223 = scmp.le.s32.totalorder 1, %s12
    %p224 = scmp.lt.s32.totalorder %s12, 9
    %p225 = pnand %p223, %p224
    %p226 = pneg %p225
    // Predicated region
    $region9: #{fwd.2} parent=5 // pred_check
      _
    $region10: #{fwd.2} parent=5 // pred_check_branch
      %228 = sbr.rel (%p225) target = $region12
    $region11: #{fwd.2} parent=5 // pred_region
      %s229 = ssub.s32 %s12, 1
      // Predicated region
      $region13: #{fwd.2} parent=11 // pred_check
        %p230 = pneg %p145
      $region14: #{fwd.2} parent=11 // pred_check_branch
        %232 = sbr.rel (%p230) target = $region16
      $region15: #{fwd.2} parent=11 // pred_region
        _
      $region16: #{fwd.2} parent=11 // pred_fallthru
        _
      // Predicated region
      $region17: #{fwd.2} parent=11 // pred_check
        %p233 = pneg %p166
      $region18: #{fwd.2} parent=11 // pred_check_branch
        %235 = sbr.rel (%p233) target = $region20
      $region19: #{fwd.2} parent=11 // pred_region
        _
      $region20: #{fwd.2} parent=11 // pred_fallthru
        _
      // Predicated region
      $region21: #{fwd.2} parent=11 // pred_check
        %p236 = pneg %p187
      $region22: #{fwd.2} parent=11 // pred_check_branch
        %238 = sbr.rel (%p236) target = $region24
      $region23: #{fwd.2} parent=11 // pred_region
        _
      $region24: #{fwd.2} parent=11 // pred_fallthru
        _
    $region12: #{fwd.2} parent=5 // pred_fallthru
      _
    %p239 = scmp.lt.s32.totalorder %s12, 8
    // Predicated region
    $region25: #{fwd.2} parent=5 // pred_check
      %p240 = pneg %p239
    $region26: #{fwd.2} parent=5 // pred_check_branch
      %242 = sbr.rel (%p240) target = $region28
    $region27: #{fwd.2} parent=5 // pred_region
      // Predicated region
      $region29: #{fwd.2} parent=27 // pred_check
        %p243 = pneg %p46
      $region30: #{fwd.2} parent=27 // pred_check_branch
        %245 = sbr.rel (%p243) target = $region32
      $region31: #{fwd.2} parent=27 // pred_region
        %s246 = smul.u32 4, %s20
        %p247 = scmp.lt.s32.totalorder %s19, 1
        %s248 = scalar_select %p247, %s19, 1
        %p249 = scmp.lt.s32.totalorder %s246, 15
        %s250 = scalar_select %p249, %s246, 15
        %s251 = smul.addr %s250, 4
        %s252 = smul.addr %s248, 64
        %s253 = sadd.s32 %s251, %s252
        %s254 = smul.addr %s253, 8
        %s255 = scalar_lea.vmem %s0, %s254
        %s256 = smul.u32 4, %s20
      $region32: #{fwd.2} parent=27 // pred_fallthru
        _
      // Predicated region
      $region33: #{fwd.2} parent=27 // pred_check
        %p257 = pneg %p82
      $region34: #{fwd.2} parent=27 // pred_check_branch
        %259 = sbr.rel (%p257) target = $region36
      $region35: #{fwd.2} parent=27 // pred_region
        %s260 = smul.u32 %s20, 4
        %s261 = ssub.s32 %s260, 1
        %p262 = scmp.gt.s32.totalorder %s261, 0
        %s263 = scalar_select %p262, %s261, 0
        %p264 = scmp.lt.s32.totalorder %s19, 1
        %s265 = scalar_select %p264, %s19, 1
        %p266 = scmp.lt.s32.totalorder %s263, 15
        %s267 = scalar_select %p266, %s263, 15
        %s268 = smul.addr %s267, 4
        %s269 = smul.addr %s265, 64
        %s270 = sadd.s32 %s268, %s269
        %s271 = smul.addr %s270, 8
        %s272 = scalar_lea.vmem %s1, %s271
        %s273 = smul.u32 %s20, 4
        %s274 = ssub.s32 %s273, 1
        %p275 = scmp.gt.s32.totalorder %s274, 0
        %s276 = scalar_select %p275, %s274, 0
      $region36: #{fwd.2} parent=27 // pred_fallthru
        _
      // Predicated region
      $region37: #{fwd.2} parent=27 // pred_check
        %p277 = pneg %p118
      $region38: #{fwd.2} parent=27 // pred_check_branch
        %279 = sbr.rel (%p277) target = $region40
      $region39: #{fwd.2} parent=27 // pred_region
        %s280 = sadd.s32 %s20, 1
        %s281 = smul.u32 %s280, 4
        %p282 = scmp.lt.s32.totalorder %s281, 15
        %s283 = scalar_select %p282, %s281, 15
        %p284 = scmp.lt.s32.totalorder %s19, 1
        %s285 = scalar_select %p284, %s19, 1
        %p286 = scmp.lt.s32.totalorder %s283, 15
        %s287 = scalar_select %p286, %s283, 15
        %s288 = smul.addr %s287, 4
        %s289 = smul.addr %s285, 64
        %s290 = sadd.s32 %s288, %s289
        %s291 = smul.addr %s290, 8
        %s292 = scalar_lea.vmem %s2, %s291
        %s293 = sadd.s32 %s20, 1
        %s294 = smul.u32 %s293, 4
        %p295 = scmp.lt.s32.totalorder %s294, 15
        %s296 = scalar_select %p295, %s294, 15
      $region40: #{fwd.2} parent=27 // pred_fallthru
        _
    $region28: #{fwd.2} parent=5 // pred_fallthru
      _
    %p297 = scmp.le.s32.totalorder 1, %s12
    %p298 = scmp.lt.s32.totalorder %s12, 9
    %p299 = pnand %p297, %p298
    %p300 = pneg %p299
    // Predicated region
    $region41: #{fwd.2} parent=5 // pred_check
      _
    $region42: #{fwd.2} parent=5 // pred_check_branch
      %302 = sbr.rel (%p299) target = $region44
    $region43: #{fwd.2} parent=5 // pred_region
      %s303 = ssub.s32 %s12, 1
      %s304 = smul.u32 4, %s22
      %p305 = scmp.lt.s32.totalorder %s21, 1
      %s306 = scalar_select %p305, %s21, 1
      %p307 = scmp.lt.s32.totalorder %s304, 15
      %s308 = scalar_select %p307, %s304, 15
      %s309 = smul.addr %s308, 4
      %s310 = smul.addr %s306, 64
      %s311 = sadd.s32 %s309, %s310
      %s312 = smul.addr %s311, 8
      %s313 = scalar_lea.vmem %s0, %s312
      %p314 = pneg %p52
      %p315 = pneg %p49
      %s316 = smul.u32 %s22, 4
      %s317 = ssub.s32 %s316, 1
      %p318 = scmp.gt.s32.totalorder %s317, 0
      %s319 = scalar_select %p318, %s317, 0
      %p320 = scmp.lt.s32.totalorder %s21, 1
      %s321 = scalar_select %p320, %s21, 1
      %p322 = scmp.lt.s32.totalorder %s319, 15
      %s323 = scalar_select %p322, %s319, 15
      %s324 = smul.addr %s323, 4
      %s325 = smul.addr %s321, 64
      %s326 = sadd.s32 %s324, %s325
      %s327 = smul.addr %s326, 8
      %s328 = scalar_lea.vmem %s1, %s327
      %p329 = pneg %p88
      %p330 = pneg %p85
      %s331 = sadd.s32 %s22, 1
      %s332 = smul.u32 %s331, 4
      %p333 = scmp.lt.s32.totalorder %s332, 15
      %s334 = scalar_select %p333, %s332, 15
      %p335 = scmp.lt.s32.totalorder %s21, 1
      %s336 = scalar_select %p335, %s21, 1
      %p337 = scmp.lt.s32.totalorder %s334, 15
      %s338 = scalar_select %p337, %s334, 15
      %s339 = smul.addr %s338, 4
      %s340 = smul.addr %s336, 64
      %s341 = sadd.s32 %s339, %s340
      %s342 = smul.addr %s341, 8
      %s343 = scalar_lea.vmem %s2, %s342
      %p344 = pneg %p124
      %p345 = pneg %p121
      %p346 = pneg %p145
      %p347 = pneg %p142
      %p348 = pneg %p166
      %p349 = pneg %p163
      %p350 = pneg %p187
      %p351 = pneg %p184
      %p352 = pneg %p215
      %p353 = pneg %p212
      %s354 = smul.u32 8, %s22
      %p355 = scmp.lt.s32.totalorder %s21, 1
      %s356 = scalar_select %p355, %s21, 1
      %p357 = scmp.lt.s32.totalorder %s354, 31
      %s358 = scalar_select %p357, %s354, 31
      %s359 = smul.addr %s358, 4
      %s360 = smul.addr %s356, 128
      %s361 = sadd.s32 %s359, %s360
      %s362 = smul.addr %s361, 8
      %s363 = scalar_lea.vmem %s6, %s362
      %s364 = smul.u32 4, %s22
      %p365 = scmp.lt.s32.totalorder %s21, 1
      %s366 = scalar_select %p365, %s21, 1
      %p367 = scmp.lt.s32.totalorder %s364, 15
      %s368 = scalar_select %p367, %s364, 15
      %s369 = smul.addr %s368, 4
      %s370 = smul.addr %s366, 64
      %s371 = sadd.s32 %s369, %s370
      %s372 = smul.addr %s371, 8
      %s373 = scalar_lea.vmem %s0, %s372
      %s374 = smul.u32 4, %s22
      %s375 = smul.u32 %s22, 4
      %s376 = ssub.s32 %s375, 1
      %p377 = scmp.gt.s32.totalorder %s376, 0
      %s378 = scalar_select %p377, %s376, 0
      %p379 = scmp.lt.s32.totalorder %s21, 1
      %s380 = scalar_select %p379, %s21, 1
      %p381 = scmp.lt.s32.totalorder %s378, 15
      %s382 = scalar_select %p381, %s378, 15
      %s383 = smul.addr %s382, 4
      %s384 = smul.addr %s380, 64
      %s385 = sadd.s32 %s383, %s384
      %s386 = smul.addr %s385, 8
      %s387 = scalar_lea.vmem %s1, %s386
      %s388 = smul.u32 %s22, 4
      %s389 = ssub.s32 %s388, 1
      %p390 = scmp.gt.s32.totalorder %s389, 0
      %s391 = scalar_select %p390, %s389, 0
      %s392 = sadd.s32 %s22, 1
      %s393 = smul.u32 %s392, 4
      %p394 = scmp.lt.s32.totalorder %s393, 15
      %s395 = scalar_select %p394, %s393, 15
      %p396 = scmp.lt.s32.totalorder %s21, 1
      %s397 = scalar_select %p396, %s21, 1
      %p398 = scmp.lt.s32.totalorder %s395, 15
      %s399 = scalar_select %p398, %s395, 15
      %s400 = smul.addr %s399, 4
      %s401 = smul.addr %s397, 64
      %s402 = sadd.s32 %s400, %s401
      %s403 = smul.addr %s402, 8
      %s404 = scalar_lea.vmem %s2, %s403
      %s405 = sadd.s32 %s22, 1
      %s406 = smul.u32 %s405, 4
      %p407 = scmp.lt.s32.totalorder %s406, 15
      %s408 = scalar_select %p407, %s406, 15
      %s409 = smul.u32 8, %s22
      %p410 = scmp.lt.s32.totalorder %s21, 1
      %s411 = scalar_select %p410, %s21, 1
      %p412 = scmp.lt.s32.totalorder %s409, 31
      %s413 = scalar_select %p412, %s409, 31
      %s414 = smul.addr %s413, 4
      %s415 = smul.addr %s411, 128
      %s416 = sadd.s32 %s414, %s415
      %s417 = smul.addr %s416, 8
      %s418 = scalar_lea.vmem %s6, %s417
      %s419 = smul.u32 8, %s22
      %v420 = vld [vmem:[%s373] sm:$0xff]
      %v421 = vld [vmem:[%s373 + $0x8] sm:$0xff]
      %v422 = vld [vmem:[%s373 + $0x10] sm:$0xff]
      %v423 = vld [vmem:[%s373 + $0x18] sm:$0xff]
      %v424 = vld [vmem:[%s373 + $0x20] sm:$0xff]
      %v425 = vld [vmem:[%s373 + $0x28] sm:$0xff]
      %v426 = vld [vmem:[%s373 + $0x30] sm:$0xff]
      %v427 = vld [vmem:[%s373 + $0x38] sm:$0xff]
      %v428 = vld [vmem:[%s373 + $0x40] sm:$0xff]
      %v429 = vld [vmem:[%s373 + $0x48] sm:$0xff]
      %v430 = vld [vmem:[%s373 + $0x50] sm:$0xff]
      %v431 = vld [vmem:[%s373 + $0x58] sm:$0xff]
      %v432 = vld [vmem:[%s373 + $0x60] sm:$0xff]
      %v433 = vld [vmem:[%s373 + $0x68] sm:$0xff]
      %v434 = vld [vmem:[%s373 + $0x70] sm:$0xff]
      %v435 = vld [vmem:[%s373 + $0x78] sm:$0xff]
      %v436 = vld [vmem:[%s387] sm:$0xff]
      %v437 = vld [vmem:[%s387 + $0x8] sm:$0xff]
      %v438 = vld [vmem:[%s387 + $0x10] sm:$0xff]
      %v439 = vld [vmem:[%s387 + $0x18] sm:$0xff]
      %v440 = vld [vmem:[%s404] sm:$0xff]
      %v441 = vld [vmem:[%s404 + $0x8] sm:$0xff]
      %v442 = vld [vmem:[%s404 + $0x10] sm:$0xff]
      %v443 = vld [vmem:[%s404 + $0x18] sm:$0xff]
      %p444 = scmp.ne.s32.totalorder %s22, 0
      %s445 = scalar_select %p444, 1, 0
      %s446 = scvt.s32.f32 %s445
      %v447 = vstv %s446
      %v448 = vmul.f32 %v436, %v447
      %v449 = vmul.f32 %v437, %v447
      %v450 = vmul.f32 %v438, %v447
      %v451 = vmul.f32 %v439, %v447
      %p452 = scmp.ne.s32.totalorder %s22, 3
      %s453 = scalar_select %p452, 1, 0
      %s454 = scvt.s32.f32 %s453
      %v455 = vstv %s454
      %v456 = vmul.f32 %v440, %v455
      %v457 = vmul.f32 %v441, %v455
      %v458 = vmul.f32 %v442, %v455
      %v459 = vmul.f32 %v443, %v455
      %vm484 = vcmask 1040384
      %v485 = vrot.slane %v448, 7
      %v486 = vrot.slane %v449, 7
      %v487 = vsel %vm484, %v485, %v486
      %v488 = vrot.slane %v450, 7
      %v489 = vsel %vm484, %v486, %v488
      %v490 = vrot.slane %v451, 7
      %v491 = vsel %vm484, %v488, %v490
      %v492 = vrot.slane %v420, 7
      %v493 = vrot.slane %v421, 7
      %v494 = vsel %vm484, %v492, %v493
      %v495 = vrot.slane %v422, 7
      %v496 = vsel %vm484, %v493, %v495
      %v497 = vrot.slane %v423, 7
      %v498 = vsel %vm484, %v495, %v497
      %v499 = vrot.slane %v424, 7
      %v500 = vrot.slane %v425, 7
      %v501 = vsel %vm484, %v499, %v500
      %v502 = vrot.slane %v426, 7
      %v503 = vsel %vm484, %v500, %v502
      %v504 = vrot.slane %v427, 7
      %v505 = vsel %vm484, %v502, %v504
      %v506 = vrot.slane %v428, 7
      %v507 = vrot.slane %v429, 7
      %v508 = vsel %vm484, %v506, %v507
      %v509 = vrot.slane %v430, 7
      %v510 = vsel %vm484, %v507, %v509
      %v511 = vrot.slane %v431, 7
      %v512 = vsel %vm484, %v509, %v511
      %v513 = vrot.slane %v432, 7
      %v514 = vrot.slane %v433, 7
      %v515 = vsel %vm484, %v513, %v514
      %v516 = vrot.slane %v434, 7
      %v517 = vsel %vm484, %v514, %v516
      %v518 = vrot.slane %v435, 7
      %v519 = vsel %vm484, %v516, %v518
      %v520 = vrot.slane %v456, 7
      %v521 = vrot.slane %v457, 7
      %v522 = vsel %vm484, %v520, %v521
      %v523 = vrot.slane %v458, 7
      %v524 = vsel %vm484, %v521, %v523
      %v525 = vrot.slane %v459, 7
      %v526 = vsel %vm484, %v523, %v525
      %v554 = vsel %vm484, 0.0, %v485
      %v555 = vsel %vm484, 0.0, %v492
      %v556 = vsel %vm484, 0.0, %v499
      %v557 = vsel %vm484, 0.0, %v506
      %v558 = vsel %vm484, 0.0, %v513
      %v559 = vsel %vm484, 0.0, %v520
      %v560 = vsel %vm484, %v490, 0.0
      %v561 = vsel %vm484, %v497, 0.0
      %v562 = vsel %vm484, %v504, 0.0
      %v563 = vsel %vm484, %v511, 0.0
      %v564 = vsel %vm484, %v518, 0.0
      %v565 = vsel %vm484, %v525, 0.0
      %574 = vrot.lane.b32.xlu0 %v555, 4
      %v575 = vpop.permute.xlu0 %574
      %576 = vrot.lane.b32.xlu0 %v494, 4
      %v577 = vpop.permute.xlu0 %576
      %578 = vrot.lane.b32.xlu0 %v496, 4
      %v579 = vpop.permute.xlu0 %578
      %580 = vrot.lane.b32.xlu0 %v498, 4
      %v581 = vpop.permute.xlu0 %580
      %582 = vrot.lane.b32.xlu0 %v561, 4
      %v583 = vpop.permute.xlu0 %582
      %584 = vrot.lane.b32.xlu0 %v556, 4
      %v585 = vpop.permute.xlu0 %584
      %586 = vrot.lane.b32.xlu0 %v501, 4
      %v587 = vpop.permute.xlu0 %586
      %588 = vrot.lane.b32.xlu0 %v503, 4
      %v589 = vpop.permute.xlu0 %588
      %590 = vrot.lane.b32.xlu0 %v505, 4
      %v591 = vpop.permute.xlu0 %590
      %592 = vrot.lane.b32.xlu0 %v562, 4
      %v593 = vpop.permute.xlu0 %592
      %594 = vrot.lane.b32.xlu0 %v557, 4
      %v595 = vpop.permute.xlu0 %594
      %596 = vrot.lane.b32.xlu0 %v508, 4
      %v597 = vpop.permute.xlu0 %596
      %598 = vrot.lane.b32.xlu0 %v510, 4
      %v599 = vpop.permute.xlu0 %598
      %600 = vrot.lane.b32.xlu0 %v512, 4
      %v601 = vpop.permute.xlu0 %600
      %602 = vrot.lane.b32.xlu0 %v563, 4
      %v603 = vpop.permute.xlu0 %602
      %604 = vrot.lane.b32.xlu0 %v558, 4
      %v605 = vpop.permute.xlu0 %604
      %606 = vrot.lane.b32.xlu0 %v515, 4
      %v607 = vpop.permute.xlu0 %606
      %608 = vrot.lane.b32.xlu0 %v517, 4
      %v609 = vpop.permute.xlu0 %608
      %610 = vrot.lane.b32.xlu0 %v519, 4
      %v611 = vpop.permute.xlu0 %610
      %612 = vrot.lane.b32.xlu0 %v564, 4
      %v613 = vpop.permute.xlu0 %612
      %636 = vrot.lane.b32.xlu0 %v555, 8
      %v637 = vpop.permute.xlu0 %636
      %638 = vrot.lane.b32.xlu0 %v494, 8
      %v639 = vpop.permute.xlu0 %638
      %640 = vrot.lane.b32.xlu0 %v496, 8
      %v641 = vpop.permute.xlu0 %640
      %642 = vrot.lane.b32.xlu0 %v498, 8
      %v643 = vpop.permute.xlu0 %642
      %644 = vrot.lane.b32.xlu0 %v561, 8
      %v645 = vpop.permute.xlu0 %644
      %646 = vrot.lane.b32.xlu0 %v556, 8
      %v647 = vpop.permute.xlu0 %646
      %648 = vrot.lane.b32.xlu0 %v501, 8
      %v649 = vpop.permute.xlu0 %648
      %650 = vrot.lane.b32.xlu0 %v503, 8
      %v651 = vpop.permute.xlu0 %650
      %652 = vrot.lane.b32.xlu0 %v505, 8
      %v653 = vpop.permute.xlu0 %652
      %654 = vrot.lane.b32.xlu0 %v562, 8
      %v655 = vpop.permute.xlu0 %654
      %656 = vrot.lane.b32.xlu0 %v557, 8
      %v657 = vpop.permute.xlu0 %656
      %658 = vrot.lane.b32.xlu0 %v508, 8
      %v659 = vpop.permute.xlu0 %658
      %660 = vrot.lane.b32.xlu0 %v510, 8
      %v661 = vpop.permute.xlu0 %660
      %662 = vrot.lane.b32.xlu0 %v512, 8
      %v663 = vpop.permute.xlu0 %662
      %664 = vrot.lane.b32.xlu0 %v563, 8
      %v665 = vpop.permute.xlu0 %664
      %666 = vrot.lane.b32.xlu0 %v558, 8
      %v667 = vpop.permute.xlu0 %666
      %668 = vrot.lane.b32.xlu0 %v515, 8
      %v669 = vpop.permute.xlu0 %668
      %670 = vrot.lane.b32.xlu0 %v517, 8
      %v671 = vpop.permute.xlu0 %670
      %672 = vrot.lane.b32.xlu0 %v519, 8
      %v673 = vpop.permute.xlu0 %672
      %674 = vrot.lane.b32.xlu0 %v564, 8
      %v675 = vpop.permute.xlu0 %674
      %676 = vrot.lane.b32.xlu0 %v559, 8
      %v677 = vpop.permute.xlu0 %676
      %678 = vrot.lane.b32.xlu0 %v522, 8
      %v679 = vpop.permute.xlu0 %678
      %680 = vrot.lane.b32.xlu0 %v524, 8
      %v681 = vpop.permute.xlu0 %680
      %682 = vrot.lane.b32.xlu0 %v526, 8
      %v683 = vpop.permute.xlu0 %682
      %684 = vrot.lane.b32.xlu0 %v565, 8
      %v685 = vpop.permute.xlu0 %684
      %vm711 = vcmask 31744
      %v712 = vsel %vm711, %v554, %v575
      %v713 = vsel %vm711, %v487, %v577
      %v714 = vsel %vm711, %v489, %v579
      %v715 = vsel %vm711, %v491, %v581
      %v716 = vsel %vm711, %v560, %v583
      %v717 = vsel %vm711, %v555, %v575
      %v718 = vsel %vm711, %v494, %v577
      %v719 = vsel %vm711, %v496, %v579
      %v720 = vsel %vm711, %v498, %v581
      %v721 = vsel %vm711, %v561, %v583
      %v722 = vsel %vm711, %v555, %v585
      %v723 = vsel %vm711, %v494, %v587
      %v724 = vsel %vm711, %v496, %v589
      %v725 = vsel %vm711, %v498, %v591
      %v726 = vsel %vm711, %v561, %v593
      %v727 = vsel %vm711, %v556, %v585
      %v728 = vsel %vm711, %v501, %v587
      %v729 = vsel %vm711, %v503, %v589
      %v730 = vsel %vm711, %v505, %v591
      %v731 = vsel %vm711, %v562, %v593
      %v732 = vsel %vm711, %v556, %v595
      %v733 = vsel %vm711, %v501, %v597
      %v734 = vsel %vm711, %v503, %v599
      %v735 = vsel %vm711, %v505, %v601
      %v736 = vsel %vm711, %v562, %v603
      %v737 = vsel %vm711, %v557, %v595
      %v738 = vsel %vm711, %v508, %v597
      %v739 = vsel %vm711, %v510, %v599
      %v740 = vsel %vm711, %v512, %v601
      %v741 = vsel %vm711, %v563, %v603
      %v742 = vsel %vm711, %v557, %v605
      %v743 = vsel %vm711, %v508, %v607
      %v744 = vsel %vm711, %v510, %v609
      %v745 = vsel %vm711, %v512, %v611
      %v746 = vsel %vm711, %v563, %v613
      %v747 = vsel %vm711, %v558, %v605
      %v748 = vsel %vm711, %v515, %v607
      %v749 = vsel %vm711, %v517, %v609
      %v750 = vsel %vm711, %v519, %v611
      %v751 = vsel %vm711, %v564, %v613
      %vm752 = vcmask 64512
      %v753 = vsel %vm752, %v712, %v637
      %v754 = vsel %vm752, %v713, %v639
      %v755 = vsel %vm752, %v714, %v641
      %v756 = vsel %vm752, %v715, %v643
      %v757 = vsel %vm752, %v716, %v645
      %v758 = vsel %vm752, %v717, %v647
      %v759 = vsel %vm752, %v718, %v649
      %v760 = vsel %vm752, %v719, %v651
      %v761 = vsel %vm752, %v720, %v653
      %v762 = vsel %vm752, %v721, %v655
      %v763 = vsel %vm752, %v722, %v647
      %v764 = vsel %vm752, %v723, %v649
      %v765 = vsel %vm752, %v724, %v651
      %v766 = vsel %vm752, %v725, %v653
      %v767 = vsel %vm752, %v726, %v655
      %v768 = vsel %vm752, %v727, %v657
      %v769 = vsel %vm752, %v728, %v659
      %v770 = vsel %vm752, %v729, %v661
      %v771 = vsel %vm752, %v730, %v663
      %v772 = vsel %vm752, %v731, %v665
      %v773 = vsel %vm752, %v732, %v657
      %v774 = vsel %vm752, %v733, %v659
      %v775 = vsel %vm752, %v734, %v661
      %v776 = vsel %vm752, %v735, %v663
      %v777 = vsel %vm752, %v736, %v665
      %v778 = vsel %vm752, %v737, %v667
      %v779 = vsel %vm752, %v738, %v669
      %v780 = vsel %vm752, %v739, %v671
      %v781 = vsel %vm752, %v740, %v673
      %v782 = vsel %vm752, %v741, %v675
      %v783 = vsel %vm752, %v742, %v667
      %v784 = vsel %vm752, %v743, %v669
      %v785 = vsel %vm752, %v744, %v671
      %v786 = vsel %vm752, %v745, %v673
      %v787 = vsel %vm752, %v746, %v675
      %v788 = vsel %vm752, %v747, %v677
      %v789 = vsel %vm752, %v748, %v679
      %v790 = vsel %vm752, %v749, %v681
      %v791 = vsel %vm752, %v750, %v683
      %v792 = vsel %vm752, %v751, %v685
      %vm833 = vcmask 1046528
      %v834 = vrot.slane %v753, 1
      %v835 = vrot.slane %v754, 1
      %v836 = vsel %vm833, %v834, %v835
      %v837 = vrot.slane %v755, 1
      %v838 = vsel %vm833, %v835, %v837
      %v839 = vrot.slane %v756, 1
      %v840 = vsel %vm833, %v837, %v839
      %v841 = vrot.slane %v757, 1
      %v842 = vsel %vm833, %v839, %v841
      %v843 = vrot.slane %v758, 1
      %v844 = vrot.slane %v759, 1
      %v845 = vsel %vm833, %v843, %v844
      %v846 = vrot.slane %v760, 1
      %v847 = vsel %vm833, %v844, %v846
      %v848 = vrot.slane %v761, 1
      %v849 = vsel %vm833, %v846, %v848
      %v850 = vrot.slane %v762, 1
      %v851 = vsel %vm833, %v848, %v850
      %v852 = vrot.slane %v763, 1
      %v853 = vrot.slane %v764, 1
      %v854 = vsel %vm833, %v852, %v853
      %v855 = vrot.slane %v765, 1
      %v856 = vsel %vm833, %v853, %v855
      %v857 = vrot.slane %v766, 1
      %v858 = vsel %vm833, %v855, %v857
      %v859 = vrot.slane %v767, 1
      %v860 = vsel %vm833, %v857, %v859
      %v861 = vrot.slane %v768, 1
      %v862 = vrot.slane %v769, 1
      %v863 = vsel %vm833, %v861, %v862
      %v864 = vrot.slane %v770, 1
      %v865 = vsel %vm833, %v862, %v864
      %v866 = vrot.slane %v771, 1
      %v867 = vsel %vm833, %v864, %v866
      %v868 = vrot.slane %v772, 1
      %v869 = vsel %vm833, %v866, %v868
      %v870 = vrot.slane %v773, 1
      %v871 = vrot.slane %v774, 1
      %v872 = vsel %vm833, %v870, %v871
      %v873 = vrot.slane %v775, 1
      %v874 = vsel %vm833, %v871, %v873
      %v875 = vrot.slane %v776, 1
      %v876 = vsel %vm833, %v873, %v875
      %v877 = vrot.slane %v777, 1
      %v878 = vsel %vm833, %v875, %v877
      %v879 = vrot.slane %v778, 1
      %v880 = vrot.slane %v779, 1
      %v881 = vsel %vm833, %v879, %v880
      %v882 = vrot.slane %v780, 1
      %v883 = vsel %vm833, %v880, %v882
      %v884 = vrot.slane %v781, 1
      %v885 = vsel %vm833, %v882, %v884
      %v886 = vrot.slane %v782, 1
      %v887 = vsel %vm833, %v884, %v886
      %v888 = vrot.slane %v783, 1
      %v889 = vrot.slane %v784, 1
      %v890 = vsel %vm833, %v888, %v889
      %v891 = vrot.slane %v785, 1
      %v892 = vsel %vm833, %v889, %v891
      %v893 = vrot.slane %v786, 1
      %v894 = vsel %vm833, %v891, %v893
      %v895 = vrot.slane %v787, 1
      %v896 = vsel %vm833, %v893, %v895
      %v897 = vrot.slane %v788, 1
      %v898 = vrot.slane %v789, 1
      %v899 = vsel %vm833, %v897, %v898
      %v900 = vrot.slane %v790, 1
      %v901 = vsel %vm833, %v898, %v900
      %v902 = vrot.slane %v791, 1
      %v903 = vsel %vm833, %v900, %v902
      %v904 = vrot.slane %v792, 1
      %v905 = vsel %vm833, %v902, %v904
      %906 = vrot.lane.b32.xlu0 %v836, 12
      %v907 = vpop.permute.xlu0 %906
      %908 = vrot.lane.b32.xlu0 %v838, 12
      %v909 = vpop.permute.xlu0 %908
      %910 = vrot.lane.b32.xlu0 %v840, 12
      %v911 = vpop.permute.xlu0 %910
      %912 = vrot.lane.b32.xlu0 %v842, 12
      %v913 = vpop.permute.xlu0 %912
      %914 = vrot.lane.b32.xlu0 %v845, 12
      %v915 = vpop.permute.xlu0 %914
      %916 = vrot.lane.b32.xlu0 %v847, 12
      %v917 = vpop.permute.xlu0 %916
      %918 = vrot.lane.b32.xlu0 %v849, 12
      %v919 = vpop.permute.xlu0 %918
      %920 = vrot.lane.b32.xlu0 %v851, 12
      %v921 = vpop.permute.xlu0 %920
      %922 = vrot.lane.b32.xlu0 %v854, 12
      %v923 = vpop.permute.xlu0 %922
      %924 = vrot.lane.b32.xlu0 %v856, 12
      %v925 = vpop.permute.xlu0 %924
      %926 = vrot.lane.b32.xlu0 %v858, 12
      %v927 = vpop.permute.xlu0 %926
      %928 = vrot.lane.b32.xlu0 %v860, 12
      %v929 = vpop.permute.xlu0 %928
      %930 = vrot.lane.b32.xlu0 %v863, 12
      %v931 = vpop.permute.xlu0 %930
      %932 = vrot.lane.b32.xlu0 %v865, 12
      %v933 = vpop.permute.xlu0 %932
      %934 = vrot.lane.b32.xlu0 %v867, 12
      %v935 = vpop.permute.xlu0 %934
      %936 = vrot.lane.b32.xlu0 %v869, 12
      %v937 = vpop.permute.xlu0 %936
      %938 = vrot.lane.b32.xlu0 %v872, 12
      %v939 = vpop.permute.xlu0 %938
      %940 = vrot.lane.b32.xlu0 %v874, 12
      %v941 = vpop.permute.xlu0 %940
      %942 = vrot.lane.b32.xlu0 %v876, 12
      %v943 = vpop.permute.xlu0 %942
      %944 = vrot.lane.b32.xlu0 %v878, 12
      %v945 = vpop.permute.xlu0 %944
      %946 = vrot.lane.b32.xlu0 %v881, 12
      %v947 = vpop.permute.xlu0 %946
      %948 = vrot.lane.b32.xlu0 %v883, 12
      %v949 = vpop.permute.xlu0 %948
      %950 = vrot.lane.b32.xlu0 %v885, 12
      %v951 = vpop.permute.xlu0 %950
      %952 = vrot.lane.b32.xlu0 %v887, 12
      %v953 = vpop.permute.xlu0 %952
      %954 = vrot.lane.b32.xlu0 %v890, 12
      %v955 = vpop.permute.xlu0 %954
      %956 = vrot.lane.b32.xlu0 %v892, 12
      %v957 = vpop.permute.xlu0 %956
      %958 = vrot.lane.b32.xlu0 %v894, 12
      %v959 = vpop.permute.xlu0 %958
      %960 = vrot.lane.b32.xlu0 %v896, 12
      %v961 = vpop.permute.xlu0 %960
      %962 = vrot.lane.b32.xlu0 %v899, 12
      %v963 = vpop.permute.xlu0 %962
      %964 = vrot.lane.b32.xlu0 %v901, 12
      %v965 = vpop.permute.xlu0 %964
      %966 = vrot.lane.b32.xlu0 %v903, 12
      %v967 = vpop.permute.xlu0 %966
      %968 = vrot.lane.b32.xlu0 %v905, 12
      %v969 = vpop.permute.xlu0 %968
      %vm1002 = vcmask 1045504
      %v1003 = vrot.slane %v753, 2
      %v1004 = vrot.slane %v754, 2
      %v1005 = vsel %vm1002, %v1003, %v1004
      %v1006 = vrot.slane %v755, 2
      %v1007 = vsel %vm1002, %v1004, %v1006
      %v1008 = vrot.slane %v756, 2
      %v1009 = vsel %vm1002, %v1006, %v1008
      %v1010 = vrot.slane %v757, 2
      %v1011 = vsel %vm1002, %v1008, %v1010
      %v1012 = vrot.slane %v758, 2
      %v1013 = vrot.slane %v759, 2
      %v1014 = vsel %vm1002, %v1012, %v1013
      %v1015 = vrot.slane %v760, 2
      %v1016 = vsel %vm1002, %v1013, %v1015
      %v1017 = vrot.slane %v761, 2
      %v1018 = vsel %vm1002, %v1015, %v1017
      %v1019 = vrot.slane %v762, 2
      %v1020 = vsel %vm1002, %v1017, %v1019
      %v1021 = vrot.slane %v763, 2
      %v1022 = vrot.slane %v764, 2
      %v1023 = vsel %vm1002, %v1021, %v1022
      %v1024 = vrot.slane %v765, 2
      %v1025 = vsel %vm1002, %v1022, %v1024
      %v1026 = vrot.slane %v766, 2
      %v1027 = vsel %vm1002, %v1024, %v1026
      %v1028 = vrot.slane %v767, 2
      %v1029 = vsel %vm1002, %v1026, %v1028
      %v1030 = vrot.slane %v768, 2
      %v1031 = vrot.slane %v769, 2
      %v1032 = vsel %vm1002, %v1030, %v1031
      %v1033 = vrot.slane %v770, 2
      %v1034 = vsel %vm1002, %v1031, %v1033
      %v1035 = vrot.slane %v771, 2
      %v1036 = vsel %vm1002, %v1033, %v1035
      %v1037 = vrot.slane %v772, 2
      %v1038 = vsel %vm1002, %v1035, %v1037
      %v1039 = vrot.slane %v773, 2
      %v1040 = vrot.slane %v774, 2
      %v1041 = vsel %vm1002, %v1039, %v1040
      %v1042 = vrot.slane %v775, 2
      %v1043 = vsel %vm1002, %v1040, %v1042
      %v1044 = vrot.slane %v776, 2
      %v1045 = vsel %vm1002, %v1042, %v1044
      %v1046 = vrot.slane %v777, 2
      %v1047 = vsel %vm1002, %v1044, %v1046
      %v1048 = vrot.slane %v778, 2
      %v1049 = vrot.slane %v779, 2
      %v1050 = vsel %vm1002, %v1048, %v1049
      %v1051 = vrot.slane %v780, 2
      %v1052 = vsel %vm1002, %v1049, %v1051
      %v1053 = vrot.slane %v781, 2
      %v1054 = vsel %vm1002, %v1051, %v1053
      %v1055 = vrot.slane %v782, 2
      %v1056 = vsel %vm1002, %v1053, %v1055
      %v1057 = vrot.slane %v783, 2
      %v1058 = vrot.slane %v784, 2
      %v1059 = vsel %vm1002, %v1057, %v1058
      %v1060 = vrot.slane %v785, 2
      %v1061 = vsel %vm1002, %v1058, %v1060
      %v1062 = vrot.slane %v786, 2
      %v1063 = vsel %vm1002, %v1060, %v1062
      %v1064 = vrot.slane %v787, 2
      %v1065 = vsel %vm1002, %v1062, %v1064
      %v1066 = vrot.slane %v788, 2
      %v1067 = vrot.slane %v789, 2
      %v1068 = vsel %vm1002, %v1066, %v1067
      %v1069 = vrot.slane %v790, 2
      %v1070 = vsel %vm1002, %v1067, %v1069
      %v1071 = vrot.slane %v791, 2
      %v1072 = vsel %vm1002, %v1069, %v1071
      %v1073 = vrot.slane %v792, 2
      %v1074 = vsel %vm1002, %v1071, %v1073
      %1075 = vrot.lane.b32.xlu0 %v1005, 24
      %v1076 = vpop.permute.xlu0 %1075
      %1077 = vrot.lane.b32.xlu0 %v1007, 24
      %v1078 = vpop.permute.xlu0 %1077
      %1079 = vrot.lane.b32.xlu0 %v1009, 24
      %v1080 = vpop.permute.xlu0 %1079
      %1081 = vrot.lane.b32.xlu0 %v1011, 24
      %v1082 = vpop.permute.xlu0 %1081
      %1083 = vrot.lane.b32.xlu0 %v1014, 24
      %v1084 = vpop.permute.xlu0 %1083
      %1085 = vrot.lane.b32.xlu0 %v1016, 24
      %v1086 = vpop.permute.xlu0 %1085
      %1087 = vrot.lane.b32.xlu0 %v1018, 24
      %v1088 = vpop.permute.xlu0 %1087
      %1089 = vrot.lane.b32.xlu0 %v1020, 24
      %v1090 = vpop.permute.xlu0 %1089
      %1091 = vrot.lane.b32.xlu0 %v1023, 24
      %v1092 = vpop.permute.xlu0 %1091
      %1093 = vrot.lane.b32.xlu0 %v1025, 24
      %v1094 = vpop.permute.xlu0 %1093
      %1095 = vrot.lane.b32.xlu0 %v1027, 24
      %v1096 = vpop.permute.xlu0 %1095
      %1097 = vrot.lane.b32.xlu0 %v1029, 24
      %v1098 = vpop.permute.xlu0 %1097
      %1099 = vrot.lane.b32.xlu0 %v1032, 24
      %v1100 = vpop.permute.xlu0 %1099
      %1101 = vrot.lane.b32.xlu0 %v1034, 24
      %v1102 = vpop.permute.xlu0 %1101
      %1103 = vrot.lane.b32.xlu0 %v1036, 24
      %v1104 = vpop.permute.xlu0 %1103
      %1105 = vrot.lane.b32.xlu0 %v1038, 24
      %v1106 = vpop.permute.xlu0 %1105
      %1107 = vrot.lane.b32.xlu0 %v1041, 24
      %v1108 = vpop.permute.xlu0 %1107
      %1109 = vrot.lane.b32.xlu0 %v1043, 24
      %v1110 = vpop.permute.xlu0 %1109
      %1111 = vrot.lane.b32.xlu0 %v1045, 24
      %v1112 = vpop.permute.xlu0 %1111
      %1113 = vrot.lane.b32.xlu0 %v1047, 24
      %v1114 = vpop.permute.xlu0 %1113
      %1115 = vrot.lane.b32.xlu0 %v1050, 24
      %v1116 = vpop.permute.xlu0 %1115
      %1117 = vrot.lane.b32.xlu0 %v1052, 24
      %v1118 = vpop.permute.xlu0 %1117
      %1119 = vrot.lane.b32.xlu0 %v1054, 24
      %v1120 = vpop.permute.xlu0 %1119
      %1121 = vrot.lane.b32.xlu0 %v1056, 24
      %v1122 = vpop.permute.xlu0 %1121
      %1123 = vrot.lane.b32.xlu0 %v1059, 24
      %v1124 = vpop.permute.xlu0 %1123
      %1125 = vrot.lane.b32.xlu0 %v1061, 24
      %v1126 = vpop.permute.xlu0 %1125
      %1127 = vrot.lane.b32.xlu0 %v1063, 24
      %v1128 = vpop.permute.xlu0 %1127
      %1129 = vrot.lane.b32.xlu0 %v1065, 24
      %v1130 = vpop.permute.xlu0 %1129
      %1131 = vrot.lane.b32.xlu0 %v1068, 24
      %v1132 = vpop.permute.xlu0 %1131
      %1133 = vrot.lane.b32.xlu0 %v1070, 24
      %v1134 = vpop.permute.xlu0 %1133
      %1135 = vrot.lane.b32.xlu0 %v1072, 24
      %v1136 = vpop.permute.xlu0 %1135
      %1137 = vrot.lane.b32.xlu0 %v1074, 24
      %v1138 = vpop.permute.xlu0 %1137
      %vm1171 = vcmask 97280
      %v1172 = vsel %vm1171, %v753, %v907
      %v1173 = vsel %vm1171, %v754, %v909
      %v1174 = vsel %vm1171, %v755, %v911
      %v1175 = vsel %vm1171, %v756, %v913
      %v1176 = vsel %vm1171, %v758, %v915
      %v1177 = vsel %vm1171, %v759, %v917
      %v1178 = vsel %vm1171, %v760, %v919
      %v1179 = vsel %vm1171, %v761, %v921
      %v1180 = vsel %vm1171, %v763, %v923
      %v1181 = vsel %vm1171, %v764, %v925
      %v1182 = vsel %vm1171, %v765, %v927
      %v1183 = vsel %vm1171, %v766, %v929
      %v1184 = vsel %vm1171, %v768, %v931
      %v1185 = vsel %vm1171, %v769, %v933
      %v1186 = vsel %vm1171, %v770, %v935
      %v1187 = vsel %vm1171, %v771, %v937
      %v1188 = vsel %vm1171, %v773, %v939
      %v1189 = vsel %vm1171, %v774, %v941
      %v1190 = vsel %vm1171, %v775, %v943
      %v1191 = vsel %vm1171, %v776, %v945
      %v1192 = vsel %vm1171, %v778, %v947
      %v1193 = vsel %vm1171, %v779, %v949
      %v1194 = vsel %vm1171, %v780, %v951
      %v1195 = vsel %vm1171, %v781, %v953
      %v1196 = vsel %vm1171, %v783, %v955
      %v1197 = vsel %vm1171, %v784, %v957
      %v1198 = vsel %vm1171, %v785, %v959
      %v1199 = vsel %vm1171, %v786, %v961
      %v1200 = vsel %vm1171, %v788, %v963
      %v1201 = vsel %vm1171, %v789, %v965
      %v1202 = vsel %vm1171, %v790, %v967
      %v1203 = vsel %vm1171, %v791, %v969
      %vm1204 = vcmask 195584
      %v1205 = vsel %vm1204, %v1172, %v1076
      %v1206 = vsel %vm1204, %v1173, %v1078
      %v1207 = vsel %vm1204, %v1174, %v1080
      %v1208 = vsel %vm1204, %v1175, %v1082
      %v1209 = vsel %vm1204, %v1176, %v1084
      %v1210 = vsel %vm1204, %v1177, %v1086
      %v1211 = vsel %vm1204, %v1178, %v1088
      %v1212 = vsel %vm1204, %v1179, %v1090
      %v1213 = vsel %vm1204, %v1180, %v1092
      %v1214 = vsel %vm1204, %v1181, %v1094
      %v1215 = vsel %vm1204, %v1182, %v1096
      %v1216 = vsel %vm1204, %v1183, %v1098
      %v1217 = vsel %vm1204, %v1184, %v1100
      %v1218 = vsel %vm1204, %v1185, %v1102
      %v1219 = vsel %vm1204, %v1186, %v1104
      %v1220 = vsel %vm1204, %v1187, %v1106
      %v1221 = vsel %vm1204, %v1188, %v1108
      %v1222 = vsel %vm1204, %v1189, %v1110
      %v1223 = vsel %vm1204, %v1190, %v1112
      %v1224 = vsel %vm1204, %v1191, %v1114
      %v1225 = vsel %vm1204, %v1192, %v1116
      %v1226 = vsel %vm1204, %v1193, %v1118
      %v1227 = vsel %vm1204, %v1194, %v1120
      %v1228 = vsel %vm1204, %v1195, %v1122
      %v1229 = vsel %vm1204, %v1196, %v1124
      %v1230 = vsel %vm1204, %v1197, %v1126
      %v1231 = vsel %vm1204, %v1198, %v1128
      %v1232 = vsel %vm1204, %v1199, %v1130
      %v1233 = vsel %vm1204, %v1200, %v1132
      %v1234 = vsel %vm1204, %v1201, %v1134
      %v1235 = vsel %vm1204, %v1202, %v1136
      %v1236 = vsel %vm1204, %v1203, %v1138
      %v1237 = vld [vmem:[%s3] sm:$0xff]
      %v1238 = vld [vmem:[%s3 + $0x8] sm:$0xff]
      %v1239 = vld [vmem:[%s3 + $0x10] sm:$0xff]
      %v1240 = vld [vmem:[%s3 + $0x18] sm:$0xff]
      %v1241 = vld [vmem:[%s3 + $0x20] sm:$0xf]
      %vm1242 = vcmask 293888
      %v1244 = vsel %vm1242, %v1205, 0
      %v1247 = vsel %vm1242, %v1206, 0
      %v1250 = vsel %vm1242, %v1207, 0
      %v1253 = vsel %vm1242, %v1208, 0
      %v1256 = vsel %vm1242, %v1209, 0
      %v1259 = vsel %vm1242, %v1210, 0
      %v1262 = vsel %vm1242, %v1211, 0
      %v1265 = vsel %vm1242, %v1212, 0
      %v1268 = vsel %vm1242, %v1213, 0
      %v1271 = vsel %vm1242, %v1214, 0
      %v1274 = vsel %vm1242, %v1215, 0
      %v1277 = vsel %vm1242, %v1216, 0
      %v1280 = vsel %vm1242, %v1217, 0
      %v1283 = vsel %vm1242, %v1218, 0
      %v1286 = vsel %vm1242, %v1219, 0
      %v1289 = vsel %vm1242, %v1220, 0
      %v1292 = vsel %vm1242, %v1221, 0
      %v1295 = vsel %vm1242, %v1222, 0
      %v1298 = vsel %vm1242, %v1223, 0
      %v1301 = vsel %vm1242, %v1224, 0
      %v1304 = vsel %vm1242, %v1225, 0
      %v1307 = vsel %vm1242, %v1226, 0
      %v1310 = vsel %vm1242, %v1227, 0
      %v1313 = vsel %vm1242, %v1228, 0
      %v1316 = vsel %vm1242, %v1229, 0
      %v1319 = vsel %vm1242, %v1230, 0
      %v1322 = vsel %vm1242, %v1231, 0
      %v1325 = vsel %vm1242, %v1232, 0
      %v1328 = vsel %vm1242, %v1233, 0
      %v1331 = vsel %vm1242, %v1234, 0
      %v1334 = vsel %vm1242, %v1235, 0
      %v1337 = vsel %vm1242, %v1236, 0
      %vm1339 = vcmask 1043456
      %v1341 = vsel %vm1339, %v1241, 0
      %1343 = vmatprep.subr.mxu0 0.0
      %1344 = vmatpush1.msra.mxu0 %v1237
      %1345 = vmatprep.subr.mxu0 0.0
      %1346 = vmatpush1.msra.mxu0 %v1238
      %1347 = vmatprep.subr.mxu0 0.0
      %1348 = vmatpush1.msra.mxu0 %v1239
      %1349 = vmatprep.subr.mxu0 0.0
      %1350 = vmatpush1.msra.mxu0 %v1240
      %1351 = vmatprep.subr.mxu0 0.0
      %1352 = vmatpush1.msra.mxu0 %v1341
      %1353 = vmatprep.subr.mxu0 0.0
      %1354 = vmatpush1.msra.mxu0 0.0
      %1355 = vmatprep.subr.mxu0 0.0
      %1356 = vmatpush1.msra.mxu0 0.0
      %1357 = vmatprep.subr.mxu0 0.0
      %1358 = vmatpush1.msra.mxu0 0.0
      %1359 = vmatprep.subr.mxu0 0.0
      %1360 = vmatpush1.msra.mxu0 0.0
      %1361 = vmatprep.subr.mxu0 0.0
      %1362 = vmatpush1.msra.mxu0 0.0
      %1363 = vmatprep.subr.mxu0 0.0
      %1364 = vmatpush1.msra.mxu0 0.0
      %1365 = vmatprep.subr.mxu0 0.0
      %1366 = vmatpush1.msra.mxu0 0.0
      %1367 = vmatprep.subr.mxu0 0.0
      %1368 = vmatpush1.msra.mxu0 0.0
      %1369 = vmatprep.subr.mxu0 0.0
      %1370 = vmatpush1.msra.mxu0 0.0
      %1371 = vmatprep.subr.mxu0 0.0
      %1372 = vmatpush1.msra.mxu0 0.0
      %1373 = vmatprep.subr.mxu0 0.0
      %1374 = vmatpush1.msra.mxu0 0.0
      %1375 = vmatprep.subr.mxu0 0.0
      %1376 = vmatpush1.msra.mxu0 0.0
      %1377 = vmatprep.subr.mxu0 0.0
      %1378 = vmatpush1.msra.mxu0 0.0
      %1379 = vmatprep.subr.mxu0 0.0
      %1380 = vmatpush1.msra.mxu0 0.0
      %1381 = vmatprep.subr.mxu0 0.0
      %1382 = vmatpush1.msra.mxu0 0.0
      %1383 = vmatprep.subr.mxu0 0.0
      %1384 = vmatpush1.msra.mxu0 0.0
      %1385 = vmatprep.subr.mxu0 0.0
      %1386 = vmatpush1.msra.mxu0 0.0
      %1387 = vmatprep.subr.mxu0 0.0
      %1388 = vmatpush1.msra.mxu0 0.0
      %1389 = vmatprep.subr.mxu0 0.0
      %1390 = vmatpush1.msra.mxu0 0.0
      %1391 = vmatprep.subr.mxu0 0.0
      %1392 = vmatpush1.msra.mxu0 0.0
      %1393 = vmatprep.subr.mxu0 0.0
      %1394 = vmatpush1.msra.mxu0 0.0
      %1395 = vmatprep.subr.mxu0 0.0
      %1396 = vmatpush1.msra.mxu0 0.0
      %1397 = vmatprep.subr.mxu0 0.0
      %1398 = vmatpush1.msra.mxu0 0.0
      %1399 = vmatprep.subr.mxu0 0.0
      %1400 = vmatpush1.msra.mxu0 0.0
      %1401 = vmatprep.subr.mxu0 0.0
      %1402 = vmatpush1.msra.mxu0 0.0
      %1403 = vmatprep.subr.mxu0 0.0
      %1404 = vmatpush1.msra.mxu0 0.0
      %1405 = vmatprep.subr.mxu0 0.0
      %1406 = vmatpush1.msra.mxu0 0.0
      %1407 = vmatprep.mubr.f32.mxu0 0.0
      %1408 = vmatmul.mubr.f32.gmra.mrb[0].mxu0 %v1244
      %v1409 = vpop.f32.mrb[0].mxu0
      %v1410 = vadd.f32 0.0, %v1409
      %v1411 = vpop.f32.mrb[0].mxu0
      %1412 = vmatprep.mubr.f32.mxu0 0.0
      %1413 = vmatmul.mubr.f32.gmra.mrb[0].mxu0 %v1247
      %v1414 = vpop.f32.mrb[0].mxu0
      %v1415 = vadd.f32 0.0, %v1414
      %v1416 = vpop.f32.mrb[0].mxu0
      %1417 = vmatprep.mubr.f32.mxu0 0.0
      %1418 = vmatmul.mubr.f32.gmra.mrb[0].mxu0 %v1250
      %v1419 = vpop.f32.mrb[0].mxu0
      %v1420 = vadd.f32 0.0, %v1419
      %v1421 = vpop.f32.mrb[0].mxu0
      %1422 = vmatprep.mubr.f32.mxu0 0.0
      %1423 = vmatmul.mubr.f32.gmra.mrb[0].mxu0 %v1253
      %v1424 = vpop.f32.mrb[0].mxu0
      %v1425 = vadd.f32 0.0, %v1424
      %v1426 = vpop.f32.mrb[0].mxu0
      %1427 = vmatprep.mubr.f32.mxu0 0.0
      %1428 = vmatmul.mubr.f32.gmra.mrb[0].mxu0 %v1256
      %v1429 = vpop.f32.mrb[0].mxu0
      %v1430 = vadd.f32 0.0, %v1429
      %v1431 = vpop.f32.mrb[0].mxu0
      %1432 = vmatprep.mubr.f32.mxu0 0.0
      %1433 = vmatmul.mubr.f32.gmra.mrb[0].mxu0 %v1259
      %v1434 = vpop.f32.mrb[0].mxu0
      %v1435 = vadd.f32 0.0, %v1434
      %v1436 = vpop.f32.mrb[0].mxu0
      %1437 = vmatprep.mubr.f32.mxu0 0.0
      %1438 = vmatmul.mubr.f32.gmra.mrb[0].mxu0 %v1262
      %v1439 = vpop.f32.mrb[0].mxu0
      %v1440 = vadd.f32 0.0, %v1439
      %v1441 = vpop.f32.mrb[0].mxu0
      %1442 = vmatprep.mubr.f32.mxu0 0.0
      %1443 = vmatmul.mubr.f32.gmra.mrb[0].mxu0 %v1265
      %v1444 = vpop.f32.mrb[0].mxu0
      %v1445 = vadd.f32 0.0, %v1444
      %v1446 = vpop.f32.mrb[0].mxu0
      %1447 = vmatprep.mubr.f32.mxu0 0.0
      %1448 = vmatmul.mubr.f32.gmra.mrb[0].mxu0 %v1268
      %v1449 = vpop.f32.mrb[0].mxu0
      %v1450 = vadd.f32 0.0, %v1449
      %v1451 = vpop.f32.mrb[0].mxu0
      %1452 = vmatprep.mubr.f32.mxu0 0.0
      %1453 = vmatmul.mubr.f32.gmra.mrb[0].mxu0 %v1271
      %v1454 = vpop.f32.mrb[0].mxu0
      %v1455 = vadd.f32 0.0, %v1454
      %v1456 = vpop.f32.mrb[0].mxu0
      %1457 = vmatprep.mubr.f32.mxu0 0.0
      %1458 = vmatmul.mubr.f32.gmra.mrb[0].mxu0 %v1274
      %v1459 = vpop.f32.mrb[0].mxu0
      %v1460 = vadd.f32 0.0, %v1459
      %v1461 = vpop.f32.mrb[0].mxu0
      %1462 = vmatprep.mubr.f32.mxu0 0.0
      %1463 = vmatmul.mubr.f32.gmra.mrb[0].mxu0 %v1277
      %v1464 = vpop.f32.mrb[0].mxu0
      %v1465 = vadd.f32 0.0, %v1464
      %v1466 = vpop.f32.mrb[0].mxu0
      %1467 = vmatprep.mubr.f32.mxu0 0.0
      %1468 = vmatmul.mubr.f32.gmra.mrb[0].mxu0 %v1280
      %v1469 = vpop.f32.mrb[0].mxu0
      %v1470 = vadd.f32 0.0, %v1469
      %v1471 = vpop.f32.mrb[0].mxu0
      %1472 = vmatprep.mubr.f32.mxu0 0.0
      %1473 = vmatmul.mubr.f32.gmra.mrb[0].mxu0 %v1283
      %v1474 = vpop.f32.mrb[0].mxu0
      %v1475 = vadd.f32 0.0, %v1474
      %v1476 = vpop.f32.mrb[0].mxu0
      %1477 = vmatprep.mubr.f32.mxu0 0.0
      %1478 = vmatmul.mubr.f32.gmra.mrb[0].mxu0 %v1286
      %v1479 = vpop.f32.mrb[0].mxu0
      %v1480 = vadd.f32 0.0, %v1479
      %v1481 = vpop.f32.mrb[0].mxu0
      %1482 = vmatprep.mubr.f32.mxu0 0.0
      %1483 = vmatmul.mubr.f32.gmra.mrb[0].mxu0 %v1289
      %v1484 = vpop.f32.mrb[0].mxu0
      %v1485 = vadd.f32 0.0, %v1484
      %v1486 = vpop.f32.mrb[0].mxu0
      %1487 = vmatprep.mubr.f32.mxu0 0.0
      %1488 = vmatmul.mubr.f32.gmra.mrb[0].mxu0 %v1292
      %v1489 = vpop.f32.mrb[0].mxu0
      %v1490 = vadd.f32 0.0, %v1489
      %v1491 = vpop.f32.mrb[0].mxu0
      %1492 = vmatprep.mubr.f32.mxu0 0.0
      %1493 = vmatmul.mubr.f32.gmra.mrb[0].mxu0 %v1295
      %v1494 = vpop.f32.mrb[0].mxu0
      %v1495 = vadd.f32 0.0, %v1494
      %v1496 = vpop.f32.mrb[0].mxu0
      %1497 = vmatprep.mubr.f32.mxu0 0.0
      %1498 = vmatmul.mubr.f32.gmra.mrb[0].mxu0 %v1298
      %v1499 = vpop.f32.mrb[0].mxu0
      %v1500 = vadd.f32 0.0, %v1499
      %v1501 = vpop.f32.mrb[0].mxu0
      %1502 = vmatprep.mubr.f32.mxu0 0.0
      %1503 = vmatmul.mubr.f32.gmra.mrb[0].mxu0 %v1301
      %v1504 = vpop.f32.mrb[0].mxu0
      %v1505 = vadd.f32 0.0, %v1504
      %v1506 = vpop.f32.mrb[0].mxu0
      %1507 = vmatprep.mubr.f32.mxu0 0.0
      %1508 = vmatmul.mubr.f32.gmra.mrb[0].mxu0 %v1304
      %v1509 = vpop.f32.mrb[0].mxu0
      %v1510 = vadd.f32 0.0, %v1509
      %v1511 = vpop.f32.mrb[0].mxu0
      %1512 = vmatprep.mubr.f32.mxu0 0.0
      %1513 = vmatmul.mubr.f32.gmra.mrb[0].mxu0 %v1307
      %v1514 = vpop.f32.mrb[0].mxu0
      %v1515 = vadd.f32 0.0, %v1514
      %v1516 = vpop.f32.mrb[0].mxu0
      %1517 = vmatprep.mubr.f32.mxu0 0.0
      %1518 = vmatmul.mubr.f32.gmra.mrb[0].mxu0 %v1310
      %v1519 = vpop.f32.mrb[0].mxu0
      %v1520 = vadd.f32 0.0, %v1519
      %v1521 = vpop.f32.mrb[0].mxu0
      %1522 = vmatprep.mubr.f32.mxu0 0.0
      %1523 = vmatmul.mubr.f32.gmra.mrb[0].mxu0 %v1313
      %v1524 = vpop.f32.mrb[0].mxu0
      %v1525 = vadd.f32 0.0, %v1524
      %v1526 = vpop.f32.mrb[0].mxu0
      %1527 = vmatprep.mubr.f32.mxu0 0.0
      %1528 = vmatmul.mubr.f32.gmra.mrb[0].mxu0 %v1316
      %v1529 = vpop.f32.mrb[0].mxu0
      %v1530 = vadd.f32 0.0, %v1529
      %v1531 = vpop.f32.mrb[0].mxu0
      %1532 = vmatprep.mubr.f32.mxu0 0.0
      %1533 = vmatmul.mubr.f32.gmra.mrb[0].mxu0 %v1319
      %v1534 = vpop.f32.mrb[0].mxu0
      %v1535 = vadd.f32 0.0, %v1534
      %v1536 = vpop.f32.mrb[0].mxu0
      %1537 = vmatprep.mubr.f32.mxu0 0.0
      %1538 = vmatmul.mubr.f32.gmra.mrb[0].mxu0 %v1322
      %v1539 = vpop.f32.mrb[0].mxu0
      %v1540 = vadd.f32 0.0, %v1539
      %v1541 = vpop.f32.mrb[0].mxu0
      %1542 = vmatprep.mubr.f32.mxu0 0.0
      %1543 = vmatmul.mubr.f32.gmra.mrb[0].mxu0 %v1325
      %v1544 = vpop.f32.mrb[0].mxu0
      %v1545 = vadd.f32 0.0, %v1544
      %v1546 = vpop.f32.mrb[0].mxu0
      %1547 = vmatprep.mubr.f32.mxu0 0.0
      %1548 = vmatmul.mubr.f32.gmra.mrb[0].mxu0 %v1328
      %v1549 = vpop.f32.mrb[0].mxu0
      %v1550 = vadd.f32 0.0, %v1549
      %v1551 = vpop.f32.mrb[0].mxu0
      %1552 = vmatprep.mubr.f32.mxu0 0.0
      %1553 = vmatmul.mubr.f32.gmra.mrb[0].mxu0 %v1331
      %v1554 = vpop.f32.mrb[0].mxu0
      %v1555 = vadd.f32 0.0, %v1554
      %v1556 = vpop.f32.mrb[0].mxu0
      %1557 = vmatprep.mubr.f32.mxu0 0.0
      %1558 = vmatmul.mubr.f32.gmra.mrb[0].mxu0 %v1334
      %v1559 = vpop.f32.mrb[0].mxu0
      %v1560 = vadd.f32 0.0, %v1559
      %v1561 = vpop.f32.mrb[0].mxu0
      %1562 = vmatprep.mubr.f32.mxu0 0.0
      %1563 = vmatmul.mubr.f32.gmra.mrb[0].mxu0 %v1337
      %v1564 = vpop.f32.mrb[0].mxu0
      %v1565 = vadd.f32 0.0, %v1564
      %v1566 = vpop.f32.mrb[0].mxu0
      %1567 = vdwg.mxu0
      %v1568 = vld [vmem:[%s4] sm:$0x1]
      %v1570 = vlaneseq
      %v1571 = vshrl.u32 %v1570, 7
      %v1572 = vsub.s32 0, %v1571
      %v1573 = vrot.slane %v1568, %v1572
      %v1575 = vmul.f32 %v1410, %v1573
      %v1576 = vmul.f32 %v1415, %v1573
      %v1577 = vmul.f32 %v1420, %v1573
      %v1578 = vmul.f32 %v1425, %v1573
      %v1579 = vmul.f32 %v1430, %v1573
      %v1580 = vmul.f32 %v1435, %v1573
      %v1581 = vmul.f32 %v1440, %v1573
      %v1582 = vmul.f32 %v1445, %v1573
      %v1583 = vmul.f32 %v1450, %v1573
      %v1584 = vmul.f32 %v1455, %v1573
      %v1585 = vmul.f32 %v1460, %v1573
      %v1586 = vmul.f32 %v1465, %v1573
      %v1587 = vmul.f32 %v1470, %v1573
      %v1588 = vmul.f32 %v1475, %v1573
      %v1589 = vmul.f32 %v1480, %v1573
      %v1590 = vmul.f32 %v1485, %v1573
      %v1591 = vmul.f32 %v1490, %v1573
      %v1592 = vmul.f32 %v1495, %v1573
      %v1593 = vmul.f32 %v1500, %v1573
      %v1594 = vmul.f32 %v1505, %v1573
      %v1595 = vmul.f32 %v1510, %v1573
      %v1596 = vmul.f32 %v1515, %v1573
      %v1597 = vmul.f32 %v1520, %v1573
      %v1598 = vmul.f32 %v1525, %v1573
      %v1599 = vmul.f32 %v1530, %v1573
      %v1600 = vmul.f32 %v1535, %v1573
      %v1601 = vmul.f32 %v1540, %v1573
      %v1602 = vmul.f32 %v1545, %v1573
      %v1603 = vmul.f32 %v1550, %v1573
      %v1604 = vmul.f32 %v1555, %v1573
      %v1605 = vmul.f32 %v1560, %v1573
      %v1606 = vmul.f32 %v1565, %v1573
      %v1607 = vld [vmem:[%s5] sm:$0x1]
      %v1609 = vlaneseq
      %v1610 = vshrl.u32 %v1609, 7
      %v1611 = vsub.s32 0, %v1610
      %v1612 = vrot.slane %v1607, %v1611
      %v1614 = vadd.f32 %v1575, %v1612
      %v1615 = vadd.f32 %v1576, %v1612
      %v1616 = vadd.f32 %v1577, %v1612
      %v1617 = vadd.f32 %v1578, %v1612
      %v1618 = vadd.f32 %v1579, %v1612
      %v1619 = vadd.f32 %v1580, %v1612
      %v1620 = vadd.f32 %v1581, %v1612
      %v1621 = vadd.f32 %v1582, %v1612
      %v1622 = vadd.f32 %v1583, %v1612
      %v1623 = vadd.f32 %v1584, %v1612
      %v1624 = vadd.f32 %v1585, %v1612
      %v1625 = vadd.f32 %v1586, %v1612
      %v1626 = vadd.f32 %v1587, %v1612
      %v1627 = vadd.f32 %v1588, %v1612
      %v1628 = vadd.f32 %v1589, %v1612
      %v1629 = vadd.f32 %v1590, %v1612
      %v1630 = vadd.f32 %v1591, %v1612
      %v1631 = vadd.f32 %v1592, %v1612
      %v1632 = vadd.f32 %v1593, %v1612
      %v1633 = vadd.f32 %v1594, %v1612
      %v1634 = vadd.f32 %v1595, %v1612
      %v1635 = vadd.f32 %v1596, %v1612
      %v1636 = vadd.f32 %v1597, %v1612
      %v1637 = vadd.f32 %v1598, %v1612
      %v1638 = vadd.f32 %v1599, %v1612
      %v1639 = vadd.f32 %v1600, %v1612
      %v1640 = vadd.f32 %v1601, %v1612
      %v1641 = vadd.f32 %v1602, %v1612
      %v1642 = vadd.f32 %v1603, %v1612
      %v1643 = vadd.f32 %v1604, %v1612
      %v1644 = vadd.f32 %v1605, %v1612
      %v1645 = vadd.f32 %v1606, %v1612
      %v1646 = vmax.f32 %v1614, 0.0
      %v1647 = vmax.f32 %v1615, 0.0
      %v1648 = vmax.f32 %v1616, 0.0
      %v1649 = vmax.f32 %v1617, 0.0
      %v1650 = vmax.f32 %v1618, 0.0
      %v1651 = vmax.f32 %v1619, 0.0
      %v1652 = vmax.f32 %v1620, 0.0
      %v1653 = vmax.f32 %v1621, 0.0
      %v1654 = vmax.f32 %v1622, 0.0
      %v1655 = vmax.f32 %v1623, 0.0
      %v1656 = vmax.f32 %v1624, 0.0
      %v1657 = vmax.f32 %v1625, 0.0
      %v1658 = vmax.f32 %v1626, 0.0
      %v1659 = vmax.f32 %v1627, 0.0
      %v1660 = vmax.f32 %v1628, 0.0
      %v1661 = vmax.f32 %v1629, 0.0
      %v1662 = vmax.f32 %v1630, 0.0
      %v1663 = vmax.f32 %v1631, 0.0
      %v1664 = vmax.f32 %v1632, 0.0
      %v1665 = vmax.f32 %v1633, 0.0
      %v1666 = vmax.f32 %v1634, 0.0
      %v1667 = vmax.f32 %v1635, 0.0
      %v1668 = vmax.f32 %v1636, 0.0
      %v1669 = vmax.f32 %v1637, 0.0
      %v1670 = vmax.f32 %v1638, 0.0
      %v1671 = vmax.f32 %v1639, 0.0
      %v1672 = vmax.f32 %v1640, 0.0
      %v1673 = vmax.f32 %v1641, 0.0
      %v1674 = vmax.f32 %v1642, 0.0
      %v1675 = vmax.f32 %v1643, 0.0
      %v1676 = vmax.f32 %v1644, 0.0
      %v1677 = vmax.f32 %v1645, 0.0
      %1678 = vst [vmem:[%s418] sm:$0xff] %v1646
      %1679 = vst [vmem:[%s418 + $0x8] sm:$0xff] %v1647
      %1680 = vst [vmem:[%s418 + $0x10] sm:$0xff] %v1648
      %1681 = vst [vmem:[%s418 + $0x18] sm:$0xff] %v1649
      %1682 = vst [vmem:[%s418 + $0x20] sm:$0xff] %v1650
      %1683 = vst [vmem:[%s418 + $0x28] sm:$0xff] %v1651
      %1684 = vst [vmem:[%s418 + $0x30] sm:$0xff] %v1652
      %1685 = vst [vmem:[%s418 + $0x38] sm:$0xff] %v1653
      %1686 = vst [vmem:[%s418 + $0x40] sm:$0xff] %v1654
      %1687 = vst [vmem:[%s418 + $0x48] sm:$0xff] %v1655
      %1688 = vst [vmem:[%s418 + $0x50] sm:$0xff] %v1656
      %1689 = vst [vmem:[%s418 + $0x58] sm:$0xff] %v1657
      %1690 = vst [vmem:[%s418 + $0x60] sm:$0xff] %v1658
      %1691 = vst [vmem:[%s418 + $0x68] sm:$0xff] %v1659
      %1692 = vst [vmem:[%s418 + $0x70] sm:$0xff] %v1660
      %1693 = vst [vmem:[%s418 + $0x78] sm:$0xff] %v1661
      %1694 = vst [vmem:[%s418 + $0x80] sm:$0xff] %v1662
      %1695 = vst [vmem:[%s418 + $0x88] sm:$0xff] %v1663
      %1696 = vst [vmem:[%s418 + $0x90] sm:$0xff] %v1664
      %1697 = vst [vmem:[%s418 + $0x98] sm:$0xff] %v1665
      %1698 = vst [vmem:[%s418 + $0xa0] sm:$0xff] %v1666
      %1699 = vst [vmem:[%s418 + $0xa8] sm:$0xff] %v1667
      %1700 = vst [vmem:[%s418 + $0xb0] sm:$0xff] %v1668
      %1701 = vst [vmem:[%s418 + $0xb8] sm:$0xff] %v1669
      %1702 = vst [vmem:[%s418 + $0xc0] sm:$0xff] %v1670
      %1703 = vst [vmem:[%s418 + $0xc8] sm:$0xff] %v1671
      %1704 = vst [vmem:[%s418 + $0xd0] sm:$0xff] %v1672
      %1705 = vst [vmem:[%s418 + $0xd8] sm:$0xff] %v1673
      %1706 = vst [vmem:[%s418 + $0xe0] sm:$0xff] %v1674
      %1707 = vst [vmem:[%s418 + $0xe8] sm:$0xff] %v1675
      %1708 = vst [vmem:[%s418 + $0xf0] sm:$0xff] %v1676
      %1709 = vst [vmem:[%s418 + $0xf8] sm:$0xff] %v1677
      %s1710 = smul.u32 8, %s22
      %p1711 = scmp.lt.s32.totalorder %s21, 1
      %s1712 = scalar_select %p1711, %s21, 1
      %p1713 = scmp.lt.s32.totalorder %s1710, 31
      %s1714 = scalar_select %p1713, %s1710, 31
      %s1715 = smul.addr %s1714, 4
      %s1716 = smul.addr %s1712, 128
      %s1717 = sadd.s32 %s1715, %s1716
      %s1718 = smul.addr %s1717, 8
      %s1719 = scalar_lea.vmem %s6, %s1718
      // Predicated region
      $region45: #{fwd.2} parent=43 // pred_check
        %p1720 = pneg %p212
      $region46: #{fwd.2} parent=43 // pred_check_branch
        %1722 = sbr.rel (%p1720) target = $region48
      $region47: #{fwd.2} parent=43 // pred_region
        %s1723 = smul.u32 8, %s22
      $region48: #{fwd.2} parent=43 // pred_fallthru
        _
    $region44: #{fwd.2} parent=5 // pred_fallthru
      _
    %p1724 = scmp.le.s32.totalorder 2, %s12
    // Predicated region
    $region49: #{fwd.2} parent=5 // pred_check
      %p1725 = pneg %p1724
    $region50: #{fwd.2} parent=5 // pred_check_branch
      %1727 = sbr.rel (%p1725) target = $region52
    $region51: #{fwd.2} parent=5 // pred_region
      %s1728 = ssub.s32 %s12, 2
      // Predicated region
      $region53: #{fwd.2} parent=51 // pred_check
        %p1729 = pneg %p218
      $region54: #{fwd.2} parent=51 // pred_check_branch
        %1731 = sbr.rel (%p1729) target = $region56
      $region55: #{fwd.2} parent=51 // pred_region
        %s1732 = smul.u32 8, %s24
        %p1733 = scmp.lt.s32.totalorder %s23, 1
        %s1734 = scalar_select %p1733, %s23, 1
        %p1735 = scmp.lt.s32.totalorder %s1732, 31
        %s1736 = scalar_select %p1735, %s1732, 31
        %s1737 = smul.addr %s1736, 4
        %s1738 = smul.addr %s1734, 128
        %s1739 = sadd.s32 %s1737, %s1738
        %s1740 = smul.addr %s1739, 8
        %s1741 = scalar_lea.vmem %s6, %s1740
      $region56: #{fwd.2} parent=51 // pred_fallthru
        _
    $region52: #{fwd.2} parent=5 // pred_fallthru
      _
  $region6: #{fwd.2} parent=0 // loop_footer
    %s16 = sadd.s32 1, %s12
  $region7: #{fwd.2} parent=0 // loop_footer_branch
    %11 = sbr.rel target = $region3
  $region8: #{fwd.2} parent=0 // loop_exit
    _

// kernel: fwd.3
$region0: #{fwd.3}
  #allocation0 [shape = 'u32[]', space=smem, size = 0x4, offset = 0x4, fixed_abs, tag = 'smem constant byte address 0x4 - core index']
  #allocation1 [shape = 'u32[144,128]{1,0:T(1,128)}', space=vmem, size = 0x12000, scoped, tag = 'internal scratch']
  %s0 = inlined_call_operand.vmem [shape: f32[2,32,32,128], index: 0, kind: input, shape index: {}, may-alias: {0,1,2}]
  %s1 = inlined_call_operand.vmem [shape: f32[2,32,32,128], index: 1, kind: input, shape index: {}, may-alias: {0,1,2}]
  %s2 = inlined_call_operand.vmem [shape: f32[2,32,32,128], index: 2, kind: input, shape index: {}, may-alias: {0,1,2}]
  %s3 = inlined_call_operand.vmem [shape: f32[1152,128], index: 3, kind: input, shape index: {}]
  %s4 = inlined_call_operand.vmem [shape: f32[1,128], index: 4, kind: input, shape index: {}]
  %s5 = inlined_call_operand.vmem [shape: f32[1,128], index: 5, kind: input, shape index: {}]
  %s6 = inlined_call_operand.vmem [shape: f32[2,32,32,128], index: 6, kind: output, shape index: {}]
  %s7 = sld [smem:[#allocation0]]
  $region57: #{fwd.3} parent=0
    _
  %s9 = ssub.s32 1, %s7
  %s10 = scalar_select 0, %s9, %s7
  loop: start=0, step=1, limit=10
  $region2: #{fwd.3} parent=0 // loop_pre_header
    _
  $region3: #{fwd.3} parent=0 // loop_header
    %s12 = sphi 0, %s16
    %p13 = scmp.ge.s32.totalorder %s12, 10
    %s19 = sphi 0, %s31
    %s20 = sphi 0, %s27
    %s21 = sphi 0, %s19
    %s22 = sphi 0, %s20
    %s23 = sphi 0, %s21
    %s24 = sphi 0, %s22
    %s36 = sphi 0, %s38
    %s39 = sphi 0, %s36
    %s40 = sphi 0, %s39
    %s56 = sphi 0, %s40
    %s72 = sphi 0, %s74
    %s75 = sphi 0, %s72
    %s76 = sphi 0, %s75
    %s92 = sphi 0, %s76
    %s108 = sphi 0, %s110
    %s111 = sphi 0, %s108
    %s112 = sphi 0, %s111
    %s128 = sphi 0, %s112
    %s132 = sphi 0, %s132
    %s134 = sphi 0, %s132
    %s135 = sphi 0, %s134
    %s149 = sphi 0, %s135
    %s153 = sphi 0, %s153
    %s155 = sphi 0, %s153
    %s156 = sphi 0, %s155
    %s170 = sphi 0, %s156
    %s174 = sphi 0, %s174
    %s176 = sphi 0, %s174
    %s177 = sphi 0, %s176
    %s191 = sphi 0, %s177
    %s199 = sphi 0, %s201
    %s202 = sphi 0, %s199
    %s203 = sphi 0, %s202
    %s219 = sphi 0, %s203
  $region4: #{fwd.3} parent=0 // loop_header_branch
    %15 = sbr.rel (%p13) target = $region8
  $region5: #{fwd.3} parent=0 // loop_body
    %s17 = ssub.s32 %s12, 1
    %s18 = ssub.s32 %s12, 2
    %s25 = sadd.s32 1, %s20
    %p26 = scmp.ge.s32.totalorder %s25, 4
    %s27 = scalar_select %p26, 0, %s25
    %s28 = sadd.s32 1, %s19
    %s29 = scalar_select %p26, %s28, %s19
    %p30 = scmp.ge.s32.totalorder %s29, 2
    %s31 = scalar_select %p30, 0, %s29
    %s32 = ssub.s32 %s19, %s31
    %s33 = ssub.s32 %s20, %s27
    %s34 = sor.u32 %s32, %s33
    %p35 = scmp.eq.s32.totalorder %s34, 0
    %s37 = sadd.s32 %s36, 1
    %s38 = scalar_select %p35, %s36, %s37
    %p41 = pneg %p35
    %p42 = scmp.eq.s32.totalorder %s12, 7
    %p43 = por %p41, %p42
    %p44 = scmp.ne.s32.totalorder %s36, %s39
    %p45 = scmp.eq.s32.totalorder %s12, 0
    %p46 = por %p44, %p45
    %p47 = scmp.ne.s32.totalorder %s36, %s39
    %p48 = scmp.eq.s32.totalorder %s17, 7
    %p49 = por %p47, %p48
    %p50 = scmp.ne.s32.totalorder %s39, %s40
    %p51 = scmp.eq.s32.totalorder %s17, 0
    %p52 = por %p50, %p51
    %p53 = scmp.ne.s32.totalorder %s39, %s40
    %p54 = scmp.eq.s32.totalorder %s18, 7
    %p55 = por %p53, %p54
    %p57 = scmp.ne.s32.totalorder %s40, %s56
    %p58 = scmp.eq.s32.totalorder %s18, 0
    %p59 = por %p57, %p58
    %s60 = smul.u32 %s20, 8
    %s61 = ssub.s32 %s60, 1
    %p62 = scmp.gt.s32.totalorder %s61, 0
    %s63 = scalar_select %p62, %s61, 0
    %s64 = smul.u32 %s27, 8
    %s65 = ssub.s32 %s64, 1
    %p66 = scmp.gt.s32.totalorder %s65, 0
    %s67 = scalar_select %p66, %s65, 0
    %s68 = ssub.s32 %s19, %s31
    %s69 = ssub.s32 %s63, %s67
    %s70 = sor.u32 %s68, %s69
    %p71 = scmp.eq.s32.totalorder %s70, 0
    %s73 = sadd.s32 %s72, 1
    %s74 = scalar_select %p71, %s72, %s73
    %p77 = pneg %p71
    %p78 = scmp.eq.s32.totalorder %s12, 7
    %p79 = por %p77, %p78
    %p80 = scmp.ne.s32.totalorder %s72, %s75
    %p81 = scmp.eq.s32.totalorder %s12, 0
    %p82 = por %p80, %p81
    %p83 = scmp.ne.s32.totalorder %s72, %s75
    %p84 = scmp.eq.s32.totalorder %s17, 7
    %p85 = por %p83, %p84
    %p86 = scmp.ne.s32.totalorder %s75, %s76
    %p87 = scmp.eq.s32.totalorder %s17, 0
    %p88 = por %p86, %p87
    %p89 = scmp.ne.s32.totalorder %s75, %s76
    %p90 = scmp.eq.s32.totalorder %s18, 7
    %p91 = por %p89, %p90
    %p93 = scmp.ne.s32.totalorder %s76, %s92
    %p94 = scmp.eq.s32.totalorder %s18, 0
    %p95 = por %p93, %p94
    %s96 = sadd.s32 %s20, 1
    %s97 = smul.u32 %s96, 8
    %p98 = scmp.lt.s32.totalorder %s97, 31
    %s99 = scalar_select %p98, %s97, 31
    %s100 = sadd.s32 %s27, 1
    %s101 = smul.u32 %s100, 8
    %p102 = scmp.lt.s32.totalorder %s101, 31
    %s103 = scalar_select %p102, %s101, 31
    %s104 = ssub.s32 %s19, %s31
    %s105 = ssub.s32 %s99, %s103
    %s106 = sor.u32 %s104, %s105
    %p107 = scmp.eq.s32.totalorder %s106, 0
    %s109 = sadd.s32 %s108, 1
    %s110 = scalar_select %p107, %s108, %s109
    %p113 = pneg %p107
    %p114 = scmp.eq.s32.totalorder %s12, 7
    %p115 = por %p113, %p114
    %p116 = scmp.ne.s32.totalorder %s108, %s111
    %p117 = scmp.eq.s32.totalorder %s12, 0
    %p118 = por %p116, %p117
    %p119 = scmp.ne.s32.totalorder %s108, %s111
    %p120 = scmp.eq.s32.totalorder %s17, 7
    %p121 = por %p119, %p120
    %p122 = scmp.ne.s32.totalorder %s111, %s112
    %p123 = scmp.eq.s32.totalorder %s17, 0
    %p124 = por %p122, %p123
    %p125 = scmp.ne.s32.totalorder %s111, %s112
    %p126 = scmp.eq.s32.totalorder %s18, 7
    %p127 = por %p125, %p126
    %p129 = scmp.ne.s32.totalorder %s112, %s128
    %p130 = scmp.eq.s32.totalorder %s18, 0
    %p131 = por %p129, %p130
    %s133 = sadd.s32 %s132, 1
    %p136 = scmp.eq.s32.totalorder %s12, 7
    %p137 = scmp.ne.s32.totalorder %s132, %s134
    %p138 = scmp.eq.s32.totalorder %s12, 0
    %p139 = por %p137, %p138
    %p140 = scmp.ne.s32.totalorder %s132, %s134
    %p141 = scmp.eq.s32.totalorder %s17, 7
    %p142 = por %p140, %p141
    %p143 = scmp.ne.s32.totalorder %s134, %s135
    %p144 = scmp.eq.s32.totalorder %s17, 0
    %p145 = por %p143, %p144
    %p146 = scmp.ne.s32.totalorder %s134, %s135
    %p147 = scmp.eq.s32.totalorder %s18, 7
    %p148 = por %p146, %p147
    %p150 = scmp.ne.s32.totalorder %s135, %s149
    %p151 = scmp.eq.s32.totalorder %s18, 0
    %p152 = por %p150, %p151
    %s154 = sadd.s32 %s153, 1
    %p157 = scmp.eq.s32.totalorder %s12, 7
    %p158 = scmp.ne.s32.totalorder %s153, %s155
    %p159 = scmp.eq.s32.totalorder %s12, 0
    %p160 = por %p158, %p159
    %p161 = scmp.ne.s32.totalorder %s153, %s155
    %p162 = scmp.eq.s32.totalorder %s17, 7
    %p163 = por %p161, %p162
    %p164 = scmp.ne.s32.totalorder %s155, %s156
    %p165 = scmp.eq.s32.totalorder %s17, 0
    %p166 = por %p164, %p165
    %p167 = scmp.ne.s32.totalorder %s155, %s156
    %p168 = scmp.eq.s32.totalorder %s18, 7
    %p169 = por %p167, %p168
    %p171 = scmp.ne.s32.totalorder %s156, %s170
    %p172 = scmp.eq.s32.totalorder %s18, 0
    %p173 = por %p171, %p172
    %s175 = sadd.s32 %s174, 1
    %p178 = scmp.eq.s32.totalorder %s12, 7
    %p179 = scmp.ne.s32.totalorder %s174, %s176
    %p180 = scmp.eq.s32.totalorder %s12, 0
    %p181 = por %p179, %p180
    %p182 = scmp.ne.s32.totalorder %s174, %s176
    %p183 = scmp.eq.s32.totalorder %s17, 7
    %p184 = por %p182, %p183
    %p185 = scmp.ne.s32.totalorder %s176, %s177
    %p186 = scmp.eq.s32.totalorder %s17, 0
    %p187 = por %p185, %p186
    %p188 = scmp.ne.s32.totalorder %s176, %s177
    %p189 = scmp.eq.s32.totalorder %s18, 7
    %p190 = por %p188, %p189
    %p192 = scmp.ne.s32.totalorder %s177, %s191
    %p193 = scmp.eq.s32.totalorder %s18, 0
    %p194 = por %p192, %p193
    %s195 = ssub.s32 %s19, %s31
    %s196 = ssub.s32 %s20, %s27
    %s197 = sor.u32 %s195, %s196
    %p198 = scmp.eq.s32.totalorder %s197, 0
    %s200 = sadd.s32 %s199, 1
    %s201 = scalar_select %p198, %s199, %s200
    %p204 = pneg %p198
    %p205 = scmp.eq.s32.totalorder %s12, 7
    %p206 = por %p204, %p205
    %p207 = scmp.ne.s32.totalorder %s199, %s202
    %p208 = scmp.eq.s32.totalorder %s12, 0
    %p209 = por %p207, %p208
    %p210 = scmp.ne.s32.totalorder %s199, %s202
    %p211 = scmp.eq.s32.totalorder %s17, 7
    %p212 = por %p210, %p211
    %p213 = scmp.ne.s32.totalorder %s202, %s203
    %p214 = scmp.eq.s32.totalorder %s17, 0
    %p215 = por %p213, %p214
    %p216 = scmp.ne.s32.totalorder %s202, %s203
    %p217 = scmp.eq.s32.totalorder %s18, 7
    %p218 = por %p216, %p217
    %p220 = scmp.ne.s32.totalorder %s203, %s219
    %p221 = scmp.eq.s32.totalorder %s18, 0
    %p222 = por %p220, %p221
    %p223 = scmp.le.s32.totalorder 1, %s12
    %p224 = scmp.lt.s32.totalorder %s12, 9
    %p225 = pnand %p223, %p224
    %p226 = pneg %p225
    // Predicated region
    $region9: #{fwd.3} parent=5 // pred_check
      _
    $region10: #{fwd.3} parent=5 // pred_check_branch
      %228 = sbr.rel (%p225) target = $region12
    $region11: #{fwd.3} parent=5 // pred_region
      %s229 = ssub.s32 %s12, 1
      // Predicated region
      $region13: #{fwd.3} parent=11 // pred_check
        %p230 = pneg %p145
      $region14: #{fwd.3} parent=11 // pred_check_branch
        %232 = sbr.rel (%p230) target = $region16
      $region15: #{fwd.3} parent=11 // pred_region
        _
      $region16: #{fwd.3} parent=11 // pred_fallthru
        _
      // Predicated region
      $region17: #{fwd.3} parent=11 // pred_check
        %p233 = pneg %p166
      $region18: #{fwd.3} parent=11 // pred_check_branch
        %235 = sbr.rel (%p233) target = $region20
      $region19: #{fwd.3} parent=11 // pred_region
        _
      $region20: #{fwd.3} parent=11 // pred_fallthru
        _
      // Predicated region
      $region21: #{fwd.3} parent=11 // pred_check
        %p236 = pneg %p187
      $region22: #{fwd.3} parent=11 // pred_check_branch
        %238 = sbr.rel (%p236) target = $region24
      $region23: #{fwd.3} parent=11 // pred_region
        _
      $region24: #{fwd.3} parent=11 // pred_fallthru
        _
    $region12: #{fwd.3} parent=5 // pred_fallthru
      _
    %p239 = scmp.lt.s32.totalorder %s12, 8
    // Predicated region
    $region25: #{fwd.3} parent=5 // pred_check
      %p240 = pneg %p239
    $region26: #{fwd.3} parent=5 // pred_check_branch
      %242 = sbr.rel (%p240) target = $region28
    $region27: #{fwd.3} parent=5 // pred_region
      // Predicated region
      $region29: #{fwd.3} parent=27 // pred_check
        %p243 = pneg %p46
      $region30: #{fwd.3} parent=27 // pred_check_branch
        %245 = sbr.rel (%p243) target = $region32
      $region31: #{fwd.3} parent=27 // pred_region
        %s246 = smul.u32 8, %s20
        %p247 = scmp.lt.s32.totalorder %s19, 1
        %s248 = scalar_select %p247, %s19, 1
        %p249 = scmp.lt.s32.totalorder %s246, 31
        %s250 = scalar_select %p249, %s246, 31
        %s251 = smul.addr %s250, 4
        %s252 = smul.addr %s248, 128
        %s253 = sadd.s32 %s251, %s252
        %s254 = smul.addr %s253, 8
        %s255 = scalar_lea.vmem %s0, %s254
        %s256 = smul.u32 8, %s20
      $region32: #{fwd.3} parent=27 // pred_fallthru
        _
      // Predicated region
      $region33: #{fwd.3} parent=27 // pred_check
        %p257 = pneg %p82
      $region34: #{fwd.3} parent=27 // pred_check_branch
        %259 = sbr.rel (%p257) target = $region36
      $region35: #{fwd.3} parent=27 // pred_region
        %s260 = smul.u32 %s20, 8
        %s261 = ssub.s32 %s260, 1
        %p262 = scmp.gt.s32.totalorder %s261, 0
        %s263 = scalar_select %p262, %s261, 0
        %p264 = scmp.lt.s32.totalorder %s19, 1
        %s265 = scalar_select %p264, %s19, 1
        %p266 = scmp.lt.s32.totalorder %s263, 31
        %s267 = scalar_select %p266, %s263, 31
        %s268 = smul.addr %s267, 4
        %s269 = smul.addr %s265, 128
        %s270 = sadd.s32 %s268, %s269
        %s271 = smul.addr %s270, 8
        %s272 = scalar_lea.vmem %s1, %s271
        %s273 = smul.u32 %s20, 8
        %s274 = ssub.s32 %s273, 1
        %p275 = scmp.gt.s32.totalorder %s274, 0
        %s276 = scalar_select %p275, %s274, 0
      $region36: #{fwd.3} parent=27 // pred_fallthru
        _
      // Predicated region
      $region37: #{fwd.3} parent=27 // pred_check
        %p277 = pneg %p118
      $region38: #{fwd.3} parent=27 // pred_check_branch
        %279 = sbr.rel (%p277) target = $region40
      $region39: #{fwd.3} parent=27 // pred_region
        %s280 = sadd.s32 %s20, 1
        %s281 = smul.u32 %s280, 8
        %p282 = scmp.lt.s32.totalorder %s281, 31
        %s283 = scalar_select %p282, %s281, 31
        %p284 = scmp.lt.s32.totalorder %s19, 1
        %s285 = scalar_select %p284, %s19, 1
        %p286 = scmp.lt.s32.totalorder %s283, 31
        %s287 = scalar_select %p286, %s283, 31
        %s288 = smul.addr %s287, 4
        %s289 = smul.addr %s285, 128
        %s290 = sadd.s32 %s288, %s289
        %s291 = smul.addr %s290, 8
        %s292 = scalar_lea.vmem %s2, %s291
        %s293 = sadd.s32 %s20, 1
        %s294 = smul.u32 %s293, 8
        %p295 = scmp.lt.s32.totalorder %s294, 31
        %s296 = scalar_select %p295, %s294, 31
      $region40: #{fwd.3} parent=27 // pred_fallthru
        _
    $region28: #{fwd.3} parent=5 // pred_fallthru
      _
    %p297 = scmp.le.s32.totalorder 1, %s12
    %p298 = scmp.lt.s32.totalorder %s12, 9
    %p299 = pnand %p297, %p298
    %p300 = pneg %p299
    // Predicated region
    $region41: #{fwd.3} parent=5 // pred_check
      _
    $region42: #{fwd.3} parent=5 // pred_check_branch
      %302 = sbr.rel (%p299) target = $region44
    $region43: #{fwd.3} parent=5 // pred_region
      %s303 = ssub.s32 %s12, 1
      %s304 = smul.u32 8, %s22
      %p305 = scmp.lt.s32.totalorder %s21, 1
      %s306 = scalar_select %p305, %s21, 1
      %p307 = scmp.lt.s32.totalorder %s304, 31
      %s308 = scalar_select %p307, %s304, 31
      %s309 = smul.addr %s308, 4
      %s310 = smul.addr %s306, 128
      %s311 = sadd.s32 %s309, %s310
      %s312 = smul.addr %s311, 8
      %s313 = scalar_lea.vmem %s0, %s312
      %p314 = pneg %p52
      %p315 = pneg %p49
      %s316 = smul.u32 %s22, 8
      %s317 = ssub.s32 %s316, 1
      %p318 = scmp.gt.s32.totalorder %s317, 0
      %s319 = scalar_select %p318, %s317, 0
      %p320 = scmp.lt.s32.totalorder %s21, 1
      %s321 = scalar_select %p320, %s21, 1
      %p322 = scmp.lt.s32.totalorder %s319, 31
      %s323 = scalar_select %p322, %s319, 31
      %s324 = smul.addr %s323, 4
      %s325 = smul.addr %s321, 128
      %s326 = sadd.s32 %s324, %s325
      %s327 = smul.addr %s326, 8
      %s328 = scalar_lea.vmem %s1, %s327
      %p329 = pneg %p88
      %p330 = pneg %p85
      %s331 = sadd.s32 %s22, 1
      %s332 = smul.u32 %s331, 8
      %p333 = scmp.lt.s32.totalorder %s332, 31
      %s334 = scalar_select %p333, %s332, 31
      %p335 = scmp.lt.s32.totalorder %s21, 1
      %s336 = scalar_select %p335, %s21, 1
      %p337 = scmp.lt.s32.totalorder %s334, 31
      %s338 = scalar_select %p337, %s334, 31
      %s339 = smul.addr %s338, 4
      %s340 = smul.addr %s336, 128
      %s341 = sadd.s32 %s339, %s340
      %s342 = smul.addr %s341, 8
      %s343 = scalar_lea.vmem %s2, %s342
      %p344 = pneg %p124
      %p345 = pneg %p121
      %p346 = pneg %p145
      %p347 = pneg %p142
      %p348 = pneg %p166
      %p349 = pneg %p163
      %p350 = pneg %p187
      %p351 = pneg %p184
      %p352 = pneg %p215
      %p353 = pneg %p212
      %s354 = smul.u32 8, %s22
      %p355 = scmp.lt.s32.totalorder %s21, 1
      %s356 = scalar_select %p355, %s21, 1
      %p357 = scmp.lt.s32.totalorder %s354, 31
      %s358 = scalar_select %p357, %s354, 31
      %s359 = smul.addr %s358, 4
      %s360 = smul.addr %s356, 128
      %s361 = sadd.s32 %s359, %s360
      %s362 = smul.addr %s361, 8
      %s363 = scalar_lea.vmem %s6, %s362
      %s364 = smul.u32 8, %s22
      %p365 = scmp.lt.s32.totalorder %s21, 1
      %s366 = scalar_select %p365, %s21, 1
      %p367 = scmp.lt.s32.totalorder %s364, 31
      %s368 = scalar_select %p367, %s364, 31
      %s369 = smul.addr %s368, 4
      %s370 = smul.addr %s366, 128
      %s371 = sadd.s32 %s369, %s370
      %s372 = smul.addr %s371, 8
      %s373 = scalar_lea.vmem %s0, %s372
      %s374 = smul.u32 8, %s22
      %s375 = smul.u32 %s22, 8
      %s376 = ssub.s32 %s375, 1
      %p377 = scmp.gt.s32.totalorder %s376, 0
      %s378 = scalar_select %p377, %s376, 0
      %p379 = scmp.lt.s32.totalorder %s21, 1
      %s380 = scalar_select %p379, %s21, 1
      %p381 = scmp.lt.s32.totalorder %s378, 31
      %s382 = scalar_select %p381, %s378, 31
      %s383 = smul.addr %s382, 4
      %s384 = smul.addr %s380, 128
      %s385 = sadd.s32 %s383, %s384
      %s386 = smul.addr %s385, 8
      %s387 = scalar_lea.vmem %s1, %s386
      %s388 = smul.u32 %s22, 8
      %s389 = ssub.s32 %s388, 1
      %p390 = scmp.gt.s32.totalorder %s389, 0
      %s391 = scalar_select %p390, %s389, 0
      %s392 = sadd.s32 %s22, 1
      %s393 = smul.u32 %s392, 8
      %p394 = scmp.lt.s32.totalorder %s393, 31
      %s395 = scalar_select %p394, %s393, 31
      %p396 = scmp.lt.s32.totalorder %s21, 1
      %s397 = scalar_select %p396, %s21, 1
      %p398 = scmp.lt.s32.totalorder %s395, 31
      %s399 = scalar_select %p398, %s395, 31
      %s400 = smul.addr %s399, 4
      %s401 = smul.addr %s397, 128
      %s402 = sadd.s32 %s400, %s401
      %s403 = smul.addr %s402, 8
      %s404 = scalar_lea.vmem %s2, %s403
      %s405 = sadd.s32 %s22, 1
      %s406 = smul.u32 %s405, 8
      %p407 = scmp.lt.s32.totalorder %s406, 31
      %s408 = scalar_select %p407, %s406, 31
      %s409 = smul.u32 8, %s22
      %p410 = scmp.lt.s32.totalorder %s21, 1
      %s411 = scalar_select %p410, %s21, 1
      %p412 = scmp.lt.s32.totalorder %s409, 31
      %s413 = scalar_select %p412, %s409, 31
      %s414 = smul.addr %s413, 4
      %s415 = smul.addr %s411, 128
      %s416 = sadd.s32 %s414, %s415
      %s417 = smul.addr %s416, 8
      %s418 = scalar_lea.vmem %s6, %s417
      %s419 = smul.u32 8, %s22
      %v420 = vld [vmem:[%s373] sm:$0xff]
      %v421 = vld [vmem:[%s373 + $0x8] sm:$0xff]
      %v422 = vld [vmem:[%s373 + $0x10] sm:$0xff]
      %v423 = vld [vmem:[%s373 + $0x18] sm:$0xff]
      %v424 = vld [vmem:[%s373 + $0x20] sm:$0xff]
      %v425 = vld [vmem:[%s373 + $0x28] sm:$0xff]
      %v426 = vld [vmem:[%s373 + $0x30] sm:$0xff]
      %v427 = vld [vmem:[%s373 + $0x38] sm:$0xff]
      %v428 = vld [vmem:[%s373 + $0x40] sm:$0xff]
      %v429 = vld [vmem:[%s373 + $0x48] sm:$0xff]
      %v430 = vld [vmem:[%s373 + $0x50] sm:$0xff]
      %v431 = vld [vmem:[%s373 + $0x58] sm:$0xff]
      %v432 = vld [vmem:[%s373 + $0x60] sm:$0xff]
      %v433 = vld [vmem:[%s373 + $0x68] sm:$0xff]
      %v434 = vld [vmem:[%s373 + $0x70] sm:$0xff]
      %v435 = vld [vmem:[%s373 + $0x78] sm:$0xff]
      %v436 = vld [vmem:[%s373 + $0x80] sm:$0xff]
      %v437 = vld [vmem:[%s373 + $0x88] sm:$0xff]
      %v438 = vld [vmem:[%s373 + $0x90] sm:$0xff]
      %v439 = vld [vmem:[%s373 + $0x98] sm:$0xff]
      %v440 = vld [vmem:[%s373 + $0xa0] sm:$0xff]
      %v441 = vld [vmem:[%s373 + $0xa8] sm:$0xff]
      %v442 = vld [vmem:[%s373 + $0xb0] sm:$0xff]
      %v443 = vld [vmem:[%s373 + $0xb8] sm:$0xff]
      %v444 = vld [vmem:[%s373 + $0xc0] sm:$0xff]
      %v445 = vld [vmem:[%s373 + $0xc8] sm:$0xff]
      %v446 = vld [vmem:[%s373 + $0xd0] sm:$0xff]
      %v447 = vld [vmem:[%s373 + $0xd8] sm:$0xff]
      %v448 = vld [vmem:[%s373 + $0xe0] sm:$0xff]
      %v449 = vld [vmem:[%s373 + $0xe8] sm:$0xff]
      %v450 = vld [vmem:[%s373 + $0xf0] sm:$0xff]
      %v451 = vld [vmem:[%s373 + $0xf8] sm:$0xff]
      %v452 = vld [vmem:[%s387] sm:$0xff]
      %v453 = vld [vmem:[%s387 + $0x8] sm:$0xff]
      %v454 = vld [vmem:[%s387 + $0x10] sm:$0xff]
      %v455 = vld [vmem:[%s387 + $0x18] sm:$0xff]
      %v456 = vld [vmem:[%s404] sm:$0xff]
      %v457 = vld [vmem:[%s404 + $0x8] sm:$0xff]
      %v458 = vld [vmem:[%s404 + $0x10] sm:$0xff]
      %v459 = vld [vmem:[%s404 + $0x18] sm:$0xff]
      %p460 = scmp.ne.s32.totalorder %s22, 0
      %s461 = scalar_select %p460, 1, 0
      %s462 = scvt.s32.f32 %s461
      %v463 = vstv %s462
      %v464 = vmul.f32 %v452, %v463
      %v465 = vmul.f32 %v453, %v463
      %v466 = vmul.f32 %v454, %v463
      %v467 = vmul.f32 %v455, %v463
      %p468 = scmp.ne.s32.totalorder %s22, 3
      %s469 = scalar_select %p468, 1, 0
      %s470 = scvt.s32.f32 %s469
      %v471 = vstv %s470
      %v472 = vmul.f32 %v456, %v471
      %v473 = vmul.f32 %v457, %v471
      %v474 = vmul.f32 %v458, %v471
      %v475 = vmul.f32 %v459, %v471
      %vm516 = vcmask 1040384
      %v517 = vrot.slane %v464, 7
      %v518 = vrot.slane %v465, 7
      %v519 = vsel %vm516, %v517, %v518
      %v520 = vrot.slane %v466, 7
      %v521 = vsel %vm516, %v518, %v520
      %v522 = vrot.slane %v467, 7
      %v523 = vsel %vm516, %v520, %v522
      %v524 = vrot.slane %v420, 7
      %v525 = vrot.slane %v421, 7
      %v526 = vsel %vm516, %v524, %v525
      %v527 = vrot.slane %v422, 7
      %v528 = vsel %vm516, %v525, %v527
      %v529 = vrot.slane %v423, 7
      %v530 = vsel %vm516, %v527, %v529
      %v531 = vrot.slane %v424, 7
      %v532 = vrot.slane %v425, 7
      %v533 = vsel %vm516, %v531, %v532
      %v534 = vrot.slane %v426, 7
      %v535 = vsel %vm516, %v532, %v534
      %v536 = vrot.slane %v427, 7
      %v537 = vsel %vm516, %v534, %v536
      %v538 = vrot.slane %v428, 7
      %v539 = vrot.slane %v429, 7
      %v540 = vsel %vm516, %v538, %v539
      %v541 = vrot.slane %v430, 7
      %v542 = vsel %vm516, %v539, %v541
      %v543 = vrot.slane %v431, 7
      %v544 = vsel %vm516, %v541, %v543
      %v545 = vrot.slane %v432, 7
      %v546 = vrot.slane %v433, 7
      %v547 = vsel %vm516, %v545, %v546
      %v548 = vrot.slane %v434, 7
      %v549 = vsel %vm516, %v546, %v548
      %v550 = vrot.slane %v435, 7
      %v551 = vsel %vm516, %v548, %v550
      %v552 = vrot.slane %v436, 7
      %v553 = vrot.slane %v437, 7
      %v554 = vsel %vm516, %v552, %v553
      %v555 = vrot.slane %v438, 7
      %v556 = vsel %vm516, %v553, %v555
      %v557 = vrot.slane %v439, 7
      %v558 = vsel %vm516, %v555, %v557
      %v559 = vrot.slane %v440, 7
      %v560 = vrot.slane %v441, 7
      %v561 = vsel %vm516, %v559, %v560
      %v562 = vrot.slane %v442, 7
      %v563 = vsel %vm516, %v560, %v562
      %v564 = vrot.slane %v443, 7
      %v565 = vsel %vm516, %v562, %v564
      %v566 = vrot.slane %v444, 7
      %v567 = vrot.slane %v445, 7
      %v568 = vsel %vm516, %v566, %v567
      %v569 = vrot.slane %v446, 7
      %v570 = vsel %vm516, %v567, %v569
      %v571 = vrot.slane %v447, 7
      %v572 = vsel %vm516, %v569, %v571
      %v573 = vrot.slane %v448, 7
      %v574 = vrot.slane %v449, 7
      %v575 = vsel %vm516, %v573, %v574
      %v576 = vrot.slane %v450, 7
      %v577 = vsel %vm516, %v574, %v576
      %v578 = vrot.slane %v451, 7
      %v579 = vsel %vm516, %v576, %v578
      %v580 = vrot.slane %v472, 7
      %v581 = vrot.slane %v473, 7
      %v582 = vsel %vm516, %v580, %v581
      %v583 = vrot.slane %v474, 7
      %v584 = vsel %vm516, %v581, %v583
      %v585 = vrot.slane %v475, 7
      %v586 = vsel %vm516, %v583, %v585
      %v637 = vsel %vm516, 0.0, %v517
      %v638 = vsel %vm516, 0.0, %v524
      %v639 = vsel %vm516, 0.0, %v531
      %v640 = vsel %vm516, 0.0, %v538
      %v641 = vsel %vm516, 0.0, %v545
      %v642 = vsel %vm516, 0.0, %v552
      %v643 = vsel %vm516, 0.0, %v559
      %v644 = vsel %vm516, 0.0, %v566
      %v645 = vsel %vm516, 0.0, %v573
      %v646 = vsel %vm516, 0.0, %v580
      %v647 = vsel %vm516, %v522, 0.0
      %v648 = vsel %vm516, %v529, 0.0
      %v649 = vsel %vm516, %v536, 0.0
      %v650 = vsel %vm516, %v543, 0.0
      %v651 = vsel %vm516, %v550, 0.0
      %v652 = vsel %vm516, %v557, 0.0
      %v653 = vsel %vm516, %v564, 0.0
      %v654 = vsel %vm516, %v571, 0.0
      %v655 = vsel %vm516, %v578, 0.0
      %v656 = vsel %vm516, %v585, 0.0
      %vm677 = vcmask 1046528
      %v678 = vrot.slane %v637, 1
      %v679 = vrot.slane %v519, 1
      %v680 = vsel %vm677, %v678, %v679
      %v681 = vrot.slane %v638, 1
      %v682 = vrot.slane %v526, 1
      %v683 = vsel %vm677, %v681, %v682
      %v684 = vrot.slane %v639, 1
      %v685 = vrot.slane %v533, 1
      %v686 = vsel %vm677, %v684, %v685
      %v687 = vrot.slane %v521, 1
      %v688 = vsel %vm677, %v679, %v687
      %v689 = vrot.slane %v528, 1
      %v690 = vsel %vm677, %v682, %v689
      %v691 = vrot.slane %v535, 1
      %v692 = vsel %vm677, %v685, %v691
      %v693 = vrot.slane %v523, 1
      %v694 = vsel %vm677, %v687, %v693
      %v695 = vrot.slane %v530, 1
      %v696 = vsel %vm677, %v689, %v695
      %v697 = vrot.slane %v537, 1
      %v698 = vsel %vm677, %v691, %v697
      %v699 = vrot.slane %v647, 1
      %v700 = vsel %vm677, %v693, %v699
      %v701 = vrot.slane %v648, 1
      %v702 = vsel %vm677, %v695, %v701
      %v703 = vrot.slane %v649, 1
      %v704 = vsel %vm677, %v697, %v703
      %v705 = vrot.slane %v640, 1
      %v706 = vrot.slane %v540, 1
      %v707 = vsel %vm677, %v705, %v706
      %v708 = vrot.slane %v542, 1
      %v709 = vsel %vm677, %v706, %v708
      %v710 = vrot.slane %v544, 1
      %v711 = vsel %vm677, %v708, %v710
      %v712 = vrot.slane %v650, 1
      %v713 = vsel %vm677, %v710, %v712
      %v714 = vrot.slane %v641, 1
      %v715 = vrot.slane %v547, 1
      %v716 = vsel %vm677, %v714, %v715
      %v717 = vrot.slane %v549, 1
      %v718 = vsel %vm677, %v715, %v717
      %v719 = vrot.slane %v551, 1
      %v720 = vsel %vm677, %v717, %v719
      %v721 = vrot.slane %v651, 1
      %v722 = vsel %vm677, %v719, %v721
      %v723 = vrot.slane %v642, 1
      %v724 = vrot.slane %v554, 1
      %v725 = vsel %vm677, %v723, %v724
      %v726 = vrot.slane %v556, 1
      %v727 = vsel %vm677, %v724, %v726
      %v728 = vrot.slane %v558, 1
      %v729 = vsel %vm677, %v726, %v728
      %v730 = vrot.slane %v652, 1
      %v731 = vsel %vm677, %v728, %v730
      %v732 = vrot.slane %v643, 1
      %v733 = vrot.slane %v561, 1
      %v734 = vsel %vm677, %v732, %v733
      %v735 = vrot.slane %v563, 1
      %v736 = vsel %vm677, %v733, %v735
      %v737 = vrot.slane %v565, 1
      %v738 = vsel %vm677, %v735, %v737
      %v739 = vrot.slane %v653, 1
      %v740 = vsel %vm677, %v737, %v739
      %v741 = vrot.slane %v644, 1
      %v742 = vrot.slane %v568, 1
      %v743 = vsel %vm677, %v741, %v742
      %v744 = vrot.slane %v570, 1
      %v745 = vsel %vm677, %v742, %v744
      %v746 = vrot.slane %v572, 1
      %v747 = vsel %vm677, %v744, %v746
      %v748 = vrot.slane %v654, 1
      %v749 = vsel %vm677, %v746, %v748
      %v750 = vrot.slane %v645, 1
      %v751 = vrot.slane %v575, 1
      %v752 = vsel %vm677, %v750, %v751
      %v753 = vrot.slane %v577, 1
      %v754 = vsel %vm677, %v751, %v753
      %v755 = vrot.slane %v579, 1
      %v756 = vsel %vm677, %v753, %v755
      %v757 = vrot.slane %v655, 1
      %v758 = vsel %vm677, %v755, %v757
      %v759 = vrot.slane %v646, 1
      %v760 = vrot.slane %v582, 1
      %v761 = vsel %vm677, %v759, %v760
      %v762 = vrot.slane %v584, 1
      %v763 = vsel %vm677, %v760, %v762
      %v764 = vrot.slane %v586, 1
      %v765 = vsel %vm677, %v762, %v764
      %v766 = vrot.slane %v656, 1
      %v767 = vsel %vm677, %v764, %v766
      %vm808 = vcmask 1045504
      %v809 = vrot.slane %v637, 2
      %v810 = vrot.slane %v519, 2
      %v811 = vsel %vm808, %v809, %v810
      %v812 = vrot.slane %v638, 2
      %v813 = vrot.slane %v526, 2
      %v814 = vsel %vm808, %v812, %v813
      %v815 = vrot.slane %v639, 2
      %v816 = vrot.slane %v533, 2
      %v817 = vsel %vm808, %v815, %v816
      %v818 = vrot.slane %v521, 2
      %v819 = vsel %vm808, %v810, %v818
      %v820 = vrot.slane %v528, 2
      %v821 = vsel %vm808, %v813, %v820
      %v822 = vrot.slane %v535, 2
      %v823 = vsel %vm808, %v816, %v822
      %v824 = vrot.slane %v523, 2
      %v825 = vsel %vm808, %v818, %v824
      %v826 = vrot.slane %v530, 2
      %v827 = vsel %vm808, %v820, %v826
      %v828 = vrot.slane %v537, 2
      %v829 = vsel %vm808, %v822, %v828
      %v830 = vrot.slane %v647, 2
      %v831 = vsel %vm808, %v824, %v830
      %v832 = vrot.slane %v648, 2
      %v833 = vsel %vm808, %v826, %v832
      %v834 = vrot.slane %v649, 2
      %v835 = vsel %vm808, %v828, %v834
      %v836 = vrot.slane %v640, 2
      %v837 = vrot.slane %v540, 2
      %v838 = vsel %vm808, %v836, %v837
      %v839 = vrot.slane %v542, 2
      %v840 = vsel %vm808, %v837, %v839
      %v841 = vrot.slane %v544, 2
      %v842 = vsel %vm808, %v839, %v841
      %v843 = vrot.slane %v650, 2
      %v844 = vsel %vm808, %v841, %v843
      %v845 = vrot.slane %v641, 2
      %v846 = vrot.slane %v547, 2
      %v847 = vsel %vm808, %v845, %v846
      %v848 = vrot.slane %v549, 2
      %v849 = vsel %vm808, %v846, %v848
      %v850 = vrot.slane %v551, 2
      %v851 = vsel %vm808, %v848, %v850
      %v852 = vrot.slane %v651, 2
      %v853 = vsel %vm808, %v850, %v852
      %v854 = vrot.slane %v642, 2
      %v855 = vrot.slane %v554, 2
      %v856 = vsel %vm808, %v854, %v855
      %v857 = vrot.slane %v556, 2
      %v858 = vsel %vm808, %v855, %v857
      %v859 = vrot.slane %v558, 2
      %v860 = vsel %vm808, %v857, %v859
      %v861 = vrot.slane %v652, 2
      %v862 = vsel %vm808, %v859, %v861
      %v863 = vrot.slane %v643, 2
      %v864 = vrot.slane %v561, 2
      %v865 = vsel %vm808, %v863, %v864
      %v866 = vrot.slane %v563, 2
      %v867 = vsel %vm808, %v864, %v866
      %v868 = vrot.slane %v565, 2
      %v869 = vsel %vm808, %v866, %v868
      %v870 = vrot.slane %v653, 2
      %v871 = vsel %vm808, %v868, %v870
      %v872 = vrot.slane %v644, 2
      %v873 = vrot.slane %v568, 2
      %v874 = vsel %vm808, %v872, %v873
      %v875 = vrot.slane %v570, 2
      %v876 = vsel %vm808, %v873, %v875
      %v877 = vrot.slane %v572, 2
      %v878 = vsel %vm808, %v875, %v877
      %v879 = vrot.slane %v654, 2
      %v880 = vsel %vm808, %v877, %v879
      %v881 = vrot.slane %v645, 2
      %v882 = vrot.slane %v575, 2
      %v883 = vsel %vm808, %v881, %v882
      %v884 = vrot.slane %v577, 2
      %v885 = vsel %vm808, %v882, %v884
      %v886 = vrot.slane %v579, 2
      %v887 = vsel %vm808, %v884, %v886
      %v888 = vrot.slane %v655, 2
      %v889 = vsel %vm808, %v886, %v888
      %v890 = vrot.slane %v646, 2
      %v891 = vrot.slane %v582, 2
      %v892 = vsel %vm808, %v890, %v891
      %v893 = vrot.slane %v584, 2
      %v894 = vsel %vm808, %v891, %v893
      %v895 = vrot.slane %v586, 2
      %v896 = vsel %vm808, %v893, %v895
      %v897 = vrot.slane %v656, 2
      %v898 = vsel %vm808, %v895, %v897
      %v939 = vld [vmem:[%s3] sm:$0xff]
      %v940 = vld [vmem:[%s3 + $0x8] sm:$0xff]
      %v941 = vld [vmem:[%s3 + $0x10] sm:$0xff]
      %v942 = vld [vmem:[%s3 + $0x18] sm:$0xff]
      %v943 = vld [vmem:[%s3 + $0x20] sm:$0xff]
      %v944 = vld [vmem:[%s3 + $0x28] sm:$0xff]
      %v945 = vld [vmem:[%s3 + $0x30] sm:$0xff]
      %v946 = vld [vmem:[%s3 + $0x38] sm:$0xff]
      %v947 = vld [vmem:[%s3 + $0x40] sm:$0xff]
      %v948 = vld [vmem:[%s3 + $0x48] sm:$0xff]
      %v949 = vld [vmem:[%s3 + $0x50] sm:$0xff]
      %v950 = vld [vmem:[%s3 + $0x58] sm:$0xff]
      %v951 = vld [vmem:[%s3 + $0x60] sm:$0xff]
      %v952 = vld [vmem:[%s3 + $0x68] sm:$0xff]
      %v953 = vld [vmem:[%s3 + $0x70] sm:$0xff]
      %v954 = vld [vmem:[%s3 + $0x78] sm:$0xff]
      %v955 = vld [vmem:[%s3 + $0x80] sm:$0xff]
      %v956 = vld [vmem:[%s3 + $0x88] sm:$0xff]
      %v957 = vld [vmem:[%s3 + $0x90] sm:$0xff]
      %v958 = vld [vmem:[%s3 + $0x98] sm:$0xff]
      %v959 = vld [vmem:[%s3 + $0xa0] sm:$0xff]
      %v960 = vld [vmem:[%s3 + $0xa8] sm:$0xff]
      %v961 = vld [vmem:[%s3 + $0xb0] sm:$0xff]
      %v962 = vld [vmem:[%s3 + $0xb8] sm:$0xff]
      %v963 = vld [vmem:[%s3 + $0xc0] sm:$0xff]
      %v964 = vld [vmem:[%s3 + $0xc8] sm:$0xff]
      %v965 = vld [vmem:[%s3 + $0xd0] sm:$0xff]
      %v966 = vld [vmem:[%s3 + $0xd8] sm:$0xff]
      %v967 = vld [vmem:[%s3 + $0xe0] sm:$0xff]
      %v968 = vld [vmem:[%s3 + $0xe8] sm:$0xff]
      %v969 = vld [vmem:[%s3 + $0xf0] sm:$0xff]
      %v970 = vld [vmem:[%s3 + $0xf8] sm:$0xff]
      %v971 = vld [vmem:[%s3 + $0x100] sm:$0xff]
      %v972 = vld [vmem:[%s3 + $0x108] sm:$0xff]
      %v973 = vld [vmem:[%s3 + $0x110] sm:$0xff]
      %v974 = vld [vmem:[%s3 + $0x118] sm:$0xff]
      %v975 = vld [vmem:[%s3 + $0x120] sm:$0xff]
      %v976 = vld [vmem:[%s3 + $0x128] sm:$0xff]
      %v977 = vld [vmem:[%s3 + $0x130] sm:$0xff]
      %v978 = vld [vmem:[%s3 + $0x138] sm:$0xff]
      %v979 = vld [vmem:[%s3 + $0x140] sm:$0xff]
      %v980 = vld [vmem:[%s3 + $0x148] sm:$0xff]
      %v981 = vld [vmem:[%s3 + $0x150] sm:$0xff]
      %v982 = vld [vmem:[%s3 + $0x158] sm:$0xff]
      %v983 = vld [vmem:[%s3 + $0x160] sm:$0xff]
      %v984 = vld [vmem:[%s3 + $0x168] sm:$0xff]
      %v985 = vld [vmem:[%s3 + $0x170] sm:$0xff]
      %v986 = vld [vmem:[%s3 + $0x178] sm:$0xff]
      %v987 = vld [vmem:[%s3 + $0x180] sm:$0xff]
      %v988 = vld [vmem:[%s3 + $0x188] sm:$0xff]
      %v989 = vld [vmem:[%s3 + $0x190] sm:$0xff]
      %v990 = vld [vmem:[%s3 + $0x198] sm:$0xff]
      %v991 = vld [vmem:[%s3 + $0x1a0] sm:$0xff]
      %v992 = vld [vmem:[%s3 + $0x1a8] sm:$0xff]
      %v993 = vld [vmem:[%s3 + $0x1b0] sm:$0xff]
      %v994 = vld [vmem:[%s3 + $0x1b8] sm:$0xff]
      %v995 = vld [vmem:[%s3 + $0x1c0] sm:$0xff]
      %v996 = vld [vmem:[%s3 + $0x1c8] sm:$0xff]
      %v997 = vld [vmem:[%s3 + $0x1d0] sm:$0xff]
      %v998 = vld [vmem:[%s3 + $0x1d8] sm:$0xff]
      %v999 = vld [vmem:[%s3 + $0x1e0] sm:$0xff]
      %v1000 = vld [vmem:[%s3 + $0x1e8] sm:$0xff]
      %v1001 = vld [vmem:[%s3 + $0x1f0] sm:$0xff]
      %v1002 = vld [vmem:[%s3 + $0x1f8] sm:$0xff]
      %v1003 = vld [vmem:[%s3 + $0x200] sm:$0xff]
      %v1004 = vld [vmem:[%s3 + $0x208] sm:$0xff]
      %v1005 = vld [vmem:[%s3 + $0x210] sm:$0xff]
      %v1006 = vld [vmem:[%s3 + $0x218] sm:$0xff]
      %v1007 = vld [vmem:[%s3 + $0x220] sm:$0xff]
      %v1008 = vld [vmem:[%s3 + $0x228] sm:$0xff]
      %v1009 = vld [vmem:[%s3 + $0x230] sm:$0xff]
      %v1010 = vld [vmem:[%s3 + $0x238] sm:$0xff]
      %v1011 = vld [vmem:[%s3 + $0x240] sm:$0xff]
      %v1012 = vld [vmem:[%s3 + $0x248] sm:$0xff]
      %v1013 = vld [vmem:[%s3 + $0x250] sm:$0xff]
      %v1014 = vld [vmem:[%s3 + $0x258] sm:$0xff]
      %v1015 = vld [vmem:[%s3 + $0x260] sm:$0xff]
      %v1016 = vld [vmem:[%s3 + $0x268] sm:$0xff]
      %v1017 = vld [vmem:[%s3 + $0x270] sm:$0xff]
      %v1018 = vld [vmem:[%s3 + $0x278] sm:$0xff]
      %v1019 = vld [vmem:[%s3 + $0x280] sm:$0xff]
      %v1020 = vld [vmem:[%s3 + $0x288] sm:$0xff]
      %v1021 = vld [vmem:[%s3 + $0x290] sm:$0xff]
      %v1022 = vld [vmem:[%s3 + $0x298] sm:$0xff]
      %v1023 = vld [vmem:[%s3 + $0x2a0] sm:$0xff]
      %v1024 = vld [vmem:[%s3 + $0x2a8] sm:$0xff]
      %v1025 = vld [vmem:[%s3 + $0x2b0] sm:$0xff]
      %v1026 = vld [vmem:[%s3 + $0x2b8] sm:$0xff]
      %v1027 = vld [vmem:[%s3 + $0x2c0] sm:$0xff]
      %v1028 = vld [vmem:[%s3 + $0x2c8] sm:$0xff]
      %v1029 = vld [vmem:[%s3 + $0x2d0] sm:$0xff]
      %v1030 = vld [vmem:[%s3 + $0x2d8] sm:$0xff]
      %v1031 = vld [vmem:[%s3 + $0x2e0] sm:$0xff]
      %v1032 = vld [vmem:[%s3 + $0x2e8] sm:$0xff]
      %v1033 = vld [vmem:[%s3 + $0x2f0] sm:$0xff]
      %v1034 = vld [vmem:[%s3 + $0x2f8] sm:$0xff]
      %v1035 = vld [vmem:[%s3 + $0x300] sm:$0xff]
      %v1036 = vld [vmem:[%s3 + $0x308] sm:$0xff]
      %v1037 = vld [vmem:[%s3 + $0x310] sm:$0xff]
      %v1038 = vld [vmem:[%s3 + $0x318] sm:$0xff]
      %v1039 = vld [vmem:[%s3 + $0x320] sm:$0xff]
      %v1040 = vld [vmem:[%s3 + $0x328] sm:$0xff]
      %v1041 = vld [vmem:[%s3 + $0x330] sm:$0xff]
      %v1042 = vld [vmem:[%s3 + $0x338] sm:$0xff]
      %v1043 = vld [vmem:[%s3 + $0x340] sm:$0xff]
      %v1044 = vld [vmem:[%s3 + $0x348] sm:$0xff]
      %v1045 = vld [vmem:[%s3 + $0x350] sm:$0xff]
      %v1046 = vld [vmem:[%s3 + $0x358] sm:$0xff]
      %v1047 = vld [vmem:[%s3 + $0x360] sm:$0xff]
      %v1048 = vld [vmem:[%s3 + $0x368] sm:$0xff]
      %v1049 = vld [vmem:[%s3 + $0x370] sm:$0xff]
      %v1050 = vld [vmem:[%s3 + $0x378] sm:$0xff]
      %v1051 = vld [vmem:[%s3 + $0x380] sm:$0xff]
      %v1052 = vld [vmem:[%s3 + $0x388] sm:$0xff]
      %v1053 = vld [vmem:[%s3 + $0x390] sm:$0xff]
      %v1054 = vld [vmem:[%s3 + $0x398] sm:$0xff]
      %v1055 = vld [vmem:[%s3 + $0x3a0] sm:$0xff]
      %v1056 = vld [vmem:[%s3 + $0x3a8] sm:$0xff]
      %v1057 = vld [vmem:[%s3 + $0x3b0] sm:$0xff]
      %v1058 = vld [vmem:[%s3 + $0x3b8] sm:$0xff]
      %v1059 = vld [vmem:[%s3 + $0x3c0] sm:$0xff]
      %v1060 = vld [vmem:[%s3 + $0x3c8] sm:$0xff]
      %v1061 = vld [vmem:[%s3 + $0x3d0] sm:$0xff]
      %v1062 = vld [vmem:[%s3 + $0x3d8] sm:$0xff]
      %v1063 = vld [vmem:[%s3 + $0x3e0] sm:$0xff]
      %v1064 = vld [vmem:[%s3 + $0x3e8] sm:$0xff]
      %v1065 = vld [vmem:[%s3 + $0x3f0] sm:$0xff]
      %v1066 = vld [vmem:[%s3 + $0x3f8] sm:$0xff]
      %v1067 = vld [vmem:[%s3 + $0x400] sm:$0xff]
      %v1068 = vld [vmem:[%s3 + $0x408] sm:$0xff]
      %v1069 = vld [vmem:[%s3 + $0x410] sm:$0xff]
      %v1070 = vld [vmem:[%s3 + $0x418] sm:$0xff]
      %v1071 = vld [vmem:[%s3 + $0x420] sm:$0xff]
      %v1072 = vld [vmem:[%s3 + $0x428] sm:$0xff]
      %v1073 = vld [vmem:[%s3 + $0x430] sm:$0xff]
      %v1074 = vld [vmem:[%s3 + $0x438] sm:$0xff]
      %v1075 = vld [vmem:[%s3 + $0x440] sm:$0xff]
      %v1076 = vld [vmem:[%s3 + $0x448] sm:$0xff]
      %v1077 = vld [vmem:[%s3 + $0x450] sm:$0xff]
      %v1078 = vld [vmem:[%s3 + $0x458] sm:$0xff]
      %v1079 = vld [vmem:[%s3 + $0x460] sm:$0xff]
      %v1080 = vld [vmem:[%s3 + $0x468] sm:$0xff]
      %v1081 = vld [vmem:[%s3 + $0x470] sm:$0xff]
      %v1082 = vld [vmem:[%s3 + $0x478] sm:$0xff]
      %1083 = vmatprep.subr.mxu0 0.0
      %1084 = vmatpush1.msra.mxu0 %v939
      %1085 = vmatprep.subr.mxu0 0.0
      %1086 = vmatpush1.msra.mxu0 %v940
      %1087 = vmatprep.subr.mxu0 0.0
      %1088 = vmatpush1.msra.mxu0 %v941
      %1089 = vmatprep.subr.mxu0 0.0
      %1090 = vmatpush1.msra.mxu0 %v942
      %1091 = vmatprep.subr.mxu0 0.0
      %1092 = vmatpush1.msra.mxu0 %v943
      %1093 = vmatprep.subr.mxu0 0.0
      %1094 = vmatpush1.msra.mxu0 %v944
      %1095 = vmatprep.subr.mxu0 0.0
      %1096 = vmatpush1.msra.mxu0 %v945
      %1097 = vmatprep.subr.mxu0 0.0
      %1098 = vmatpush1.msra.mxu0 %v946
      %1099 = vmatprep.subr.mxu0 0.0
      %1100 = vmatpush1.msra.mxu0 %v947
      %1101 = vmatprep.subr.mxu0 0.0
      %1102 = vmatpush1.msra.mxu0 %v948
      %1103 = vmatprep.subr.mxu0 0.0
      %1104 = vmatpush1.msra.mxu0 %v949
      %1105 = vmatprep.subr.mxu0 0.0
      %1106 = vmatpush1.msra.mxu0 %v950
      %1107 = vmatprep.subr.mxu0 0.0
      %1108 = vmatpush1.msra.mxu0 %v951
      %1109 = vmatprep.subr.mxu0 0.0
      %1110 = vmatpush1.msra.mxu0 %v952
      %1111 = vmatprep.subr.mxu0 0.0
      %1112 = vmatpush1.msra.mxu0 %v953
      %1113 = vmatprep.subr.mxu0 0.0
      %1114 = vmatpush1.msra.mxu0 %v954
      %1115 = vmatprep.subr.mxu0 0.0
      %1116 = vmatpush1.msra.mxu0 %v955
      %1117 = vmatprep.subr.mxu0 0.0
      %1118 = vmatpush1.msra.mxu0 %v956
      %1119 = vmatprep.subr.mxu0 0.0
      %1120 = vmatpush1.msra.mxu0 %v957
      %1121 = vmatprep.subr.mxu0 0.0
      %1122 = vmatpush1.msra.mxu0 %v958
      %1123 = vmatprep.subr.mxu0 0.0
      %1124 = vmatpush1.msra.mxu0 %v959
      %1125 = vmatprep.subr.mxu0 0.0
      %1126 = vmatpush1.msra.mxu0 %v960
      %1127 = vmatprep.subr.mxu0 0.0
      %1128 = vmatpush1.msra.mxu0 %v961
      %1129 = vmatprep.subr.mxu0 0.0
      %1130 = vmatpush1.msra.mxu0 %v962
      %1131 = vmatprep.subr.mxu0 0.0
      %1132 = vmatpush1.msra.mxu0 %v963
      %1133 = vmatprep.subr.mxu0 0.0
      %1134 = vmatpush1.msra.mxu0 %v964
      %1135 = vmatprep.subr.mxu0 0.0
      %1136 = vmatpush1.msra.mxu0 %v965
      %1137 = vmatprep.subr.mxu0 0.0
      %1138 = vmatpush1.msra.mxu0 %v966
      %1139 = vmatprep.subr.mxu0 0.0
      %1140 = vmatpush1.msra.mxu0 %v967
      %1141 = vmatprep.subr.mxu0 0.0
      %1142 = vmatpush1.msra.mxu0 %v968
      %1143 = vmatprep.subr.mxu0 0.0
      %1144 = vmatpush1.msra.mxu0 %v969
      %1145 = vmatprep.subr.mxu0 0.0
      %1146 = vmatpush1.msra.mxu0 %v970
      %1147 = vmatprep.mubr.f32.mxu0 %v638
      %1148 = vmatmul.mubr.f32.gmra.mrb[0].mxu0 %v637
      %v1149 = vpop.f32.mrb[0].mxu0
      %v1150 = vadd.f32 0.0, %v1149
      %v1151 = vpop.f32.mrb[0].mxu0
      %1152 = vmatprep.mubr.f32.mxu0 %v526
      %1153 = vmatmul.mubr.f32.gmra.mrb[0].mxu0 %v519
      %v1154 = vpop.f32.mrb[0].mxu0
      %v1155 = vadd.f32 0.0, %v1154
      %v1156 = vpop.f32.mrb[0].mxu0
      %1157 = vmatprep.mubr.f32.mxu0 %v528
      %1158 = vmatmul.mubr.f32.gmra.mrb[0].mxu0 %v521
      %v1159 = vpop.f32.mrb[0].mxu0
      %v1160 = vadd.f32 0.0, %v1159
      %v1161 = vpop.f32.mrb[0].mxu0
      %1162 = vmatprep.mubr.f32.mxu0 %v530
      %1163 = vmatmul.mubr.f32.gmra.mrb[0].mxu0 %v523
      %v1164 = vpop.f32.mrb[0].mxu0
      %v1165 = vadd.f32 0.0, %v1164
      %v1166 = vpop.f32.mrb[0].mxu0
      %1167 = vmatprep.mubr.f32.mxu0 %v639
      %1168 = vmatmul.mubr.f32.gmra.mrb[0].mxu0 %v638
      %v1169 = vpop.f32.mrb[0].mxu0
      %v1170 = vadd.f32 0.0, %v1169
      %v1171 = vpop.f32.mrb[0].mxu0
      %1172 = vmatprep.mubr.f32.mxu0 %v533
      %1173 = vmatmul.mubr.f32.gmra.mrb[0].mxu0 %v526
      %v1174 = vpop.f32.mrb[0].mxu0
      %v1175 = vadd.f32 0.0, %v1174
      %v1176 = vpop.f32.mrb[0].mxu0
      %1177 = vmatprep.mubr.f32.mxu0 %v535
      %1178 = vmatmul.mubr.f32.gmra.mrb[0].mxu0 %v528
      %v1179 = vpop.f32.mrb[0].mxu0
      %v1180 = vadd.f32 0.0, %v1179
      %v1181 = vpop.f32.mrb[0].mxu0
      %1182 = vmatprep.mubr.f32.mxu0 %v537
      %1183 = vmatmul.mubr.f32.gmra.mrb[0].mxu0 %v530
      %v1184 = vpop.f32.mrb[0].mxu0
      %v1185 = vadd.f32 0.0, %v1184
      %v1186 = vpop.f32.mrb[0].mxu0
      %1187 = vmatprep.mubr.f32.mxu0 %v640
      %1188 = vmatmul.mubr.f32.gmra.mrb[0].mxu0 %v639
      %v1189 = vpop.f32.mrb[0].mxu0
      %v1190 = vadd.f32 0.0, %v1189
      %v1191 = vpop.f32.mrb[0].mxu0
      %1192 = vmatprep.mubr.f32.mxu0 %v540
      %1193 = vmatmul.mubr.f32.gmra.mrb[0].mxu0 %v533
      %v1194 = vpop.f32.mrb[0].mxu0
      %v1195 = vadd.f32 0.0, %v1194
      %v1196 = vpop.f32.mrb[0].mxu0
      %1197 = vmatprep.mubr.f32.mxu0 %v542
      %1198 = vmatmul.mubr.f32.gmra.mrb[0].mxu0 %v535
      %v1199 = vpop.f32.mrb[0].mxu0
      %v1200 = vadd.f32 0.0, %v1199
      %v1201 = vpop.f32.mrb[0].mxu0
      %1202 = vmatprep.mubr.f32.mxu0 %v544
      %1203 = vmatmul.mubr.f32.gmra.mrb[0].mxu0 %v537
      %v1204 = vpop.f32.mrb[0].mxu0
      %v1205 = vadd.f32 0.0, %v1204
      %v1206 = vpop.f32.mrb[0].mxu0
      %1207 = vmatprep.mubr.f32.mxu0 %v641
      %1208 = vmatmul.mubr.f32.gmra.mrb[0].mxu0 %v640
      %v1209 = vpop.f32.mrb[0].mxu0
      %v1210 = vadd.f32 0.0, %v1209
      %v1211 = vpop.f32.mrb[0].mxu0
      %1212 = vmatprep.mubr.f32.mxu0 %v547
      %1213 = vmatmul.mubr.f32.gmra.mrb[0].mxu0 %v540
      %v1214 = vpop.f32.mrb[0].mxu0
      %v1215 = vadd.f32 0.0, %v1214
      %v1216 = vpop.f32.mrb[0].mxu0
      %1217 = vmatprep.mubr.f32.mxu0 %v549
      %1218 = vmatmul.mubr.f32.gmra.mrb[0].mxu0 %v542
      %v1219 = vpop.f32.mrb[0].mxu0
      %v1220 = vadd.f32 0.0, %v1219
      %v1221 = vpop.f32.mrb[0].mxu0
      %1222 = vmatprep.mubr.f32.mxu0 %v551
      %1223 = vmatmul.mubr.f32.gmra.mrb[0].mxu0 %v544
      %v1224 = vpop.f32.mrb[0].mxu0
      %v1225 = vadd.f32 0.0, %v1224
      %v1226 = vpop.f32.mrb[0].mxu0
      %1227 = vmatprep.mubr.f32.mxu0 %v642
      %1228 = vmatmul.mubr.f32.gmra.mrb[0].mxu0 %v641
      %v1229 = vpop.f32.mrb[0].mxu0
      %v1230 = vadd.f32 0.0, %v1229
      %v1231 = vpop.f32.mrb[0].mxu0
      %1232 = vmatprep.mubr.f32.mxu0 %v554
      %1233 = vmatmul.mubr.f32.gmra.mrb[0].mxu0 %v547
      %v1234 = vpop.f32.mrb[0].mxu0
      %v1235 = vadd.f32 0.0, %v1234
      %v1236 = vpop.f32.mrb[0].mxu0
      %1237 = vmatprep.mubr.f32.mxu0 %v556
      %1238 = vmatmul.mubr.f32.gmra.mrb[0].mxu0 %v549
      %v1239 = vpop.f32.mrb[0].mxu0
      %v1240 = vadd.f32 0.0, %v1239
      %v1241 = vpop.f32.mrb[0].mxu0
      %1242 = vmatprep.mubr.f32.mxu0 %v558
      %1243 = vmatmul.mubr.f32.gmra.mrb[0].mxu0 %v551
      %v1244 = vpop.f32.mrb[0].mxu0
      %v1245 = vadd.f32 0.0, %v1244
      %v1246 = vpop.f32.mrb[0].mxu0
      %1247 = vmatprep.mubr.f32.mxu0 %v643
      %1248 = vmatmul.mubr.f32.gmra.mrb[0].mxu0 %v642
      %v1249 = vpop.f32.mrb[0].mxu0
      %v1250 = vadd.f32 0.0, %v1249
      %v1251 = vpop.f32.mrb[0].mxu0
      %1252 = vmatprep.mubr.f32.mxu0 %v561
      %1253 = vmatmul.mubr.f32.gmra.mrb[0].mxu0 %v554
      %v1254 = vpop.f32.mrb[0].mxu0
      %v1255 = vadd.f32 0.0, %v1254
      %v1256 = vpop.f32.mrb[0].mxu0
      %1257 = vmatprep.mubr.f32.mxu0 %v563
      %1258 = vmatmul.mubr.f32.gmra.mrb[0].mxu0 %v556
      %v1259 = vpop.f32.mrb[0].mxu0
      %v1260 = vadd.f32 0.0, %v1259
      %v1261 = vpop.f32.mrb[0].mxu0
      %1262 = vmatprep.mubr.f32.mxu0 %v565
      %1263 = vmatmul.mubr.f32.gmra.mrb[0].mxu0 %v558
      %v1264 = vpop.f32.mrb[0].mxu0
      %v1265 = vadd.f32 0.0, %v1264
      %v1266 = vpop.f32.mrb[0].mxu0
      %1267 = vmatprep.mubr.f32.mxu0 %v644
      %1268 = vmatmul.mubr.f32.gmra.mrb[0].mxu0 %v643
      %v1269 = vpop.f32.mrb[0].mxu0
      %v1270 = vadd.f32 0.0, %v1269
      %v1271 = vpop.f32.mrb[0].mxu0
      %1272 = vmatprep.mubr.f32.mxu0 %v568
      %1273 = vmatmul.mubr.f32.gmra.mrb[0].mxu0 %v561
      %v1274 = vpop.f32.mrb[0].mxu0
      %v1275 = vadd.f32 0.0, %v1274
      %v1276 = vpop.f32.mrb[0].mxu0
      %1277 = vmatprep.mubr.f32.mxu0 %v570
      %1278 = vmatmul.mubr.f32.gmra.mrb[0].mxu0 %v563
      %v1279 = vpop.f32.mrb[0].mxu0
      %v1280 = vadd.f32 0.0, %v1279
      %v1281 = vpop.f32.mrb[0].mxu0
      %1282 = vmatprep.mubr.f32.mxu0 %v572
      %1283 = vmatmul.mubr.f32.gmra.mrb[0].mxu0 %v565
      %v1284 = vpop.f32.mrb[0].mxu0
      %v1285 = vadd.f32 0.0, %v1284
      %v1286 = vpop.f32.mrb[0].mxu0
      %1287 = vmatprep.mubr.f32.mxu0 %v645
      %1288 = vmatmul.mubr.f32.gmra.mrb[0].mxu0 %v644
      %v1289 = vpop.f32.mrb[0].mxu0
      %v1290 = vadd.f32 0.0, %v1289
      %v1291 = vpop.f32.mrb[0].mxu0
      %1292 = vmatprep.mubr.f32.mxu0 %v575
      %1293 = vmatmul.mubr.f32.gmra.mrb[0].mxu0 %v568
      %v1294 = vpop.f32.mrb[0].mxu0
      %v1295 = vadd.f32 0.0, %v1294
      %v1296 = vpop.f32.mrb[0].mxu0
      %1297 = vmatprep.mubr.f32.mxu0 %v577
      %1298 = vmatmul.mubr.f32.gmra.mrb[0].mxu0 %v570
      %v1299 = vpop.f32.mrb[0].mxu0
      %v1300 = vadd.f32 0.0, %v1299
      %v1301 = vpop.f32.mrb[0].mxu0
      %1302 = vmatprep.mubr.f32.mxu0 %v579
      %1303 = vmatmul.mubr.f32.gmra.mrb[0].mxu0 %v572
      %v1304 = vpop.f32.mrb[0].mxu0
      %v1305 = vadd.f32 0.0, %v1304
      %v1306 = vpop.f32.mrb[0].mxu0
      %1307 = vdwg.mxu0
      %1308 = vmatprep.subr.mxu0 0.0
      %1309 = vmatpush1.msra.mxu0 %v971
      %1310 = vmatprep.subr.mxu0 0.0
      %1311 = vmatpush1.msra.mxu0 %v972
      %1312 = vmatprep.subr.mxu0 0.0
      %1313 = vmatpush1.msra.mxu0 %v973
      %1314 = vmatprep.subr.mxu0 0.0
      %1315 = vmatpush1.msra.mxu0 %v974
      %1316 = vmatprep.subr.mxu0 0.0
      %1317 = vmatpush1.msra.mxu0 %v975
      %1318 = vmatprep.subr.mxu0 0.0
      %1319 = vmatpush1.msra.mxu0 %v976
      %1320 = vmatprep.subr.mxu0 0.0
      %1321 = vmatpush1.msra.mxu0 %v977
      %1322 = vmatprep.subr.mxu0 0.0
      %1323 = vmatpush1.msra.mxu0 %v978
      %1324 = vmatprep.subr.mxu0 0.0
      %1325 = vmatpush1.msra.mxu0 %v979
      %1326 = vmatprep.subr.mxu0 0.0
      %1327 = vmatpush1.msra.mxu0 %v980
      %1328 = vmatprep.subr.mxu0 0.0
      %1329 = vmatpush1.msra.mxu0 %v981
      %1330 = vmatprep.subr.mxu0 0.0
      %1331 = vmatpush1.msra.mxu0 %v982
      %1332 = vmatprep.subr.mxu0 0.0
      %1333 = vmatpush1.msra.mxu0 %v983
      %1334 = vmatprep.subr.mxu0 0.0
      %1335 = vmatpush1.msra.mxu0 %v984
      %1336 = vmatprep.subr.mxu0 0.0
      %1337 = vmatpush1.msra.mxu0 %v985
      %1338 = vmatprep.subr.mxu0 0.0
      %1339 = vmatpush1.msra.mxu0 %v986
      %1340 = vmatprep.subr.mxu0 0.0
      %1341 = vmatpush1.msra.mxu0 %v987
      %1342 = vmatprep.subr.mxu0 0.0
      %1343 = vmatpush1.msra.mxu0 %v988
      %1344 = vmatprep.subr.mxu0 0.0
      %1345 = vmatpush1.msra.mxu0 %v989
      %1346 = vmatprep.subr.mxu0 0.0
      %1347 = vmatpush1.msra.mxu0 %v990
      %1348 = vmatprep.subr.mxu0 0.0
      %1349 = vmatpush1.msra.mxu0 %v991
      %1350 = vmatprep.subr.mxu0 0.0
      %1351 = vmatpush1.msra.mxu0 %v992
      %1352 = vmatprep.subr.mxu0 0.0
      %1353 = vmatpush1.msra.mxu0 %v993
      %1354 = vmatprep.subr.mxu0 0.0
      %1355 = vmatpush1.msra.mxu0 %v994
      %1356 = vmatprep.subr.mxu0 0.0
      %1357 = vmatpush1.msra.mxu0 %v995
      %1358 = vmatprep.subr.mxu0 0.0
      %1359 = vmatpush1.msra.mxu0 %v996
      %1360 = vmatprep.subr.mxu0 0.0
      %1361 = vmatpush1.msra.mxu0 %v997
      %1362 = vmatprep.subr.mxu0 0.0
      %1363 = vmatpush1.msra.mxu0 %v998
      %1364 = vmatprep.subr.mxu0 0.0
      %1365 = vmatpush1.msra.mxu0 %v999
      %1366 = vmatprep.subr.mxu0 0.0
      %1367 = vmatpush1.msra.mxu0 %v1000
      %1368 = vmatprep.subr.mxu0 0.0
      %1369 = vmatpush1.msra.mxu0 %v1001
      %1370 = vmatprep.subr.mxu0 0.0
      %1371 = vmatpush1.msra.mxu0 %v1002
      %1372 = vmatprep.mubr.f32.mxu0 %v680
      %1373 = vmatmul.mubr.f32.gmra.mrb[0].mxu0 %v639
      %v1374 = vpop.f32.mrb[0].mxu0
      %v1375 = vadd.f32 %v1150, %v1374
      %v1376 = vpop.f32.mrb[0].mxu0
      %1377 = vmatprep.mubr.f32.mxu0 %v688
      %1378 = vmatmul.mubr.f32.gmra.mrb[0].mxu0 %v533
      %v1379 = vpop.f32.mrb[0].mxu0
      %v1380 = vadd.f32 %v1155, %v1379
      %v1381 = vpop.f32.mrb[0].mxu0
      %1382 = vmatprep.mubr.f32.mxu0 %v694
      %1383 = vmatmul.mubr.f32.gmra.mrb[0].mxu0 %v535
      %v1384 = vpop.f32.mrb[0].mxu0
      %v1385 = vadd.f32 %v1160, %v1384
      %v1386 = vpop.f32.mrb[0].mxu0
      %1387 = vmatprep.mubr.f32.mxu0 %v700
      %1388 = vmatmul.mubr.f32.gmra.mrb[0].mxu0 %v537
      %v1389 = vpop.f32.mrb[0].mxu0
      %v1390 = vadd.f32 %v1165, %v1389
      %v1391 = vpop.f32.mrb[0].mxu0
      %1392 = vmatprep.mubr.f32.mxu0 %v683
      %1393 = vmatmul.mubr.f32.gmra.mrb[0].mxu0 %v640
      %v1394 = vpop.f32.mrb[0].mxu0
      %v1395 = vadd.f32 %v1170, %v1394
      %v1396 = vpop.f32.mrb[0].mxu0
      %1397 = vmatprep.mubr.f32.mxu0 %v690
      %1398 = vmatmul.mubr.f32.gmra.mrb[0].mxu0 %v540
      %v1399 = vpop.f32.mrb[0].mxu0
      %v1400 = vadd.f32 %v1175, %v1399
      %v1401 = vpop.f32.mrb[0].mxu0
      %1402 = vmatprep.mubr.f32.mxu0 %v696
      %1403 = vmatmul.mubr.f32.gmra.mrb[0].mxu0 %v542
      %v1404 = vpop.f32.mrb[0].mxu0
      %v1405 = vadd.f32 %v1180, %v1404
      %v1406 = vpop.f32.mrb[0].mxu0
      %1407 = vmatprep.mubr.f32.mxu0 %v702
      %1408 = vmatmul.mubr.f32.gmra.mrb[0].mxu0 %v544
      %v1409 = vpop.f32.mrb[0].mxu0
      %v1410 = vadd.f32 %v1185, %v1409
      %v1411 = vpop.f32.mrb[0].mxu0
      %1412 = vmatprep.mubr.f32.mxu0 %v686
      %1413 = vmatmul.mubr.f32.gmra.mrb[0].mxu0 %v641
      %v1414 = vpop.f32.mrb[0].mxu0
      %v1415 = vadd.f32 %v1190, %v1414
      %v1416 = vpop.f32.mrb[0].mxu0
      %1417 = vmatprep.mubr.f32.mxu0 %v692
      %1418 = vmatmul.mubr.f32.gmra.mrb[0].mxu0 %v547
      %v1419 = vpop.f32.mrb[0].mxu0
      %v1420 = vadd.f32 %v1195, %v1419
      %v1421 = vpop.f32.mrb[0].mxu0
      %1422 = vmatprep.mubr.f32.mxu0 %v698
      %1423 = vmatmul.mubr.f32.gmra.mrb[0].mxu0 %v549
      %v1424 = vpop.f32.mrb[0].mxu0
      %v1425 = vadd.f32 %v1200, %v1424
      %v1426 = vpop.f32.mrb[0].mxu0
      %1427 = vmatprep.mubr.f32.mxu0 %v704
      %1428 = vmatmul.mubr.f32.gmra.mrb[0].mxu0 %v551
      %v1429 = vpop.f32.mrb[0].mxu0
      %v1430 = vadd.f32 %v1205, %v1429
      %v1431 = vpop.f32.mrb[0].mxu0
      %1432 = vmatprep.mubr.f32.mxu0 %v707
      %1433 = vmatmul.mubr.f32.gmra.mrb[0].mxu0 %v642
      %v1434 = vpop.f32.mrb[0].mxu0
      %v1435 = vadd.f32 %v1210, %v1434
      %v1436 = vpop.f32.mrb[0].mxu0
      %1437 = vmatprep.mubr.f32.mxu0 %v709
      %1438 = vmatmul.mubr.f32.gmra.mrb[0].mxu0 %v554
      %v1439 = vpop.f32.mrb[0].mxu0
      %v1440 = vadd.f32 %v1215, %v1439
      %v1441 = vpop.f32.mrb[0].mxu0
      %1442 = vmatprep.mubr.f32.mxu0 %v711
      %1443 = vmatmul.mubr.f32.gmra.mrb[0].mxu0 %v556
      %v1444 = vpop.f32.mrb[0].mxu0
      %v1445 = vadd.f32 %v1220, %v1444
      %v1446 = vpop.f32.mrb[0].mxu0
      %1447 = vmatprep.mubr.f32.mxu0 %v713
      %1448 = vmatmul.mubr.f32.gmra.mrb[0].mxu0 %v558
      %v1449 = vpop.f32.mrb[0].mxu0
      %v1450 = vadd.f32 %v1225, %v1449
      %v1451 = vpop.f32.mrb[0].mxu0
      %1452 = vmatprep.mubr.f32.mxu0 %v716
      %1453 = vmatmul.mubr.f32.gmra.mrb[0].mxu0 %v643
      %v1454 = vpop.f32.mrb[0].mxu0
      %v1455 = vadd.f32 %v1230, %v1454
      %v1456 = vpop.f32.mrb[0].mxu0
      %1457 = vmatprep.mubr.f32.mxu0 %v718
      %1458 = vmatmul.mubr.f32.gmra.mrb[0].mxu0 %v561
      %v1459 = vpop.f32.mrb[0].mxu0
      %v1460 = vadd.f32 %v1235, %v1459
      %v1461 = vpop.f32.mrb[0].mxu0
      %1462 = vmatprep.mubr.f32.mxu0 %v720
      %1463 = vmatmul.mubr.f32.gmra.mrb[0].mxu0 %v563
      %v1464 = vpop.f32.mrb[0].mxu0
      %v1465 = vadd.f32 %v1240, %v1464
      %v1466 = vpop.f32.mrb[0].mxu0
      %1467 = vmatprep.mubr.f32.mxu0 %v722
      %1468 = vmatmul.mubr.f32.gmra.mrb[0].mxu0 %v565
      %v1469 = vpop.f32.mrb[0].mxu0
      %v1470 = vadd.f32 %v1245, %v1469
      %v1471 = vpop.f32.mrb[0].mxu0
      %1472 = vmatprep.mubr.f32.mxu0 %v725
      %1473 = vmatmul.mubr.f32.gmra.mrb[0].mxu0 %v644
      %v1474 = vpop.f32.mrb[0].mxu0
      %v1475 = vadd.f32 %v1250, %v1474
      %v1476 = vpop.f32.mrb[0].mxu0
      %1477 = vmatprep.mubr.f32.mxu0 %v727
      %1478 = vmatmul.mubr.f32.gmra.mrb[0].mxu0 %v568
      %v1479 = vpop.f32.mrb[0].mxu0
      %v1480 = vadd.f32 %v1255, %v1479
      %v1481 = vpop.f32.mrb[0].mxu0
      %1482 = vmatprep.mubr.f32.mxu0 %v729
      %1483 = vmatmul.mubr.f32.gmra.mrb[0].mxu0 %v570
      %v1484 = vpop.f32.mrb[0].mxu0
      %v1485 = vadd.f32 %v1260, %v1484
      %v1486 = vpop.f32.mrb[0].mxu0
      %1487 = vmatprep.mubr.f32.mxu0 %v731
      %1488 = vmatmul.mubr.f32.gmra.mrb[0].mxu0 %v572
      %v1489 = vpop.f32.mrb[0].mxu0
      %v1490 = vadd.f32 %v1265, %v1489
      %v1491 = vpop.f32.mrb[0].mxu0
      %1492 = vmatprep.mubr.f32.mxu0 %v734
      %1493 = vmatmul.mubr.f32.gmra.mrb[0].mxu0 %v645
      %v1494 = vpop.f32.mrb[0].mxu0
      %v1495 = vadd.f32 %v1270, %v1494
      %v1496 = vpop.f32.mrb[0].mxu0
      %1497 = vmatprep.mubr.f32.mxu0 %v736
      %1498 = vmatmul.mubr.f32.gmra.mrb[0].mxu0 %v575
      %v1499 = vpop.f32.mrb[0].mxu0
      %v1500 = vadd.f32 %v1275, %v1499
      %v1501 = vpop.f32.mrb[0].mxu0
      %1502 = vmatprep.mubr.f32.mxu0 %v738
      %1503 = vmatmul.mubr.f32.gmra.mrb[0].mxu0 %v577
      %v1504 = vpop.f32.mrb[0].mxu0
      %v1505 = vadd.f32 %v1280, %v1504
      %v1506 = vpop.f32.mrb[0].mxu0
      %1507 = vmatprep.mubr.f32.mxu0 %v740
      %1508 = vmatmul.mubr.f32.gmra.mrb[0].mxu0 %v579
      %v1509 = vpop.f32.mrb[0].mxu0
      %v1510 = vadd.f32 %v1285, %v1509
      %v1511 = vpop.f32.mrb[0].mxu0
      %1512 = vmatprep.mubr.f32.mxu0 %v743
      %1513 = vmatmul.mubr.f32.gmra.mrb[0].mxu0 %v646
      %v1514 = vpop.f32.mrb[0].mxu0
      %v1515 = vadd.f32 %v1290, %v1514
      %v1516 = vpop.f32.mrb[0].mxu0
      %1517 = vmatprep.mubr.f32.mxu0 %v745
      %1518 = vmatmul.mubr.f32.gmra.mrb[0].mxu0 %v582
      %v1519 = vpop.f32.mrb[0].mxu0
      %v1520 = vadd.f32 %v1295, %v1519
      %v1521 = vpop.f32.mrb[0].mxu0
      %1522 = vmatprep.mubr.f32.mxu0 %v747
      %1523 = vmatmul.mubr.f32.gmra.mrb[0].mxu0 %v584
      %v1524 = vpop.f32.mrb[0].mxu0
      %v1525 = vadd.f32 %v1300, %v1524
      %v1526 = vpop.f32.mrb[0].mxu0
      %1527 = vmatprep.mubr.f32.mxu0 %v749
      %1528 = vmatmul.mubr.f32.gmra.mrb[0].mxu0 %v586
      %v1529 = vpop.f32.mrb[0].mxu0
      %v1530 = vadd.f32 %v1305, %v1529
      %v1531 = vpop.f32.mrb[0].mxu0
      %1532 = vdwg.mxu0
      %1533 = vmatprep.subr.mxu0 0.0
      %1534 = vmatpush1.msra.mxu0 %v1003
      %1535 = vmatprep.subr.mxu0 0.0
      %1536 = vmatpush1.msra.mxu0 %v1004
      %1537 = vmatprep.subr.mxu0 0.0
      %1538 = vmatpush1.msra.mxu0 %v1005
      %1539 = vmatprep.subr.mxu0 0.0
      %1540 = vmatpush1.msra.mxu0 %v1006
      %1541 = vmatprep.subr.mxu0 0.0
      %1542 = vmatpush1.msra.mxu0 %v1007
      %1543 = vmatprep.subr.mxu0 0.0
      %1544 = vmatpush1.msra.mxu0 %v1008
      %1545 = vmatprep.subr.mxu0 0.0
      %1546 = vmatpush1.msra.mxu0 %v1009
      %1547 = vmatprep.subr.mxu0 0.0
      %1548 = vmatpush1.msra.mxu0 %v1010
      %1549 = vmatprep.subr.mxu0 0.0
      %1550 = vmatpush1.msra.mxu0 %v1011
      %1551 = vmatprep.subr.mxu0 0.0
      %1552 = vmatpush1.msra.mxu0 %v1012
      %1553 = vmatprep.subr.mxu0 0.0
      %1554 = vmatpush1.msra.mxu0 %v1013
      %1555 = vmatprep.subr.mxu0 0.0
      %1556 = vmatpush1.msra.mxu0 %v1014
      %1557 = vmatprep.subr.mxu0 0.0
      %1558 = vmatpush1.msra.mxu0 %v1015
      %1559 = vmatprep.subr.mxu0 0.0
      %1560 = vmatpush1.msra.mxu0 %v1016
      %1561 = vmatprep.subr.mxu0 0.0
      %1562 = vmatpush1.msra.mxu0 %v1017
      %1563 = vmatprep.subr.mxu0 0.0
      %1564 = vmatpush1.msra.mxu0 %v1018
      %1565 = vmatprep.subr.mxu0 0.0
      %1566 = vmatpush1.msra.mxu0 %v1019
      %1567 = vmatprep.subr.mxu0 0.0
      %1568 = vmatpush1.msra.mxu0 %v1020
      %1569 = vmatprep.subr.mxu0 0.0
      %1570 = vmatpush1.msra.mxu0 %v1021
      %1571 = vmatprep.subr.mxu0 0.0
      %1572 = vmatpush1.msra.mxu0 %v1022
      %1573 = vmatprep.subr.mxu0 0.0
      %1574 = vmatpush1.msra.mxu0 %v1023
      %1575 = vmatprep.subr.mxu0 0.0
      %1576 = vmatpush1.msra.mxu0 %v1024
      %1577 = vmatprep.subr.mxu0 0.0
      %1578 = vmatpush1.msra.mxu0 %v1025
      %1579 = vmatprep.subr.mxu0 0.0
      %1580 = vmatpush1.msra.mxu0 %v1026
      %1581 = vmatprep.subr.mxu0 0.0
      %1582 = vmatpush1.msra.mxu0 %v1027
      %1583 = vmatprep.subr.mxu0 0.0
      %1584 = vmatpush1.msra.mxu0 %v1028
      %1585 = vmatprep.subr.mxu0 0.0
      %1586 = vmatpush1.msra.mxu0 %v1029
      %1587 = vmatprep.subr.mxu0 0.0
      %1588 = vmatpush1.msra.mxu0 %v1030
      %1589 = vmatprep.subr.mxu0 0.0
      %1590 = vmatpush1.msra.mxu0 %v1031
      %1591 = vmatprep.subr.mxu0 0.0
      %1592 = vmatpush1.msra.mxu0 %v1032
      %1593 = vmatprep.subr.mxu0 0.0
      %1594 = vmatpush1.msra.mxu0 %v1033
      %1595 = vmatprep.subr.mxu0 0.0
      %1596 = vmatpush1.msra.mxu0 %v1034
      %1597 = vmatprep.mubr.f32.mxu0 %v686
      %1598 = vmatmul.mubr.f32.gmra.mrb[0].mxu0 %v683
      %v1599 = vpop.f32.mrb[0].mxu0
      %v1600 = vadd.f32 %v1375, %v1599
      %v1601 = vpop.f32.mrb[0].mxu0
      %1602 = vmatprep.mubr.f32.mxu0 %v692
      %1603 = vmatmul.mubr.f32.gmra.mrb[0].mxu0 %v690
      %v1604 = vpop.f32.mrb[0].mxu0
      %v1605 = vadd.f32 %v1380, %v1604
      %v1606 = vpop.f32.mrb[0].mxu0
      %1607 = vmatprep.mubr.f32.mxu0 %v698
      %1608 = vmatmul.mubr.f32.gmra.mrb[0].mxu0 %v696
      %v1609 = vpop.f32.mrb[0].mxu0
      %v1610 = vadd.f32 %v1385, %v1609
      %v1611 = vpop.f32.mrb[0].mxu0
      %1612 = vmatprep.mubr.f32.mxu0 %v704
      %1613 = vmatmul.mubr.f32.gmra.mrb[0].mxu0 %v702
      %v1614 = vpop.f32.mrb[0].mxu0
      %v1615 = vadd.f32 %v1390, %v1614
      %v1616 = vpop.f32.mrb[0].mxu0
      %1617 = vmatprep.mubr.f32.mxu0 %v707
      %1618 = vmatmul.mubr.f32.gmra.mrb[0].mxu0 %v686
      %v1619 = vpop.f32.mrb[0].mxu0
      %v1620 = vadd.f32 %v1395, %v1619
      %v1621 = vpop.f32.mrb[0].mxu0
      %1622 = vmatprep.mubr.f32.mxu0 %v709
      %1623 = vmatmul.mubr.f32.gmra.mrb[0].mxu0 %v692
      %v1624 = vpop.f32.mrb[0].mxu0
      %v1625 = vadd.f32 %v1400, %v1624
      %v1626 = vpop.f32.mrb[0].mxu0
      %1627 = vmatprep.mubr.f32.mxu0 %v711
      %1628 = vmatmul.mubr.f32.gmra.mrb[0].mxu0 %v698
      %v1629 = vpop.f32.mrb[0].mxu0
      %v1630 = vadd.f32 %v1405, %v1629
      %v1631 = vpop.f32.mrb[0].mxu0
      %1632 = vmatprep.mubr.f32.mxu0 %v713
      %1633 = vmatmul.mubr.f32.gmra.mrb[0].mxu0 %v704
      %v1634 = vpop.f32.mrb[0].mxu0
      %v1635 = vadd.f32 %v1410, %v1634
      %v1636 = vpop.f32.mrb[0].mxu0
      %1637 = vmatprep.mubr.f32.mxu0 %v716
      %1638 = vmatmul.mubr.f32.gmra.mrb[0].mxu0 %v707
      %v1639 = vpop.f32.mrb[0].mxu0
      %v1640 = vadd.f32 %v1415, %v1639
      %v1641 = vpop.f32.mrb[0].mxu0
      %1642 = vmatprep.mubr.f32.mxu0 %v718
      %1643 = vmatmul.mubr.f32.gmra.mrb[0].mxu0 %v709
      %v1644 = vpop.f32.mrb[0].mxu0
      %v1645 = vadd.f32 %v1420, %v1644
      %v1646 = vpop.f32.mrb[0].mxu0
      %1647 = vmatprep.mubr.f32.mxu0 %v720
      %1648 = vmatmul.mubr.f32.gmra.mrb[0].mxu0 %v711
      %v1649 = vpop.f32.mrb[0].mxu0
      %v1650 = vadd.f32 %v1425, %v1649
      %v1651 = vpop.f32.mrb[0].mxu0
      %1652 = vmatprep.mubr.f32.mxu0 %v722
      %1653 = vmatmul.mubr.f32.gmra.mrb[0].mxu0 %v713
      %v1654 = vpop.f32.mrb[0].mxu0
      %v1655 = vadd.f32 %v1430, %v1654
      %v1656 = vpop.f32.mrb[0].mxu0
      %1657 = vmatprep.mubr.f32.mxu0 %v725
      %1658 = vmatmul.mubr.f32.gmra.mrb[0].mxu0 %v716
      %v1659 = vpop.f32.mrb[0].mxu0
      %v1660 = vadd.f32 %v1435, %v1659
      %v1661 = vpop.f32.mrb[0].mxu0
      %1662 = vmatprep.mubr.f32.mxu0 %v727
      %1663 = vmatmul.mubr.f32.gmra.mrb[0].mxu0 %v718
      %v1664 = vpop.f32.mrb[0].mxu0
      %v1665 = vadd.f32 %v1440, %v1664
      %v1666 = vpop.f32.mrb[0].mxu0
      %1667 = vmatprep.mubr.f32.mxu0 %v729
      %1668 = vmatmul.mubr.f32.gmra.mrb[0].mxu0 %v720
      %v1669 = vpop.f32.mrb[0].mxu0
      %v1670 = vadd.f32 %v1445, %v1669
      %v1671 = vpop.f32.mrb[0].mxu0
      %1672 = vmatprep.mubr.f32.mxu0 %v731
      %1673 = vmatmul.mubr.f32.gmra.mrb[0].mxu0 %v722
      %v1674 = vpop.f32.mrb[0].mxu0
      %v1675 = vadd.f32 %v1450, %v1674
      %v1676 = vpop.f32.mrb[0].mxu0
      %1677 = vmatprep.mubr.f32.mxu0 %v734
      %1678 = vmatmul.mubr.f32.gmra.mrb[0].mxu0 %v725
      %v1679 = vpop.f32.mrb[0].mxu0
      %v1680 = vadd.f32 %v1455, %v1679
      %v1681 = vpop.f32.mrb[0].mxu0
      %1682 = vmatprep.mubr.f32.mxu0 %v736
      %1683 = vmatmul.mubr.f32.gmra.mrb[0].mxu0 %v727
      %v1684 = vpop.f32.mrb[0].mxu0
      %v1685 = vadd.f32 %v1460, %v1684
      %v1686 = vpop.f32.mrb[0].mxu0
      %1687 = vmatprep.mubr.f32.mxu0 %v738
      %1688 = vmatmul.mubr.f32.gmra.mrb[0].mxu0 %v729
      %v1689 = vpop.f32.mrb[0].mxu0
      %v1690 = vadd.f32 %v1465, %v1689
      %v1691 = vpop.f32.mrb[0].mxu0
      %1692 = vmatprep.mubr.f32.mxu0 %v740
      %1693 = vmatmul.mubr.f32.gmra.mrb[0].mxu0 %v731
      %v1694 = vpop.f32.mrb[0].mxu0
      %v1695 = vadd.f32 %v1470, %v1694
      %v1696 = vpop.f32.mrb[0].mxu0
      %1697 = vmatprep.mubr.f32.mxu0 %v743
      %1698 = vmatmul.mubr.f32.gmra.mrb[0].mxu0 %v734
      %v1699 = vpop.f32.mrb[0].mxu0
      %v1700 = vadd.f32 %v1475, %v1699
      %v1701 = vpop.f32.mrb[0].mxu0
      %1702 = vmatprep.mubr.f32.mxu0 %v745
      %1703 = vmatmul.mubr.f32.gmra.mrb[0].mxu0 %v736
      %v1704 = vpop.f32.mrb[0].mxu0
      %v1705 = vadd.f32 %v1480, %v1704
      %v1706 = vpop.f32.mrb[0].mxu0
      %1707 = vmatprep.mubr.f32.mxu0 %v747
      %1708 = vmatmul.mubr.f32.gmra.mrb[0].mxu0 %v738
      %v1709 = vpop.f32.mrb[0].mxu0
      %v1710 = vadd.f32 %v1485, %v1709
      %v1711 = vpop.f32.mrb[0].mxu0
      %1712 = vmatprep.mubr.f32.mxu0 %v749
      %1713 = vmatmul.mubr.f32.gmra.mrb[0].mxu0 %v740
      %v1714 = vpop.f32.mrb[0].mxu0
      %v1715 = vadd.f32 %v1490, %v1714
      %v1716 = vpop.f32.mrb[0].mxu0
      %1717 = vmatprep.mubr.f32.mxu0 %v752
      %1718 = vmatmul.mubr.f32.gmra.mrb[0].mxu0 %v743
      %v1719 = vpop.f32.mrb[0].mxu0
      %v1720 = vadd.f32 %v1495, %v1719
      %v1721 = vpop.f32.mrb[0].mxu0
      %1722 = vmatprep.mubr.f32.mxu0 %v754
      %1723 = vmatmul.mubr.f32.gmra.mrb[0].mxu0 %v745
      %v1724 = vpop.f32.mrb[0].mxu0
      %v1725 = vadd.f32 %v1500, %v1724
      %v1726 = vpop.f32.mrb[0].mxu0
      %1727 = vmatprep.mubr.f32.mxu0 %v756
      %1728 = vmatmul.mubr.f32.gmra.mrb[0].mxu0 %v747
      %v1729 = vpop.f32.mrb[0].mxu0
      %v1730 = vadd.f32 %v1505, %v1729
      %v1731 = vpop.f32.mrb[0].mxu0
      %1732 = vmatprep.mubr.f32.mxu0 %v758
      %1733 = vmatmul.mubr.f32.gmra.mrb[0].mxu0 %v749
      %v1734 = vpop.f32.mrb[0].mxu0
      %v1735 = vadd.f32 %v1510, %v1734
      %v1736 = vpop.f32.mrb[0].mxu0
      %1737 = vmatprep.mubr.f32.mxu0 %v761
      %1738 = vmatmul.mubr.f32.gmra.mrb[0].mxu0 %v752
      %v1739 = vpop.f32.mrb[0].mxu0
      %v1740 = vadd.f32 %v1515, %v1739
      %v1741 = vpop.f32.mrb[0].mxu0
      %1742 = vmatprep.mubr.f32.mxu0 %v763
      %1743 = vmatmul.mubr.f32.gmra.mrb[0].mxu0 %v754
      %v1744 = vpop.f32.mrb[0].mxu0
      %v1745 = vadd.f32 %v1520, %v1744
      %v1746 = vpop.f32.mrb[0].mxu0
      %1747 = vmatprep.mubr.f32.mxu0 %v765
      %1748 = vmatmul.mubr.f32.gmra.mrb[0].mxu0 %v756
      %v1749 = vpop.f32.mrb[0].mxu0
      %v1750 = vadd.f32 %v1525, %v1749
      %v1751 = vpop.f32.mrb[0].mxu0
      %1752 = vmatprep.mubr.f32.mxu0 %v767
      %1753 = vmatmul.mubr.f32.gmra.mrb[0].mxu0 %v758
      %v1754 = vpop.f32.mrb[0].mxu0
      %v1755 = vadd.f32 %v1530, %v1754
      %v1756 = vpop.f32.mrb[0].mxu0
      %1757 = vdwg.mxu0
      %1758 = vmatprep.subr.mxu0 0.0
      %1759 = vmatpush1.msra.mxu0 %v1035
      %1760 = vmatprep.subr.mxu0 0.0
      %1761 = vmatpush1.msra.mxu0 %v1036
      %1762 = vmatprep.subr.mxu0 0.0
      %1763 = vmatpush1.msra.mxu0 %v1037
      %1764 = vmatprep.subr.mxu0 0.0
      %1765 = vmatpush1.msra.mxu0 %v1038
      %1766 = vmatprep.subr.mxu0 0.0
      %1767 = vmatpush1.msra.mxu0 %v1039
      %1768 = vmatprep.subr.mxu0 0.0
      %1769 = vmatpush1.msra.mxu0 %v1040
      %1770 = vmatprep.subr.mxu0 0.0
      %1771 = vmatpush1.msra.mxu0 %v1041
      %1772 = vmatprep.subr.mxu0 0.0
      %1773 = vmatpush1.msra.mxu0 %v1042
      %1774 = vmatprep.subr.mxu0 0.0
      %1775 = vmatpush1.msra.mxu0 %v1043
      %1776 = vmatprep.subr.mxu0 0.0
      %1777 = vmatpush1.msra.mxu0 %v1044
      %1778 = vmatprep.subr.mxu0 0.0
      %1779 = vmatpush1.msra.mxu0 %v1045
      %1780 = vmatprep.subr.mxu0 0.0
      %1781 = vmatpush1.msra.mxu0 %v1046
      %1782 = vmatprep.subr.mxu0 0.0
      %1783 = vmatpush1.msra.mxu0 %v1047
      %1784 = vmatprep.subr.mxu0 0.0
      %1785 = vmatpush1.msra.mxu0 %v1048
      %1786 = vmatprep.subr.mxu0 0.0
      %1787 = vmatpush1.msra.mxu0 %v1049
      %1788 = vmatprep.subr.mxu0 0.0
      %1789 = vmatpush1.msra.mxu0 %v1050
      %1790 = vmatprep.subr.mxu0 0.0
      %1791 = vmatpush1.msra.mxu0 %v1051
      %1792 = vmatprep.subr.mxu0 0.0
      %1793 = vmatpush1.msra.mxu0 %v1052
      %1794 = vmatprep.subr.mxu0 0.0
      %1795 = vmatpush1.msra.mxu0 %v1053
      %1796 = vmatprep.subr.mxu0 0.0
      %1797 = vmatpush1.msra.mxu0 %v1054
      %1798 = vmatprep.subr.mxu0 0.0
      %1799 = vmatpush1.msra.mxu0 %v1055
      %1800 = vmatprep.subr.mxu0 0.0
      %1801 = vmatpush1.msra.mxu0 %v1056
      %1802 = vmatprep.subr.mxu0 0.0
      %1803 = vmatpush1.msra.mxu0 %v1057
      %1804 = vmatprep.subr.mxu0 0.0
      %1805 = vmatpush1.msra.mxu0 %v1058
      %1806 = vmatprep.subr.mxu0 0.0
      %1807 = vmatpush1.msra.mxu0 %v1059
      %1808 = vmatprep.subr.mxu0 0.0
      %1809 = vmatpush1.msra.mxu0 %v1060
      %1810 = vmatprep.subr.mxu0 0.0
      %1811 = vmatpush1.msra.mxu0 %v1061
      %1812 = vmatprep.subr.mxu0 0.0
      %1813 = vmatpush1.msra.mxu0 %v1062
      %1814 = vmatprep.subr.mxu0 0.0
      %1815 = vmatpush1.msra.mxu0 %v1063
      %1816 = vmatprep.subr.mxu0 0.0
      %1817 = vmatpush1.msra.mxu0 %v1064
      %1818 = vmatprep.subr.mxu0 0.0
      %1819 = vmatpush1.msra.mxu0 %v1065
      %1820 = vmatprep.subr.mxu0 0.0
      %1821 = vmatpush1.msra.mxu0 %v1066
      %1822 = vmatprep.mubr.f32.mxu0 %v814
      %1823 = vmatmul.mubr.f32.gmra.mrb[0].mxu0 %v811
      %v1824 = vpop.f32.mrb[0].mxu0
      %v1825 = vadd.f32 %v1600, %v1824
      %v1826 = vpop.f32.mrb[0].mxu0
      %1827 = vmatprep.mubr.f32.mxu0 %v821
      %1828 = vmatmul.mubr.f32.gmra.mrb[0].mxu0 %v819
      %v1829 = vpop.f32.mrb[0].mxu0
      %v1830 = vadd.f32 %v1605, %v1829
      %v1831 = vpop.f32.mrb[0].mxu0
      %1832 = vmatprep.mubr.f32.mxu0 %v827
      %1833 = vmatmul.mubr.f32.gmra.mrb[0].mxu0 %v825
      %v1834 = vpop.f32.mrb[0].mxu0
      %v1835 = vadd.f32 %v1610, %v1834
      %v1836 = vpop.f32.mrb[0].mxu0
      %1837 = vmatprep.mubr.f32.mxu0 %v833
      %1838 = vmatmul.mubr.f32.gmra.mrb[0].mxu0 %v831
      %v1839 = vpop.f32.mrb[0].mxu0
      %v1840 = vadd.f32 %v1615, %v1839
      %v1841 = vpop.f32.mrb[0].mxu0
      %1842 = vmatprep.mubr.f32.mxu0 %v817
      %1843 = vmatmul.mubr.f32.gmra.mrb[0].mxu0 %v814
      %v1844 = vpop.f32.mrb[0].mxu0
      %v1845 = vadd.f32 %v1620, %v1844
      %v1846 = vpop.f32.mrb[0].mxu0
      %1847 = vmatprep.mubr.f32.mxu0 %v823
      %1848 = vmatmul.mubr.f32.gmra.mrb[0].mxu0 %v821
      %v1849 = vpop.f32.mrb[0].mxu0
      %v1850 = vadd.f32 %v1625, %v1849
      %v1851 = vpop.f32.mrb[0].mxu0
      %1852 = vmatprep.mubr.f32.mxu0 %v829
      %1853 = vmatmul.mubr.f32.gmra.mrb[0].mxu0 %v827
      %v1854 = vpop.f32.mrb[0].mxu0
      %v1855 = vadd.f32 %v1630, %v1854
      %v1856 = vpop.f32.mrb[0].mxu0
      %1857 = vmatprep.mubr.f32.mxu0 %v835
      %1858 = vmatmul.mubr.f32.gmra.mrb[0].mxu0 %v833
      %v1859 = vpop.f32.mrb[0].mxu0
      %v1860 = vadd.f32 %v1635, %v1859
      %v1861 = vpop.f32.mrb[0].mxu0
      %1862 = vmatprep.mubr.f32.mxu0 %v838
      %1863 = vmatmul.mubr.f32.gmra.mrb[0].mxu0 %v817
      %v1864 = vpop.f32.mrb[0].mxu0
      %v1865 = vadd.f32 %v1640, %v1864
      %v1866 = vpop.f32.mrb[0].mxu0
      %1867 = vmatprep.mubr.f32.mxu0 %v840
      %1868 = vmatmul.mubr.f32.gmra.mrb[0].mxu0 %v823
      %v1869 = vpop.f32.mrb[0].mxu0
      %v1870 = vadd.f32 %v1645, %v1869
      %v1871 = vpop.f32.mrb[0].mxu0
      %1872 = vmatprep.mubr.f32.mxu0 %v842
      %1873 = vmatmul.mubr.f32.gmra.mrb[0].mxu0 %v829
      %v1874 = vpop.f32.mrb[0].mxu0
      %v1875 = vadd.f32 %v1650, %v1874
      %v1876 = vpop.f32.mrb[0].mxu0
      %1877 = vmatprep.mubr.f32.mxu0 %v844
      %1878 = vmatmul.mubr.f32.gmra.mrb[0].mxu0 %v835
      %v1879 = vpop.f32.mrb[0].mxu0
      %v1880 = vadd.f32 %v1655, %v1879
      %v1881 = vpop.f32.mrb[0].mxu0
      %1882 = vmatprep.mubr.f32.mxu0 %v847
      %1883 = vmatmul.mubr.f32.gmra.mrb[0].mxu0 %v838
      %v1884 = vpop.f32.mrb[0].mxu0
      %v1885 = vadd.f32 %v1660, %v1884
      %v1886 = vpop.f32.mrb[0].mxu0
      %1887 = vmatprep.mubr.f32.mxu0 %v849
      %1888 = vmatmul.mubr.f32.gmra.mrb[0].mxu0 %v840
      %v1889 = vpop.f32.mrb[0].mxu0
      %v1890 = vadd.f32 %v1665, %v1889
      %v1891 = vpop.f32.mrb[0].mxu0
      %1892 = vmatprep.mubr.f32.mxu0 %v851
      %1893 = vmatmul.mubr.f32.gmra.mrb[0].mxu0 %v842
      %v1894 = vpop.f32.mrb[0].mxu0
      %v1895 = vadd.f32 %v1670, %v1894
      %v1896 = vpop.f32.mrb[0].mxu0
      %1897 = vmatprep.mubr.f32.mxu0 %v853
      %1898 = vmatmul.mubr.f32.gmra.mrb[0].mxu0 %v844
      %v1899 = vpop.f32.mrb[0].mxu0
      %v1900 = vadd.f32 %v1675, %v1899
      %v1901 = vpop.f32.mrb[0].mxu0
      %1902 = vmatprep.mubr.f32.mxu0 %v856
      %1903 = vmatmul.mubr.f32.gmra.mrb[0].mxu0 %v847
      %v1904 = vpop.f32.mrb[0].mxu0
      %v1905 = vadd.f32 %v1680, %v1904
      %v1906 = vpop.f32.mrb[0].mxu0
      %1907 = vmatprep.mubr.f32.mxu0 %v858
      %1908 = vmatmul.mubr.f32.gmra.mrb[0].mxu0 %v849
      %v1909 = vpop.f32.mrb[0].mxu0
      %v1910 = vadd.f32 %v1685, %v1909
      %v1911 = vpop.f32.mrb[0].mxu0
      %1912 = vmatprep.mubr.f32.mxu0 %v860
      %1913 = vmatmul.mubr.f32.gmra.mrb[0].mxu0 %v851
      %v1914 = vpop.f32.mrb[0].mxu0
      %v1915 = vadd.f32 %v1690, %v1914
      %v1916 = vpop.f32.mrb[0].mxu0
      %1917 = vmatprep.mubr.f32.mxu0 %v862
      %1918 = vmatmul.mubr.f32.gmra.mrb[0].mxu0 %v853
      %v1919 = vpop.f32.mrb[0].mxu0
      %v1920 = vadd.f32 %v1695, %v1919
      %v1921 = vpop.f32.mrb[0].mxu0
      %1922 = vmatprep.mubr.f32.mxu0 %v865
      %1923 = vmatmul.mubr.f32.gmra.mrb[0].mxu0 %v856
      %v1924 = vpop.f32.mrb[0].mxu0
      %v1925 = vadd.f32 %v1700, %v1924
      %v1926 = vpop.f32.mrb[0].mxu0
      %1927 = vmatprep.mubr.f32.mxu0 %v867
      %1928 = vmatmul.mubr.f32.gmra.mrb[0].mxu0 %v858
      %v1929 = vpop.f32.mrb[0].mxu0
      %v1930 = vadd.f32 %v1705, %v1929
      %v1931 = vpop.f32.mrb[0].mxu0
      %1932 = vmatprep.mubr.f32.mxu0 %v869
      %1933 = vmatmul.mubr.f32.gmra.mrb[0].mxu0 %v860
      %v1934 = vpop.f32.mrb[0].mxu0
      %v1935 = vadd.f32 %v1710, %v1934
      %v1936 = vpop.f32.mrb[0].mxu0
      %1937 = vmatprep.mubr.f32.mxu0 %v871
      %1938 = vmatmul.mubr.f32.gmra.mrb[0].mxu0 %v862
      %v1939 = vpop.f32.mrb[0].mxu0
      %v1940 = vadd.f32 %v1715, %v1939
      %v1941 = vpop.f32.mrb[0].mxu0
      %1942 = vmatprep.mubr.f32.mxu0 %v874
      %1943 = vmatmul.mubr.f32.gmra.mrb[0].mxu0 %v865
      %v1944 = vpop.f32.mrb[0].mxu0
      %v1945 = vadd.f32 %v1720, %v1944
      %v1946 = vpop.f32.mrb[0].mxu0
      %1947 = vmatprep.mubr.f32.mxu0 %v876
      %1948 = vmatmul.mubr.f32.gmra.mrb[0].mxu0 %v867
      %v1949 = vpop.f32.mrb[0].mxu0
      %v1950 = vadd.f32 %v1725, %v1949
      %v1951 = vpop.f32.mrb[0].mxu0
      %1952 = vmatprep.mubr.f32.mxu0 %v878
      %1953 = vmatmul.mubr.f32.gmra.mrb[0].mxu0 %v869
      %v1954 = vpop.f32.mrb[0].mxu0
      %v1955 = vadd.f32 %v1730, %v1954
      %v1956 = vpop.f32.mrb[0].mxu0
      %1957 = vmatprep.mubr.f32.mxu0 %v880
      %1958 = vmatmul.mubr.f32.gmra.mrb[0].mxu0 %v871
      %v1959 = vpop.f32.mrb[0].mxu0
      %v1960 = vadd.f32 %v1735, %v1959
      %v1961 = vpop.f32.mrb[0].mxu0
      %1962 = vmatprep.mubr.f32.mxu0 %v883
      %1963 = vmatmul.mubr.f32.gmra.mrb[0].mxu0 %v874
      %v1964 = vpop.f32.mrb[0].mxu0
      %v1965 = vadd.f32 %v1740, %v1964
      %v1966 = vpop.f32.mrb[0].mxu0
      %1967 = vmatprep.mubr.f32.mxu0 %v885
      %1968 = vmatmul.mubr.f32.gmra.mrb[0].mxu0 %v876
      %v1969 = vpop.f32.mrb[0].mxu0
      %v1970 = vadd.f32 %v1745, %v1969
      %v1971 = vpop.f32.mrb[0].mxu0
      %1972 = vmatprep.mubr.f32.mxu0 %v887
      %1973 = vmatmul.mubr.f32.gmra.mrb[0].mxu0 %v878
      %v1974 = vpop.f32.mrb[0].mxu0
      %v1975 = vadd.f32 %v1750, %v1974
      %v1976 = vpop.f32.mrb[0].mxu0
      %1977 = vmatprep.mubr.f32.mxu0 %v889
      %1978 = vmatmul.mubr.f32.gmra.mrb[0].mxu0 %v880
      %v1979 = vpop.f32.mrb[0].mxu0
      %v1980 = vadd.f32 %v1755, %v1979
      %v1981 = vpop.f32.mrb[0].mxu0
      %1982 = vdwg.mxu0
      %1983 = vmatprep.subr.mxu0 0.0
      %1984 = vmatpush1.msra.mxu0 %v1067
      %1985 = vmatprep.subr.mxu0 0.0
      %1986 = vmatpush1.msra.mxu0 %v1068
      %1987 = vmatprep.subr.mxu0 0.0
      %1988 = vmatpush1.msra.mxu0 %v1069
      %1989 = vmatprep.subr.mxu0 0.0
      %1990 = vmatpush1.msra.mxu0 %v1070
      %1991 = vmatprep.subr.mxu0 0.0
      %1992 = vmatpush1.msra.mxu0 %v1071
      %1993 = vmatprep.subr.mxu0 0.0
      %1994 = vmatpush1.msra.mxu0 %v1072
      %1995 = vmatprep.subr.mxu0 0.0
      %1996 = vmatpush1.msra.mxu0 %v1073
      %1997 = vmatprep.subr.mxu0 0.0
      %1998 = vmatpush1.msra.mxu0 %v1074
      %1999 = vmatprep.subr.mxu0 0.0
      %2000 = vmatpush1.msra.mxu0 %v1075
      %2001 = vmatprep.subr.mxu0 0.0
      %2002 = vmatpush1.msra.mxu0 %v1076
      %2003 = vmatprep.subr.mxu0 0.0
      %2004 = vmatpush1.msra.mxu0 %v1077
      %2005 = vmatprep.subr.mxu0 0.0
      %2006 = vmatpush1.msra.mxu0 %v1078
      %2007 = vmatprep.subr.mxu0 0.0
      %2008 = vmatpush1.msra.mxu0 %v1079
      %2009 = vmatprep.subr.mxu0 0.0
      %2010 = vmatpush1.msra.mxu0 %v1080
      %2011 = vmatprep.subr.mxu0 0.0
      %2012 = vmatpush1.msra.mxu0 %v1081
      %2013 = vmatprep.subr.mxu0 0.0
      %2014 = vmatpush1.msra.mxu0 %v1082
      %2015 = vmatprep.subr.mxu0 0.0
      %2016 = vmatpush1.msra.mxu0 0.0
      %2017 = vmatprep.subr.mxu0 0.0
      %2018 = vmatpush1.msra.mxu0 0.0
      %2019 = vmatprep.subr.mxu0 0.0
      %2020 = vmatpush1.msra.mxu0 0.0
      %2021 = vmatprep.subr.mxu0 0.0
      %2022 = vmatpush1.msra.mxu0 0.0
      %2023 = vmatprep.subr.mxu0 0.0
      %2024 = vmatpush1.msra.mxu0 0.0
      %2025 = vmatprep.subr.mxu0 0.0
      %2026 = vmatpush1.msra.mxu0 0.0
      %2027 = vmatprep.subr.mxu0 0.0
      %2028 = vmatpush1.msra.mxu0 0.0
      %2029 = vmatprep.subr.mxu0 0.0
      %2030 = vmatpush1.msra.mxu0 0.0
      %2031 = vmatprep.subr.mxu0 0.0
      %2032 = vmatpush1.msra.mxu0 0.0
      %2033 = vmatprep.subr.mxu0 0.0
      %2034 = vmatpush1.msra.mxu0 0.0
      %2035 = vmatprep.subr.mxu0 0.0
      %2036 = vmatpush1.msra.mxu0 0.0
      %2037 = vmatprep.subr.mxu0 0.0
      %2038 = vmatpush1.msra.mxu0 0.0
      %2039 = vmatprep.subr.mxu0 0.0
      %2040 = vmatpush1.msra.mxu0 0.0
      %2041 = vmatprep.subr.mxu0 0.0
      %2042 = vmatpush1.msra.mxu0 0.0
      %2043 = vmatprep.subr.mxu0 0.0
      %2044 = vmatpush1.msra.mxu0 0.0
      %2045 = vmatprep.subr.mxu0 0.0
      %2046 = vmatpush1.msra.mxu0 0.0
      %2047 = vmatprep.mubr.f32.mxu0 0.0
      %2048 = vmatmul.mubr.f32.gmra.mrb[0].mxu0 %v817
      %v2049 = vpop.f32.mrb[0].mxu0
      %v2050 = vadd.f32 %v1825, %v2049
      %v2051 = vpop.f32.mrb[0].mxu0
      %2052 = vmatprep.mubr.f32.mxu0 0.0
      %2053 = vmatmul.mubr.f32.gmra.mrb[0].mxu0 %v823
      %v2054 = vpop.f32.mrb[0].mxu0
      %v2055 = vadd.f32 %v1830, %v2054
      %v2056 = vpop.f32.mrb[0].mxu0
      %2057 = vmatprep.mubr.f32.mxu0 0.0
      %2058 = vmatmul.mubr.f32.gmra.mrb[0].mxu0 %v829
      %v2059 = vpop.f32.mrb[0].mxu0
      %v2060 = vadd.f32 %v1835, %v2059
      %v2061 = vpop.f32.mrb[0].mxu0
      %2062 = vmatprep.mubr.f32.mxu0 0.0
      %2063 = vmatmul.mubr.f32.gmra.mrb[0].mxu0 %v835
      %v2064 = vpop.f32.mrb[0].mxu0
      %v2065 = vadd.f32 %v1840, %v2064
      %v2066 = vpop.f32.mrb[0].mxu0
      %2067 = vmatprep.mubr.f32.mxu0 0.0
      %2068 = vmatmul.mubr.f32.gmra.mrb[0].mxu0 %v838
      %v2069 = vpop.f32.mrb[0].mxu0
      %v2070 = vadd.f32 %v1845, %v2069
      %v2071 = vpop.f32.mrb[0].mxu0
      %2072 = vmatprep.mubr.f32.mxu0 0.0
      %2073 = vmatmul.mubr.f32.gmra.mrb[0].mxu0 %v840
      %v2074 = vpop.f32.mrb[0].mxu0
      %v2075 = vadd.f32 %v1850, %v2074
      %v2076 = vpop.f32.mrb[0].mxu0
      %2077 = vmatprep.mubr.f32.mxu0 0.0
      %2078 = vmatmul.mubr.f32.gmra.mrb[0].mxu0 %v842
      %v2079 = vpop.f32.mrb[0].mxu0
      %v2080 = vadd.f32 %v1855, %v2079
      %v2081 = vpop.f32.mrb[0].mxu0
      %2082 = vmatprep.mubr.f32.mxu0 0.0
      %2083 = vmatmul.mubr.f32.gmra.mrb[0].mxu0 %v844
      %v2084 = vpop.f32.mrb[0].mxu0
      %v2085 = vadd.f32 %v1860, %v2084
      %v2086 = vpop.f32.mrb[0].mxu0
      %2087 = vmatprep.mubr.f32.mxu0 0.0
      %2088 = vmatmul.mubr.f32.gmra.mrb[0].mxu0 %v847
      %v2089 = vpop.f32.mrb[0].mxu0
      %v2090 = vadd.f32 %v1865, %v2089
      %v2091 = vpop.f32.mrb[0].mxu0
      %2092 = vmatprep.mubr.f32.mxu0 0.0
      %2093 = vmatmul.mubr.f32.gmra.mrb[0].mxu0 %v849
      %v2094 = vpop.f32.mrb[0].mxu0
      %v2095 = vadd.f32 %v1870, %v2094
      %v2096 = vpop.f32.mrb[0].mxu0
      %2097 = vmatprep.mubr.f32.mxu0 0.0
      %2098 = vmatmul.mubr.f32.gmra.mrb[0].mxu0 %v851
      %v2099 = vpop.f32.mrb[0].mxu0
      %v2100 = vadd.f32 %v1875, %v2099
      %v2101 = vpop.f32.mrb[0].mxu0
      %2102 = vmatprep.mubr.f32.mxu0 0.0
      %2103 = vmatmul.mubr.f32.gmra.mrb[0].mxu0 %v853
      %v2104 = vpop.f32.mrb[0].mxu0
      %v2105 = vadd.f32 %v1880, %v2104
      %v2106 = vpop.f32.mrb[0].mxu0
      %2107 = vmatprep.mubr.f32.mxu0 0.0
      %2108 = vmatmul.mubr.f32.gmra.mrb[0].mxu0 %v856
      %v2109 = vpop.f32.mrb[0].mxu0
      %v2110 = vadd.f32 %v1885, %v2109
      %v2111 = vpop.f32.mrb[0].mxu0
      %2112 = vmatprep.mubr.f32.mxu0 0.0
      %2113 = vmatmul.mubr.f32.gmra.mrb[0].mxu0 %v858
      %v2114 = vpop.f32.mrb[0].mxu0
      %v2115 = vadd.f32 %v1890, %v2114
      %v2116 = vpop.f32.mrb[0].mxu0
      %2117 = vmatprep.mubr.f32.mxu0 0.0
      %2118 = vmatmul.mubr.f32.gmra.mrb[0].mxu0 %v860
      %v2119 = vpop.f32.mrb[0].mxu0
      %v2120 = vadd.f32 %v1895, %v2119
      %v2121 = vpop.f32.mrb[0].mxu0
      %2122 = vmatprep.mubr.f32.mxu0 0.0
      %2123 = vmatmul.mubr.f32.gmra.mrb[0].mxu0 %v862
      %v2124 = vpop.f32.mrb[0].mxu0
      %v2125 = vadd.f32 %v1900, %v2124
      %v2126 = vpop.f32.mrb[0].mxu0
      %2127 = vmatprep.mubr.f32.mxu0 0.0
      %2128 = vmatmul.mubr.f32.gmra.mrb[0].mxu0 %v865
      %v2129 = vpop.f32.mrb[0].mxu0
      %v2130 = vadd.f32 %v1905, %v2129
      %v2131 = vpop.f32.mrb[0].mxu0
      %2132 = vmatprep.mubr.f32.mxu0 0.0
      %2133 = vmatmul.mubr.f32.gmra.mrb[0].mxu0 %v867
      %v2134 = vpop.f32.mrb[0].mxu0
      %v2135 = vadd.f32 %v1910, %v2134
      %v2136 = vpop.f32.mrb[0].mxu0
      %2137 = vmatprep.mubr.f32.mxu0 0.0
      %2138 = vmatmul.mubr.f32.gmra.mrb[0].mxu0 %v869
      %v2139 = vpop.f32.mrb[0].mxu0
      %v2140 = vadd.f32 %v1915, %v2139
      %v2141 = vpop.f32.mrb[0].mxu0
      %2142 = vmatprep.mubr.f32.mxu0 0.0
      %2143 = vmatmul.mubr.f32.gmra.mrb[0].mxu0 %v871
      %v2144 = vpop.f32.mrb[0].mxu0
      %v2145 = vadd.f32 %v1920, %v2144
      %v2146 = vpop.f32.mrb[0].mxu0
      %2147 = vmatprep.mubr.f32.mxu0 0.0
      %2148 = vmatmul.mubr.f32.gmra.mrb[0].mxu0 %v874
      %v2149 = vpop.f32.mrb[0].mxu0
      %v2150 = vadd.f32 %v1925, %v2149
      %v2151 = vpop.f32.mrb[0].mxu0
      %2152 = vmatprep.mubr.f32.mxu0 0.0
      %2153 = vmatmul.mubr.f32.gmra.mrb[0].mxu0 %v876
      %v2154 = vpop.f32.mrb[0].mxu0
      %v2155 = vadd.f32 %v1930, %v2154
      %v2156 = vpop.f32.mrb[0].mxu0
      %2157 = vmatprep.mubr.f32.mxu0 0.0
      %2158 = vmatmul.mubr.f32.gmra.mrb[0].mxu0 %v878
      %v2159 = vpop.f32.mrb[0].mxu0
      %v2160 = vadd.f32 %v1935, %v2159
      %v2161 = vpop.f32.mrb[0].mxu0
      %2162 = vmatprep.mubr.f32.mxu0 0.0
      %2163 = vmatmul.mubr.f32.gmra.mrb[0].mxu0 %v880
      %v2164 = vpop.f32.mrb[0].mxu0
      %v2165 = vadd.f32 %v1940, %v2164
      %v2166 = vpop.f32.mrb[0].mxu0
      %2167 = vmatprep.mubr.f32.mxu0 0.0
      %2168 = vmatmul.mubr.f32.gmra.mrb[0].mxu0 %v883
      %v2169 = vpop.f32.mrb[0].mxu0
      %v2170 = vadd.f32 %v1945, %v2169
      %v2171 = vpop.f32.mrb[0].mxu0
      %2172 = vmatprep.mubr.f32.mxu0 0.0
      %2173 = vmatmul.mubr.f32.gmra.mrb[0].mxu0 %v885
      %v2174 = vpop.f32.mrb[0].mxu0
      %v2175 = vadd.f32 %v1950, %v2174
      %v2176 = vpop.f32.mrb[0].mxu0
      %2177 = vmatprep.mubr.f32.mxu0 0.0
      %2178 = vmatmul.mubr.f32.gmra.mrb[0].mxu0 %v887
      %v2179 = vpop.f32.mrb[0].mxu0
      %v2180 = vadd.f32 %v1955, %v2179
      %v2181 = vpop.f32.mrb[0].mxu0
      %2182 = vmatprep.mubr.f32.mxu0 0.0
      %2183 = vmatmul.mubr.f32.gmra.mrb[0].mxu0 %v889
      %v2184 = vpop.f32.mrb[0].mxu0
      %v2185 = vadd.f32 %v1960, %v2184
      %v2186 = vpop.f32.mrb[0].mxu0
      %2187 = vmatprep.mubr.f32.mxu0 0.0
      %2188 = vmatmul.mubr.f32.gmra.mrb[0].mxu0 %v892
      %v2189 = vpop.f32.mrb[0].mxu0
      %v2190 = vadd.f32 %v1965, %v2189
      %v2191 = vpop.f32.mrb[0].mxu0
      %2192 = vmatprep.mubr.f32.mxu0 0.0
      %2193 = vmatmul.mubr.f32.gmra.mrb[0].mxu0 %v894
      %v2194 = vpop.f32.mrb[0].mxu0
      %v2195 = vadd.f32 %v1970, %v2194
      %v2196 = vpop.f32.mrb[0].mxu0
      %2197 = vmatprep.mubr.f32.mxu0 0.0
      %2198 = vmatmul.mubr.f32.gmra.mrb[0].mxu0 %v896
      %v2199 = vpop.f32.mrb[0].mxu0
      %v2200 = vadd.f32 %v1975, %v2199
      %v2201 = vpop.f32.mrb[0].mxu0
      %2202 = vmatprep.mubr.f32.mxu0 0.0
      %2203 = vmatmul.mubr.f32.gmra.mrb[0].mxu0 %v898
      %v2204 = vpop.f32.mrb[0].mxu0
      %v2205 = vadd.f32 %v1980, %v2204
      %v2206 = vpop.f32.mrb[0].mxu0
      %2207 = vdwg.mxu0
      %v2208 = vld [vmem:[%s4] sm:$0x1]
      %v2210 = vlaneseq
      %v2211 = vshrl.u32 %v2210, 7
      %v2212 = vsub.s32 0, %v2211
      %v2213 = vrot.slane %v2208, %v2212
      %v2215 = vmul.f32 %v2050, %v2213
      %v2216 = vmul.f32 %v2055, %v2213
      %v2217 = vmul.f32 %v2060, %v2213
      %v2218 = vmul.f32 %v2065, %v2213
      %v2219 = vmul.f32 %v2070, %v2213
      %v2220 = vmul.f32 %v2075, %v2213
      %v2221 = vmul.f32 %v2080, %v2213
      %v2222 = vmul.f32 %v2085, %v2213
      %v2223 = vmul.f32 %v2090, %v2213
      %v2224 = vmul.f32 %v2095, %v2213
      %v2225 = vmul.f32 %v2100, %v2213
      %v2226 = vmul.f32 %v2105, %v2213
      %v2227 = vmul.f32 %v2110, %v2213
      %v2228 = vmul.f32 %v2115, %v2213
      %v2229 = vmul.f32 %v2120, %v2213
      %v2230 = vmul.f32 %v2125, %v2213
      %v2231 = vmul.f32 %v2130, %v2213
      %v2232 = vmul.f32 %v2135, %v2213
      %v2233 = vmul.f32 %v2140, %v2213
      %v2234 = vmul.f32 %v2145, %v2213
      %v2235 = vmul.f32 %v2150, %v2213
      %v2236 = vmul.f32 %v2155, %v2213
      %v2237 = vmul.f32 %v2160, %v2213
      %v2238 = vmul.f32 %v2165, %v2213
      %v2239 = vmul.f32 %v2170, %v2213
      %v2240 = vmul.f32 %v2175, %v2213
      %v2241 = vmul.f32 %v2180, %v2213
      %v2242 = vmul.f32 %v2185, %v2213
      %v2243 = vmul.f32 %v2190, %v2213
      %v2244 = vmul.f32 %v2195, %v2213
      %v2245 = vmul.f32 %v2200, %v2213
      %v2246 = vmul.f32 %v2205, %v2213
      %v2247 = vld [vmem:[%s5] sm:$0x1]
      %v2249 = vlaneseq
      %v2250 = vshrl.u32 %v2249, 7
      %v2251 = vsub.s32 0, %v2250
      %v2252 = vrot.slane %v2247, %v2251
      %v2254 = vadd.f32 %v2215, %v2252
      %v2255 = vadd.f32 %v2216, %v2252
      %v2256 = vadd.f32 %v2217, %v2252
      %v2257 = vadd.f32 %v2218, %v2252
      %v2258 = vadd.f32 %v2219, %v2252
      %v2259 = vadd.f32 %v2220, %v2252
      %v2260 = vadd.f32 %v2221, %v2252
      %v2261 = vadd.f32 %v2222, %v2252
      %v2262 = vadd.f32 %v2223, %v2252
      %v2263 = vadd.f32 %v2224, %v2252
      %v2264 = vadd.f32 %v2225, %v2252
      %v2265 = vadd.f32 %v2226, %v2252
      %v2266 = vadd.f32 %v2227, %v2252
      %v2267 = vadd.f32 %v2228, %v2252
      %v2268 = vadd.f32 %v2229, %v2252
      %v2269 = vadd.f32 %v2230, %v2252
      %v2270 = vadd.f32 %v2231, %v2252
      %v2271 = vadd.f32 %v2232, %v2252
      %v2272 = vadd.f32 %v2233, %v2252
      %v2273 = vadd.f32 %v2234, %v2252
      %v2274 = vadd.f32 %v2235, %v2252
      %v2275 = vadd.f32 %v2236, %v2252
      %v2276 = vadd.f32 %v2237, %v2252
      %v2277 = vadd.f32 %v2238, %v2252
      %v2278 = vadd.f32 %v2239, %v2252
      %v2279 = vadd.f32 %v2240, %v2252
      %v2280 = vadd.f32 %v2241, %v2252
      %v2281 = vadd.f32 %v2242, %v2252
      %v2282 = vadd.f32 %v2243, %v2252
      %v2283 = vadd.f32 %v2244, %v2252
      %v2284 = vadd.f32 %v2245, %v2252
      %v2285 = vadd.f32 %v2246, %v2252
      %v2286 = vmax.f32 %v2254, 0.0
      %v2287 = vmax.f32 %v2255, 0.0
      %v2288 = vmax.f32 %v2256, 0.0
      %v2289 = vmax.f32 %v2257, 0.0
      %v2290 = vmax.f32 %v2258, 0.0
      %v2291 = vmax.f32 %v2259, 0.0
      %v2292 = vmax.f32 %v2260, 0.0
      %v2293 = vmax.f32 %v2261, 0.0
      %v2294 = vmax.f32 %v2262, 0.0
      %v2295 = vmax.f32 %v2263, 0.0
      %v2296 = vmax.f32 %v2264, 0.0
      %v2297 = vmax.f32 %v2265, 0.0
      %v2298 = vmax.f32 %v2266, 0.0
      %v2299 = vmax.f32 %v2267, 0.0
      %v2300 = vmax.f32 %v2268, 0.0
      %v2301 = vmax.f32 %v2269, 0.0
      %v2302 = vmax.f32 %v2270, 0.0
      %v2303 = vmax.f32 %v2271, 0.0
      %v2304 = vmax.f32 %v2272, 0.0
      %v2305 = vmax.f32 %v2273, 0.0
      %v2306 = vmax.f32 %v2274, 0.0
      %v2307 = vmax.f32 %v2275, 0.0
      %v2308 = vmax.f32 %v2276, 0.0
      %v2309 = vmax.f32 %v2277, 0.0
      %v2310 = vmax.f32 %v2278, 0.0
      %v2311 = vmax.f32 %v2279, 0.0
      %v2312 = vmax.f32 %v2280, 0.0
      %v2313 = vmax.f32 %v2281, 0.0
      %v2314 = vmax.f32 %v2282, 0.0
      %v2315 = vmax.f32 %v2283, 0.0
      %v2316 = vmax.f32 %v2284, 0.0
      %v2317 = vmax.f32 %v2285, 0.0
      %2318 = vst [vmem:[%s418] sm:$0xff] %v2286
      %2319 = vst [vmem:[%s418 + $0x8] sm:$0xff] %v2287
      %2320 = vst [vmem:[%s418 + $0x10] sm:$0xff] %v2288
      %2321 = vst [vmem:[%s418 + $0x18] sm:$0xff] %v2289
      %2322 = vst [vmem:[%s418 + $0x20] sm:$0xff] %v2290
      %2323 = vst [vmem:[%s418 + $0x28] sm:$0xff] %v2291
      %2324 = vst [vmem:[%s418 + $0x30] sm:$0xff] %v2292
      %2325 = vst [vmem:[%s418 + $0x38] sm:$0xff] %v2293
      %2326 = vst [vmem:[%s418 + $0x40] sm:$0xff] %v2294
      %2327 = vst [vmem:[%s418 + $0x48] sm:$0xff] %v2295
      %2328 = vst [vmem:[%s418 + $0x50] sm:$0xff] %v2296
      %2329 = vst [vmem:[%s418 + $0x58] sm:$0xff] %v2297
      %2330 = vst [vmem:[%s418 + $0x60] sm:$0xff] %v2298
      %2331 = vst [vmem:[%s418 + $0x68] sm:$0xff] %v2299
      %2332 = vst [vmem:[%s418 + $0x70] sm:$0xff] %v2300
      %2333 = vst [vmem:[%s418 + $0x78] sm:$0xff] %v2301
      %2334 = vst [vmem:[%s418 + $0x80] sm:$0xff] %v2302
      %2335 = vst [vmem:[%s418 + $0x88] sm:$0xff] %v2303
      %2336 = vst [vmem:[%s418 + $0x90] sm:$0xff] %v2304
      %2337 = vst [vmem:[%s418 + $0x98] sm:$0xff] %v2305
      %2338 = vst [vmem:[%s418 + $0xa0] sm:$0xff] %v2306
      %2339 = vst [vmem:[%s418 + $0xa8] sm:$0xff] %v2307
      %2340 = vst [vmem:[%s418 + $0xb0] sm:$0xff] %v2308
      %2341 = vst [vmem:[%s418 + $0xb8] sm:$0xff] %v2309
      %2342 = vst [vmem:[%s418 + $0xc0] sm:$0xff] %v2310
      %2343 = vst [vmem:[%s418 + $0xc8] sm:$0xff] %v2311
      %2344 = vst [vmem:[%s418 + $0xd0] sm:$0xff] %v2312
      %2345 = vst [vmem:[%s418 + $0xd8] sm:$0xff] %v2313
      %2346 = vst [vmem:[%s418 + $0xe0] sm:$0xff] %v2314
      %2347 = vst [vmem:[%s418 + $0xe8] sm:$0xff] %v2315
      %2348 = vst [vmem:[%s418 + $0xf0] sm:$0xff] %v2316
      %2349 = vst [vmem:[%s418 + $0xf8] sm:$0xff] %v2317
      %s2350 = smul.u32 8, %s22
      %p2351 = scmp.lt.s32.totalorder %s21, 1
      %s2352 = scalar_select %p2351, %s21, 1
      %p2353 = scmp.lt.s32.totalorder %s2350, 31
      %s2354 = scalar_select %p2353, %s2350, 31
      %s2355 = smul.addr %s2354, 4
      %s2356 = smul.addr %s2352, 128
      %s2357 = sadd.s32 %s2355, %s2356
      %s2358 = smul.addr %s2357, 8
      %s2359 = scalar_lea.vmem %s6, %s2358
      // Predicated region
      $region45: #{fwd.3} parent=43 // pred_check
        %p2360 = pneg %p212
      $region46: #{fwd.3} parent=43 // pred_check_branch
        %2362 = sbr.rel (%p2360) target = $region48
      $region47: #{fwd.3} parent=43 // pred_region
        %s2363 = smul.u32 8, %s22
      $region48: #{fwd.3} parent=43 // pred_fallthru
        _
    $region44: #{fwd.3} parent=5 // pred_fallthru
      _
    %p2364 = scmp.le.s32.totalorder 2, %s12
    // Predicated region
    $region49: #{fwd.3} parent=5 // pred_check
      %p2365 = pneg %p2364
    $region50: #{fwd.3} parent=5 // pred_check_branch
      %2367 = sbr.rel (%p2365) target = $region52
    $region51: #{fwd.3} parent=5 // pred_region
      %s2368 = ssub.s32 %s12, 2
      // Predicated region
      $region53: #{fwd.3} parent=51 // pred_check
        %p2369 = pneg %p218
      $region54: #{fwd.3} parent=51 // pred_check_branch
        %2371 = sbr.rel (%p2369) target = $region56
      $region55: #{fwd.3} parent=51 // pred_region
        %s2372 = smul.u32 8, %s24
        %p2373 = scmp.lt.s32.totalorder %s23, 1
        %s2374 = scalar_select %p2373, %s23, 1
        %p2375 = scmp.lt.s32.totalorder %s2372, 31
        %s2376 = scalar_select %p2375, %s2372, 31
        %s2377 = smul.addr %s2376, 4
        %s2378 = smul.addr %s2374, 128
        %s2379 = sadd.s32 %s2377, %s2378
        %s2380 = smul.addr %s2379, 8
        %s2381 = scalar_lea.vmem %s6, %s2380
      $region56: #{fwd.3} parent=51 // pred_fallthru
        _
    $region52: #{fwd.3} parent=5 // pred_fallthru
      _
  $region6: #{fwd.3} parent=0 // loop_footer
    %s16 = sadd.s32 1, %s12
  $region7: #{fwd.3} parent=0 // loop_footer_branch
    %11 = sbr.rel target = $region3
  $region8: #{fwd.3} parent=0 // loop_exit
    _

</llo_original>
